<compile_context>
chip_gen: v7x
topology: tpu7x:2x2x1
jax: 0.10.0
libtpu: 0.0.40
codegen_flags: <defaults>
</compile_context>

<pallas_src>
import functools
import math

import jax
import jax.numpy as jnp
from jax.experimental import pallas as pl
from jax.experimental.pallas import tpu as pltpu

HIDDEN = 128
HEADS = 4
HEAD_DIM = HIDDEN // HEADS
FF_SIZE = 4 * HIDDEN
EPS = 1e-6
NEG = -1e9


# ------------------------------ fused kernel -------------------------------

def _ga_fused_kernel(mask_ref, x_ref, y_ref,
                     wq_ref, bq_ref, wk_ref, bk_ref, wv_ref, bv_ref,
                     wm_ref, bm_ref, g2_ref, be2_ref,
                     w1_ref, b1_ref, w2_ref, b2_ref, g3_ref, be3_ref,
                     o_ref,
                     q_sc, k_sc, v_sc,
                     *, scale, eps, heads, head_dim):
    f32 = jnp.float32
    x = x_ref[...]                       # (Sx, H)  queries
    y = y_ref[...]                       # (Sy, H)  keys / values
    mask = mask_ref[...]                 # (1, Sy)  int32, nonzero == masked key

    # Lane-dense q/k/v projections, staged in VMEM so heads can be sliced
    # with cheap static lane-window loads.
    q_sc[...] = jnp.dot(x, wq_ref[...], preferred_element_type=f32) + bq_ref[...]
    k_sc[...] = jnp.dot(y, wk_ref[...], preferred_element_type=f32) + bk_ref[...]
    v_sc[...] = jnp.dot(y, wv_ref[...], preferred_element_type=f32) + bv_ref[...]

    # Per-head attention fused with the merge projection:
    #   merged = concat_h(ctx_h) @ Wm + bm
    #          = sum_h ctx_h @ Wm[h*dh:(h+1)*dh, :] + bm
    merged = jnp.zeros(x.shape, f32)
    for h in range(heads):               # static unroll (4 heads)
        lo = h * head_dim
        hi = lo + head_dim
        qh = q_sc[:, lo:hi]              # (Sx, dh)
        kh = k_sc[:, lo:hi]              # (Sy, dh)
        vh = v_sc[:, lo:hi]              # (Sy, dh)

        s = jnp.dot(qh, kh.T, preferred_element_type=f32) * scale   # (Sx, Sy)
        s = jnp.where(mask != 0, NEG, s)
        s = s - jnp.max(s, axis=-1, keepdims=True)
        p = jnp.exp(s)
        p = p / jnp.sum(p, axis=-1, keepdims=True)
        # TODO(synk): attention/dropout layers run in eval mode (identity).

        ctx_h = jnp.dot(p, vh, preferred_element_type=f32)           # (Sx, dh)
        merged = merged + jnp.dot(ctx_h, wm_ref[lo:hi, :],
                                  preferred_element_type=f32)
    merged = merged + bm_ref[...]

    n = x.shape[-1]

    def add_ln(a, b, g, be):
        t = a + b
        mean = jnp.mean(t, axis=-1, keepdims=True)
        d = t - mean
        # torch's unbiased std (divide by n-1), eps added to std.
        std = jnp.sqrt(jnp.sum(d * d, axis=-1, keepdims=True) / (n - 1.0))
        return g * d / (std + eps) + be

    x1 = add_ln(x, merged, g2_ref[...], be2_ref[...])                 # norm2

    hid = jnp.dot(x1, w1_ref[...], preferred_element_type=f32) + b1_ref[...]
    hid = jnp.maximum(hid, 0.0)                                       # ReLU
    ff = jnp.dot(hid, w2_ref[...], preferred_element_type=f32) + b2_ref[...]

    o_ref[...] = add_ln(x1, ff, g3_ref[...], be3_ref[...]).astype(o_ref.dtype)


def ga_forward(params, x, y, y_mask):
    """x: (B, Sx, H) queries; y: (B, Sy, H) keys/values; y_mask: (B,1,1,Sy) bool."""
    B, Sx, H = x.shape
    Sy = y.shape[1]
    mask_i32 = y_mask.reshape(B, 1, Sy).astype(jnp.int32)

    kern = functools.partial(_ga_fused_kernel,
                             scale=1.0 / math.sqrt(HEAD_DIM),
                             eps=EPS, heads=HEADS, head_dim=HEAD_DIM)

    def per_batch(s, h):                 # one batch row per grid step
        return pl.BlockSpec((None, s, h), lambda b: (b, 0, 0))

    def resident(shape):                 # constant index_map -> stays in VMEM
        return pl.BlockSpec(shape, lambda b: (0, 0))

    out = pl.pallas_call(
        kern,
        out_shape=jax.ShapeDtypeStruct((B, Sx, H), x.dtype),
        grid=(B,),
        in_specs=[
            pl.BlockSpec((None, 1, Sy), lambda b: (b, 0, 0)),   # key mask
            per_batch(Sx, H),                                    # x
            per_batch(Sy, H),                                    # y
            resident((H, H)), resident((1, H)),                  # wq, bq
            resident((H, H)), resident((1, H)),                  # wk, bk
            resident((H, H)), resident((1, H)),                  # wv, bv
            resident((H, H)), resident((1, H)),                  # wm, bm
            resident((1, H)), resident((1, H)),                  # g2, be2
            resident((H, FF_SIZE)), resident((1, FF_SIZE)),      # w1, b1
            resident((FF_SIZE, H)), resident((1, H)),            # w2, b2
            resident((1, H)), resident((1, H)),                  # g3, be3
        ],
        out_specs=pl.BlockSpec((None, Sx, H), lambda b: (b, 0, 0)),
        scratch_shapes=[
            pltpu.VMEM((Sx, H), jnp.float32),    # q
            pltpu.VMEM((Sy, H), jnp.float32),    # k
            pltpu.VMEM((Sy, H), jnp.float32),    # v
        ],
        compiler_params=pltpu.CompilerParams(
            dimension_semantics=("parallel",),
            vmem_limit_bytes=32 * 1024 * 1024),
    )(mask_i32, x, y,
      params["wq"], params["bq"].reshape(1, H),
      params["wk"], params["bk"].reshape(1, H),
      params["wv"], params["bv"].reshape(1, H),
      params["wm"], params["bm"].reshape(1, H),
      params["g2"].reshape(1, H), params["be2"].reshape(1, H),
      params["w1"], params["b1"].reshape(1, FF_SIZE),
      params["w2"], params["b2"].reshape(1, H),
      params["g3"].reshape(1, H), params["be3"].reshape(1, H))
    return out


# --------------------------- pure-JAX reference -----------------------------

def ga_reference(params, x, y, y_mask):
    B, Sx, H = x.shape
    Sy = y.shape[1]

    def lin(t, w, b):
        return t @ w + b

    q = lin(x, params["wq"], params["bq"]).reshape(
        B, Sx, HEADS, HEAD_DIM).transpose(0, 2, 1, 3)
    k = lin(y, params["wk"], params["bk"]).reshape(
        B, Sy, HEADS, HEAD_DIM).transpose(0, 2, 1, 3)
    v = lin(y, params["wv"], params["bv"]).reshape(
        B, Sy, HEADS, HEAD_DIM).transpose(0, 2, 1, 3)

    scores = jnp.einsum("bhqd,bhkd->bhqk", q, k) / math.sqrt(HEAD_DIM)
    scores = jnp.where(y_mask, NEG, scores)
    att = jax.nn.softmax(scores, axis=-1)
    ctx = jnp.einsum("bhqk,bhkd->bhqd", att, v)
    ctx = ctx.transpose(0, 2, 1, 3).reshape(B, Sx, H)
    merged = lin(ctx, params["wm"], params["bm"])

    def ln(t, g, b):
        mean = t.mean(-1, keepdims=True)
        std = jnp.sqrt(((t - mean) ** 2).sum(-1, keepdims=True) / (H - 1))
        return g * (t - mean) / (std + EPS) + b

    x1 = ln(x + merged, params["g2"], params["be2"])
    h = jnp.maximum(lin(x1, params["w1"], params["b1"]), 0.0)
    ff = lin(h, params["w2"], params["b2"])
    x2 = ln(x1 + ff, params["g3"], params["be3"])
    return x2


# --------------------------------- main -------------------------------------

def init_params(key):
    ks = jax.random.split(key, 12)

    def w(k_, shape, fan_in):
        bound = 1.0 / math.sqrt(fan_in)
        return jax.random.uniform(k_, shape, jnp.float32, -bound, bound)

    return {
        "wq": w(ks[0], (HIDDEN, HIDDEN), HIDDEN), "bq": w(ks[1], (HIDDEN,), HIDDEN),
        "wk": w(ks[2], (HIDDEN, HIDDEN), HIDDEN), "bk": w(ks[3], (HIDDEN,), HIDDEN),
        "wv": w(ks[4], (HIDDEN, HIDDEN), HIDDEN), "bv": w(ks[5], (HIDDEN,), HIDDEN),
        "wm": w(ks[6], (HIDDEN, HIDDEN), HIDDEN), "bm": w(ks[7], (HIDDEN,), HIDDEN),
        "w1": w(ks[8], (HIDDEN, FF_SIZE), HIDDEN), "b1": w(ks[9], (FF_SIZE,), HIDDEN),
        "w2": w(ks[10], (FF_SIZE, HIDDEN), FF_SIZE), "b2": w(ks[11], (HIDDEN,), FF_SIZE),
        "g2": jnp.ones((HIDDEN,), jnp.float32), "be2": jnp.zeros((HIDDEN,), jnp.float32),
        "g3": jnp.ones((HIDDEN,), jnp.float32), "be3": jnp.zeros((HIDDEN,), jnp.float32),
    }


if __name__ == "__main__":
    B, Sx, Sy = 2, 8, 8
    key = jax.random.PRNGKey(0)
    kx, ky, kp = jax.random.split(key, 3)

    x = jax.random.normal(kx, (B, Sx, HIDDEN), jnp.float32)
    y = jax.random.normal(ky, (B, Sy, HIDDEN), jnp.float32)
    # y_mask: True == masked-out key position (last two positions of batch 1).
    y_mask = jnp.zeros((B, 1, 1, Sy), jnp.bool_).at[1, 0, 0, -2:].set(True)

    params = init_params(kp)

    out = jax.jit(ga_forward)(params, x, y, y_mask)
    out = jax.block_until_ready(out)

    ref = ga_reference(params, x, y, y_mask)
    assert out.shape == (B, Sx, HIDDEN)
    assert jnp.allclose(out, ref, atol=1e-4, rtol=1e-4), (
        float(jnp.max(jnp.abs(out - ref))))

    print("KERNEL_OK")
</pallas_src>

<mosaic_0001>
module attributes {stable_mosaic.version = 11 : i64} {
  func.func @_ga_fused_kernel(%arg0: i32, %arg1: memref<1x1x8xi32, #tpu.memory_space<vmem>>, %arg2: memref<1x8x128xf32, #tpu.memory_space<vmem>>, %arg3: memref<1x8x128xf32, #tpu.memory_space<vmem>>, %arg4: memref<128x128xf32, #tpu.memory_space<vmem>>, %arg5: memref<1x128xf32, #tpu.memory_space<vmem>>, %arg6: memref<128x128xf32, #tpu.memory_space<vmem>>, %arg7: memref<1x128xf32, #tpu.memory_space<vmem>>, %arg8: memref<128x128xf32, #tpu.memory_space<vmem>>, %arg9: memref<1x128xf32, #tpu.memory_space<vmem>>, %arg10: memref<128x128xf32, #tpu.memory_space<vmem>>, %arg11: memref<1x128xf32, #tpu.memory_space<vmem>>, %arg12: memref<1x128xf32, #tpu.memory_space<vmem>>, %arg13: memref<1x128xf32, #tpu.memory_space<vmem>>, %arg14: memref<128x512xf32, #tpu.memory_space<vmem>>, %arg15: memref<1x512xf32, #tpu.memory_space<vmem>>, %arg16: memref<512x128xf32, #tpu.memory_space<vmem>>, %arg17: memref<1x128xf32, #tpu.memory_space<vmem>>, %arg18: memref<1x128xf32, #tpu.memory_space<vmem>>, %arg19: memref<1x128xf32, #tpu.memory_space<vmem>>, %arg20: memref<1x8x128xf32, #tpu.memory_space<vmem>>, %arg21: memref<8x128xf32, #tpu.memory_space<vmem>>, %arg22: memref<8x128xf32, #tpu.memory_space<vmem>>, %arg23: memref<8x128xf32, #tpu.memory_space<vmem>>) attributes {dimension_semantics = [#tpu.dimension_semantics<parallel>], iteration_bounds = array<i64: 2>, scalar_prefetch = 0 : i64, scratch_operands = 3 : i64, tpu.core_type = #tpu.core_type<tc>, window_params = [{transform_indices = @transform_0, window_bounds = array<i64: 1, 1, 8>}, {transform_indices = @transform_1, window_bounds = array<i64: 1, 8, 128>}, {transform_indices = @transform_2, window_bounds = array<i64: 1, 8, 128>}, {pipeline_mode = #tpu.pipeline_mode<synchronous>, transform_indices = @transform_3, window_bounds = array<i64: 128, 128>}, {pipeline_mode = #tpu.pipeline_mode<synchronous>, transform_indices = @transform_4, window_bounds = array<i64: 1, 128>}, {pipeline_mode = #tpu.pipeline_mode<synchronous>, transform_indices = @transform_5, window_bounds = array<i64: 128, 128>}, {pipeline_mode = #tpu.pipeline_mode<synchronous>, transform_indices = @transform_6, window_bounds = array<i64: 1, 128>}, {pipeline_mode = #tpu.pipeline_mode<synchronous>, transform_indices = @transform_7, window_bounds = array<i64: 128, 128>}, {pipeline_mode = #tpu.pipeline_mode<synchronous>, transform_indices = @transform_8, window_bounds = array<i64: 1, 128>}, {pipeline_mode = #tpu.pipeline_mode<synchronous>, transform_indices = @transform_9, window_bounds = array<i64: 128, 128>}, {pipeline_mode = #tpu.pipeline_mode<synchronous>, transform_indices = @transform_10, window_bounds = array<i64: 1, 128>}, {pipeline_mode = #tpu.pipeline_mode<synchronous>, transform_indices = @transform_11, window_bounds = array<i64: 1, 128>}, {pipeline_mode = #tpu.pipeline_mode<synchronous>, transform_indices = @transform_12, window_bounds = array<i64: 1, 128>}, {pipeline_mode = #tpu.pipeline_mode<synchronous>, transform_indices = @transform_13, window_bounds = array<i64: 128, 512>}, {pipeline_mode = #tpu.pipeline_mode<synchronous>, transform_indices = @transform_14, window_bounds = array<i64: 1, 512>}, {pipeline_mode = #tpu.pipeline_mode<synchronous>, transform_indices = @transform_15, window_bounds = array<i64: 512, 128>}, {pipeline_mode = #tpu.pipeline_mode<synchronous>, transform_indices = @transform_16, window_bounds = array<i64: 1, 128>}, {pipeline_mode = #tpu.pipeline_mode<synchronous>, transform_indices = @transform_17, window_bounds = array<i64: 1, 128>}, {pipeline_mode = #tpu.pipeline_mode<synchronous>, transform_indices = @transform_18, window_bounds = array<i64: 1, 128>}, {transform_indices = @transform_19, window_bounds = array<i64: 1, 8, 128>}]} {
    %c0 = arith.constant 0 : index
    %c0_0 = arith.constant 0 : index
    %c0_1 = arith.constant 0 : index
    %0 = vector.load %arg2[%c0, %c0_0, %c0_1] : memref<1x8x128xf32, #tpu.memory_space<vmem>>, vector<1x8x128xf32>
    %1 = vector.shape_cast %0 : vector<1x8x128xf32> to vector<8x128xf32>
    %c0_2 = arith.constant 0 : index
    %c0_3 = arith.constant 0 : index
    %c0_4 = arith.constant 0 : index
    %2 = vector.load %arg3[%c0_2, %c0_3, %c0_4] : memref<1x8x128xf32, #tpu.memory_space<vmem>>, vector<1x8x128xf32>
    %3 = vector.shape_cast %2 : vector<1x8x128xf32> to vector<8x128xf32>
    %c0_5 = arith.constant 0 : index
    %c0_6 = arith.constant 0 : index
    %c0_7 = arith.constant 0 : index
    %4 = vector.load %arg1[%c0_5, %c0_6, %c0_7] : memref<1x1x8xi32, #tpu.memory_space<vmem>>, vector<1x1x8xi32>
    %5 = vector.shape_cast %4 : vector<1x1x8xi32> to vector<1x8xi32>
    %c0_8 = arith.constant 0 : index
    %c0_9 = arith.constant 0 : index
    %6 = vector.load %arg4[%c0_8, %c0_9] : memref<128x128xf32, #tpu.memory_space<vmem>>, vector<128x128xf32>
    %cst = arith.constant dense<0.000000e+00> : vector<8x128xf32>
    %7 = tpu.matmul %1, %6, %cst {dimension_numbers = #tpu.dot_dimension_numbers<[1], [0], [0], [1], [0, 0, 1, 1], [], []>} : vector<8x128xf32>, vector<128x128xf32>, vector<8x128xf32> -> vector<8x128xf32>
    %c0_10 = arith.constant 0 : index
    %c0_11 = arith.constant 0 : index
    %8 = vector.load %arg5[%c0_10, %c0_11] : memref<1x128xf32, #tpu.memory_space<vmem>>, vector<1x128xf32>
    %9 = vector.broadcast %8 : vector<1x128xf32> to vector<8x128xf32>
    %10 = arith.addf %7, %9 : vector<8x128xf32>
    %c0_12 = arith.constant 0 : index
    %c0_13 = arith.constant 0 : index
    %11 = vector.load %arg21[%c0_12, %c0_13] : memref<8x128xf32, #tpu.memory_space<vmem>>, vector<8x128xf32>
    tpu.vector_store %arg21[%c0_12, %c0_13], %10 {strides = array<i32>} : memref<8x128xf32, #tpu.memory_space<vmem>>, vector<8x128xf32>,
    %c0_14 = arith.constant 0 : index
    %c0_15 = arith.constant 0 : index
    %12 = vector.load %arg6[%c0_14, %c0_15] : memref<128x128xf32, #tpu.memory_space<vmem>>, vector<128x128xf32>
    %cst_16 = arith.constant dense<0.000000e+00> : vector<8x128xf32>
    %13 = tpu.matmul %3, %12, %cst_16 {dimension_numbers = #tpu.dot_dimension_numbers<[1], [0], [0], [1], [0, 0, 1, 1], [], []>} : vector<8x128xf32>, vector<128x128xf32>, vector<8x128xf32> -> vector<8x128xf32>
    %c0_17 = arith.constant 0 : index
    %c0_18 = arith.constant 0 : index
    %14 = vector.load %arg7[%c0_17, %c0_18] : memref<1x128xf32, #tpu.memory_space<vmem>>, vector<1x128xf32>
    %15 = vector.broadcast %14 : vector<1x128xf32> to vector<8x128xf32>
    %16 = arith.addf %13, %15 : vector<8x128xf32>
    %c0_19 = arith.constant 0 : index
    %c0_20 = arith.constant 0 : index
    %17 = vector.load %arg22[%c0_19, %c0_20] : memref<8x128xf32, #tpu.memory_space<vmem>>, vector<8x128xf32>
    tpu.vector_store %arg22[%c0_19, %c0_20], %16 {strides = array<i32>} : memref<8x128xf32, #tpu.memory_space<vmem>>, vector<8x128xf32>,
    %c0_21 = arith.constant 0 : index
    %c0_22 = arith.constant 0 : index
    %18 = vector.load %arg8[%c0_21, %c0_22] : memref<128x128xf32, #tpu.memory_space<vmem>>, vector<128x128xf32>
    %cst_23 = arith.constant dense<0.000000e+00> : vector<8x128xf32>
    %19 = tpu.matmul %3, %18, %cst_23 {dimension_numbers = #tpu.dot_dimension_numbers<[1], [0], [0], [1], [0, 0, 1, 1], [], []>} : vector<8x128xf32>, vector<128x128xf32>, vector<8x128xf32> -> vector<8x128xf32>
    %c0_24 = arith.constant 0 : index
    %c0_25 = arith.constant 0 : index
    %20 = vector.load %arg9[%c0_24, %c0_25] : memref<1x128xf32, #tpu.memory_space<vmem>>, vector<1x128xf32>
    %21 = vector.broadcast %20 : vector<1x128xf32> to vector<8x128xf32>
    %22 = arith.addf %19, %21 : vector<8x128xf32>
    %c0_26 = arith.constant 0 : index
    %c0_27 = arith.constant 0 : index
    %23 = vector.load %arg23[%c0_26, %c0_27] : memref<8x128xf32, #tpu.memory_space<vmem>>, vector<8x128xf32>
    tpu.vector_store %arg23[%c0_26, %c0_27], %22 {strides = array<i32>} : memref<8x128xf32, #tpu.memory_space<vmem>>, vector<8x128xf32>,
    %cst_28 = arith.constant 0.000000e+00 : f32
    %24 = vector.broadcast %cst_28 : f32 to vector<8x128xf32>
    %c0_29 = arith.constant 0 : index
    %c0_30 = arith.constant 0 : index
    %25 = vector.load %arg21[%c0_29, %c0_30] : memref<8x128xf32, #tpu.memory_space<vmem>>, vector<8x32xf32>
    %c0_31 = arith.constant 0 : index
    %c0_32 = arith.constant 0 : index
    %26 = vector.load %arg22[%c0_31, %c0_32] : memref<8x128xf32, #tpu.memory_space<vmem>>, vector<8x32xf32>
    %c0_33 = arith.constant 0 : index
    %c0_34 = arith.constant 0 : index
    %27 = vector.load %arg23[%c0_33, %c0_34] : memref<8x128xf32, #tpu.memory_space<vmem>>, vector<8x32xf32>
    %28 = tpu.transpose %26, [1, 0] : vector<8x32xf32> -> vector<32x8xf32>
    %cst_35 = arith.constant dense<0.000000e+00> : vector<8x8xf32>
    %29 = tpu.matmul %25, %28, %cst_35 {dimension_numbers = #tpu.dot_dimension_numbers<[1], [0], [0], [1], [0, 0, 1, 1], [], []>} : vector<8x32xf32>, vector<32x8xf32>, vector<8x8xf32> -> vector<8x8xf32>
    %cst_36 = arith.constant 0.176776692 : f32
    %30 = vector.broadcast %cst_36 : f32 to vector<8x8xf32>
    %31 = arith.mulf %29, %30 : vector<8x8xf32>
    %c0_i32 = arith.constant 0 : i32
    %32 = vector.broadcast %c0_i32 : i32 to vector<1x8xi32>
    %33 = arith.cmpi ne, %5, %32 : vector<1x8xi32>
    %cst_37 = arith.constant -1.000000e+09 : f32
    %34 = vector.shape_cast %33 : vector<1x8xi1> to vector<1x8xi1>
    %35 = vector.broadcast %34 : vector<1x8xi1> to vector<8x8xi1>
    %36 = vector.broadcast %cst_37 : f32 to vector<8x8xf32>
    %37 = arith.select %35, %36, %31 : vector<8x8xi1>, vector<8x8xf32>
    %cst_38 = arith.constant dense<0xFF800000> : vector<8xf32>
    %38 = vector.multi_reduction <maximumf>, %37, %cst_38 [1] : vector<8x8xf32> to vector<8xf32>
    %39 = vector.shape_cast %38 : vector<8xf32> to vector<8x1xf32>
    %40 = vector.broadcast %39 : vector<8x1xf32> to vector<8x8xf32>
    %41 = arith.subf %37, %40 : vector<8x8xf32>
    %42 = math.exp %41 : vector<8x8xf32>
    %cst_39 = arith.constant dense<0.000000e+00> : vector<8xf32>
    %43 = vector.multi_reduction <add>, %42, %cst_39 [1] : vector<8x8xf32> to vector<8xf32>
    %44 = vector.shape_cast %43 : vector<8xf32> to vector<8x1xf32>
    %45 = vector.broadcast %44 : vector<8x1xf32> to vector<8x8xf32>
    %46 = arith.divf %42, %45 : vector<8x8xf32>
    %cst_40 = arith.constant dense<0.000000e+00> : vector<8x32xf32>
    %47 = tpu.matmul %46, %27, %cst_40 {dimension_numbers = #tpu.dot_dimension_numbers<[1], [0], [0], [1], [0, 0, 1, 1], [], []>} : vector<8x8xf32>, vector<8x32xf32>, vector<8x32xf32> -> vector<8x32xf32>
    %c0_41 = arith.constant 0 : index
    %c0_42 = arith.constant 0 : index
    %48 = vector.load %arg10[%c0_41, %c0_42] : memref<128x128xf32, #tpu.memory_space<vmem>>, vector<32x128xf32>
    %cst_43 = arith.constant dense<0.000000e+00> : vector<8x128xf32>
    %49 = tpu.matmul %47, %48, %cst_43 {dimension_numbers = #tpu.dot_dimension_numbers<[1], [0], [0], [1], [0, 0, 1, 1], [], []>} : vector<8x32xf32>, vector<32x128xf32>, vector<8x128xf32> -> vector<8x128xf32>
    %50 = arith.addf %24, %49 : vector<8x128xf32>
    %c0_44 = arith.constant 0 : index
    %c32 = arith.constant 32 : index
    %51 = vector.load %arg21[%c0_44, %c32] : memref<8x128xf32, #tpu.memory_space<vmem>>, vector<8x32xf32>
    %c0_45 = arith.constant 0 : index
    %c32_46 = arith.constant 32 : index
    %52 = vector.load %arg22[%c0_45, %c32_46] : memref<8x128xf32, #tpu.memory_space<vmem>>, vector<8x32xf32>
    %c0_47 = arith.constant 0 : index
    %c32_48 = arith.constant 32 : index
    %53 = vector.load %arg23[%c0_47, %c32_48] : memref<8x128xf32, #tpu.memory_space<vmem>>, vector<8x32xf32>
    %54 = tpu.transpose %52, [1, 0] : vector<8x32xf32> -> vector<32x8xf32>
    %cst_49 = arith.constant dense<0.000000e+00> : vector<8x8xf32>
    %55 = tpu.matmul %51, %54, %cst_49 {dimension_numbers = #tpu.dot_dimension_numbers<[1], [0], [0], [1], [0, 0, 1, 1], [], []>} : vector<8x32xf32>, vector<32x8xf32>, vector<8x8xf32> -> vector<8x8xf32>
    %cst_50 = arith.constant 0.176776692 : f32
    %56 = vector.broadcast %cst_50 : f32 to vector<8x8xf32>
    %57 = arith.mulf %55, %56 : vector<8x8xf32>
    %c0_i32_51 = arith.constant 0 : i32
    %58 = vector.broadcast %c0_i32_51 : i32 to vector<1x8xi32>
    %59 = arith.cmpi ne, %5, %58 : vector<1x8xi32>
    %cst_52 = arith.constant -1.000000e+09 : f32
    %60 = vector.shape_cast %59 : vector<1x8xi1> to vector<1x8xi1>
    %61 = vector.broadcast %60 : vector<1x8xi1> to vector<8x8xi1>
    %62 = vector.broadcast %cst_52 : f32 to vector<8x8xf32>
    %63 = arith.select %61, %62, %57 : vector<8x8xi1>, vector<8x8xf32>
    %cst_53 = arith.constant dense<0xFF800000> : vector<8xf32>
    %64 = vector.multi_reduction <maximumf>, %63, %cst_53 [1] : vector<8x8xf32> to vector<8xf32>
    %65 = vector.shape_cast %64 : vector<8xf32> to vector<8x1xf32>
    %66 = vector.broadcast %65 : vector<8x1xf32> to vector<8x8xf32>
    %67 = arith.subf %63, %66 : vector<8x8xf32>
    %68 = math.exp %67 : vector<8x8xf32>
    %cst_54 = arith.constant dense<0.000000e+00> : vector<8xf32>
    %69 = vector.multi_reduction <add>, %68, %cst_54 [1] : vector<8x8xf32> to vector<8xf32>
    %70 = vector.shape_cast %69 : vector<8xf32> to vector<8x1xf32>
    %71 = vector.broadcast %70 : vector<8x1xf32> to vector<8x8xf32>
    %72 = arith.divf %68, %71 : vector<8x8xf32>
    %cst_55 = arith.constant dense<0.000000e+00> : vector<8x32xf32>
    %73 = tpu.matmul %72, %53, %cst_55 {dimension_numbers = #tpu.dot_dimension_numbers<[1], [0], [0], [1], [0, 0, 1, 1], [], []>} : vector<8x8xf32>, vector<8x32xf32>, vector<8x32xf32> -> vector<8x32xf32>
    %c32_56 = arith.constant 32 : index
    %c0_57 = arith.constant 0 : index
    %74 = vector.load %arg10[%c32_56, %c0_57] : memref<128x128xf32, #tpu.memory_space<vmem>>, vector<32x128xf32>
    %cst_58 = arith.constant dense<0.000000e+00> : vector<8x128xf32>
    %75 = tpu.matmul %73, %74, %cst_58 {dimension_numbers = #tpu.dot_dimension_numbers<[1], [0], [0], [1], [0, 0, 1, 1], [], []>} : vector<8x32xf32>, vector<32x128xf32>, vector<8x128xf32> -> vector<8x128xf32>
    %76 = arith.addf %50, %75 : vector<8x128xf32>
    %c0_59 = arith.constant 0 : index
    %c64 = arith.constant 64 : index
    %77 = vector.load %arg21[%c0_59, %c64] : memref<8x128xf32, #tpu.memory_space<vmem>>, vector<8x32xf32>
    %c0_60 = arith.constant 0 : index
    %c64_61 = arith.constant 64 : index
    %78 = vector.load %arg22[%c0_60, %c64_61] : memref<8x128xf32, #tpu.memory_space<vmem>>, vector<8x32xf32>
    %c0_62 = arith.constant 0 : index
    %c64_63 = arith.constant 64 : index
    %79 = vector.load %arg23[%c0_62, %c64_63] : memref<8x128xf32, #tpu.memory_space<vmem>>, vector<8x32xf32>
    %80 = tpu.transpose %78, [1, 0] : vector<8x32xf32> -> vector<32x8xf32>
    %cst_64 = arith.constant dense<0.000000e+00> : vector<8x8xf32>
    %81 = tpu.matmul %77, %80, %cst_64 {dimension_numbers = #tpu.dot_dimension_numbers<[1], [0], [0], [1], [0, 0, 1, 1], [], []>} : vector<8x32xf32>, vector<32x8xf32>, vector<8x8xf32> -> vector<8x8xf32>
    %cst_65 = arith.constant 0.176776692 : f32
    %82 = vector.broadcast %cst_65 : f32 to vector<8x8xf32>
    %83 = arith.mulf %81, %82 : vector<8x8xf32>
    %c0_i32_66 = arith.constant 0 : i32
    %84 = vector.broadcast %c0_i32_66 : i32 to vector<1x8xi32>
    %85 = arith.cmpi ne, %5, %84 : vector<1x8xi32>
    %cst_67 = arith.constant -1.000000e+09 : f32
    %86 = vector.shape_cast %85 : vector<1x8xi1> to vector<1x8xi1>
    %87 = vector.broadcast %86 : vector<1x8xi1> to vector<8x8xi1>
    %88 = vector.broadcast %cst_67 : f32 to vector<8x8xf32>
    %89 = arith.select %87, %88, %83 : vector<8x8xi1>, vector<8x8xf32>
    %cst_68 = arith.constant dense<0xFF800000> : vector<8xf32>
    %90 = vector.multi_reduction <maximumf>, %89, %cst_68 [1] : vector<8x8xf32> to vector<8xf32>
    %91 = vector.shape_cast %90 : vector<8xf32> to vector<8x1xf32>
    %92 = vector.broadcast %91 : vector<8x1xf32> to vector<8x8xf32>
    %93 = arith.subf %89, %92 : vector<8x8xf32>
    %94 = math.exp %93 : vector<8x8xf32>
    %cst_69 = arith.constant dense<0.000000e+00> : vector<8xf32>
    %95 = vector.multi_reduction <add>, %94, %cst_69 [1] : vector<8x8xf32> to vector<8xf32>
    %96 = vector.shape_cast %95 : vector<8xf32> to vector<8x1xf32>
    %97 = vector.broadcast %96 : vector<8x1xf32> to vector<8x8xf32>
    %98 = arith.divf %94, %97 : vector<8x8xf32>
    %cst_70 = arith.constant dense<0.000000e+00> : vector<8x32xf32>
    %99 = tpu.matmul %98, %79, %cst_70 {dimension_numbers = #tpu.dot_dimension_numbers<[1], [0], [0], [1], [0, 0, 1, 1], [], []>} : vector<8x8xf32>, vector<8x32xf32>, vector<8x32xf32> -> vector<8x32xf32>
    %c64_71 = arith.constant 64 : index
    %c0_72 = arith.constant 0 : index
    %100 = vector.load %arg10[%c64_71, %c0_72] : memref<128x128xf32, #tpu.memory_space<vmem>>, vector<32x128xf32>
    %cst_73 = arith.constant dense<0.000000e+00> : vector<8x128xf32>
    %101 = tpu.matmul %99, %100, %cst_73 {dimension_numbers = #tpu.dot_dimension_numbers<[1], [0], [0], [1], [0, 0, 1, 1], [], []>} : vector<8x32xf32>, vector<32x128xf32>, vector<8x128xf32> -> vector<8x128xf32>
    %102 = arith.addf %76, %101 : vector<8x128xf32>
    %c0_74 = arith.constant 0 : index
    %c96 = arith.constant 96 : index
    %103 = vector.load %arg21[%c0_74, %c96] : memref<8x128xf32, #tpu.memory_space<vmem>>, vector<8x32xf32>
    %c0_75 = arith.constant 0 : index
    %c96_76 = arith.constant 96 : index
    %104 = vector.load %arg22[%c0_75, %c96_76] : memref<8x128xf32, #tpu.memory_space<vmem>>, vector<8x32xf32>
    %c0_77 = arith.constant 0 : index
    %c96_78 = arith.constant 96 : index
    %105 = vector.load %arg23[%c0_77, %c96_78] : memref<8x128xf32, #tpu.memory_space<vmem>>, vector<8x32xf32>
    %106 = tpu.transpose %104, [1, 0] : vector<8x32xf32> -> vector<32x8xf32>
    %cst_79 = arith.constant dense<0.000000e+00> : vector<8x8xf32>
    %107 = tpu.matmul %103, %106, %cst_79 {dimension_numbers = #tpu.dot_dimension_numbers<[1], [0], [0], [1], [0, 0, 1, 1], [], []>} : vector<8x32xf32>, vector<32x8xf32>, vector<8x8xf32> -> vector<8x8xf32>
    %cst_80 = arith.constant 0.176776692 : f32
    %108 = vector.broadcast %cst_80 : f32 to vector<8x8xf32>
    %109 = arith.mulf %107, %108 : vector<8x8xf32>
    %c0_i32_81 = arith.constant 0 : i32
    %110 = vector.broadcast %c0_i32_81 : i32 to vector<1x8xi32>
    %111 = arith.cmpi ne, %5, %110 : vector<1x8xi32>
    %cst_82 = arith.constant -1.000000e+09 : f32
    %112 = vector.shape_cast %111 : vector<1x8xi1> to vector<1x8xi1>
    %113 = vector.broadcast %112 : vector<1x8xi1> to vector<8x8xi1>
    %114 = vector.broadcast %cst_82 : f32 to vector<8x8xf32>
    %115 = arith.select %113, %114, %109 : vector<8x8xi1>, vector<8x8xf32>
    %cst_83 = arith.constant dense<0xFF800000> : vector<8xf32>
    %116 = vector.multi_reduction <maximumf>, %115, %cst_83 [1] : vector<8x8xf32> to vector<8xf32>
    %117 = vector.shape_cast %116 : vector<8xf32> to vector<8x1xf32>
    %118 = vector.broadcast %117 : vector<8x1xf32> to vector<8x8xf32>
    %119 = arith.subf %115, %118 : vector<8x8xf32>
    %120 = math.exp %119 : vector<8x8xf32>
    %cst_84 = arith.constant dense<0.000000e+00> : vector<8xf32>
    %121 = vector.multi_reduction <add>, %120, %cst_84 [1] : vector<8x8xf32> to vector<8xf32>
    %122 = vector.shape_cast %121 : vector<8xf32> to vector<8x1xf32>
    %123 = vector.broadcast %122 : vector<8x1xf32> to vector<8x8xf32>
    %124 = arith.divf %120, %123 : vector<8x8xf32>
    %cst_85 = arith.constant dense<0.000000e+00> : vector<8x32xf32>
    %125 = tpu.matmul %124, %105, %cst_85 {dimension_numbers = #tpu.dot_dimension_numbers<[1], [0], [0], [1], [0, 0, 1, 1], [], []>} : vector<8x8xf32>, vector<8x32xf32>, vector<8x32xf32> -> vector<8x32xf32>
    %c96_86 = arith.constant 96 : index
    %c0_87 = arith.constant 0 : index
    %126 = vector.load %arg10[%c96_86, %c0_87] : memref<128x128xf32, #tpu.memory_space<vmem>>, vector<32x128xf32>
    %cst_88 = arith.constant dense<0.000000e+00> : vector<8x128xf32>
    %127 = tpu.matmul %125, %126, %cst_88 {dimension_numbers = #tpu.dot_dimension_numbers<[1], [0], [0], [1], [0, 0, 1, 1], [], []>} : vector<8x32xf32>, vector<32x128xf32>, vector<8x128xf32> -> vector<8x128xf32>
    %128 = arith.addf %102, %127 : vector<8x128xf32>
    %c0_89 = arith.constant 0 : index
    %c0_90 = arith.constant 0 : index
    %129 = vector.load %arg11[%c0_89, %c0_90] : memref<1x128xf32, #tpu.memory_space<vmem>>, vector<1x128xf32>
    %130 = vector.broadcast %129 : vector<1x128xf32> to vector<8x128xf32>
    %131 = arith.addf %128, %130 : vector<8x128xf32>
    %c0_91 = arith.constant 0 : index
    %c0_92 = arith.constant 0 : index
    %132 = vector.load %arg12[%c0_91, %c0_92] : memref<1x128xf32, #tpu.memory_space<vmem>>, vector<1x128xf32>
    %c0_93 = arith.constant 0 : index
    %c0_94 = arith.constant 0 : index
    %133 = vector.load %arg13[%c0_93, %c0_94] : memref<1x128xf32, #tpu.memory_space<vmem>>, vector<1x128xf32>
    %134 = arith.addf %1, %131 : vector<8x128xf32>
    %cst_95 = arith.constant dense<0.000000e+00> : vector<8xf32>
    %135 = vector.multi_reduction <add>, %134, %cst_95 [1] : vector<8x128xf32> to vector<8xf32>
    %136 = vector.shape_cast %135 : vector<8xf32> to vector<8x1xf32>
    %cst_96 = arith.constant 1.280000e+02 : f32
    %137 = vector.broadcast %cst_96 : f32 to vector<8x1xf32>
    %138 = arith.divf %136, %137 : vector<8x1xf32>
    %139 = vector.broadcast %138 : vector<8x1xf32> to vector<8x128xf32>
    %140 = arith.subf %134, %139 : vector<8x128xf32>
    %141 = arith.mulf %140, %140 : vector<8x128xf32>
    %cst_97 = arith.constant dense<0.000000e+00> : vector<8xf32>
    %142 = vector.multi_reduction <add>, %141, %cst_97 [1] : vector<8x128xf32> to vector<8xf32>
    %143 = vector.shape_cast %142 : vector<8xf32> to vector<8x1xf32>
    %cst_98 = arith.constant 1.270000e+02 : f32
    %144 = vector.broadcast %cst_98 : f32 to vector<8x1xf32>
    %145 = arith.divf %143, %144 : vector<8x1xf32>
    %146 = math.sqrt %145 : vector<8x1xf32>
    %147 = vector.broadcast %132 : vector<1x128xf32> to vector<8x128xf32>
    %148 = arith.mulf %147, %140 : vector<8x128xf32>
    %cst_99 = arith.constant 9.99999997E-7 : f32
    %149 = vector.broadcast %cst_99 : f32 to vector<8x1xf32>
    %150 = arith.addf %146, %149 : vector<8x1xf32>
    %151 = vector.broadcast %150 : vector<8x1xf32> to vector<8x128xf32>
    %152 = arith.divf %148, %151 : vector<8x128xf32>
    %153 = vector.broadcast %133 : vector<1x128xf32> to vector<8x128xf32>
    %154 = arith.addf %152, %153 : vector<8x128xf32>
    %c0_100 = arith.constant 0 : index
    %c0_101 = arith.constant 0 : index
    %155 = vector.load %arg14[%c0_100, %c0_101] : memref<128x512xf32, #tpu.memory_space<vmem>>, vector<128x512xf32>
    %cst_102 = arith.constant dense<0.000000e+00> : vector<8x512xf32>
    %156 = tpu.matmul %154, %155, %cst_102 {dimension_numbers = #tpu.dot_dimension_numbers<[1], [0], [0], [1], [0, 0, 1, 1], [], []>} : vector<8x128xf32>, vector<128x512xf32>, vector<8x512xf32> -> vector<8x512xf32>
    %c0_103 = arith.constant 0 : index
    %c0_104 = arith.constant 0 : index
    %157 = vector.load %arg15[%c0_103, %c0_104] : memref<1x512xf32, #tpu.memory_space<vmem>>, vector<1x512xf32>
    %158 = vector.broadcast %157 : vector<1x512xf32> to vector<8x512xf32>
    %159 = arith.addf %156, %158 : vector<8x512xf32>
    %cst_105 = arith.constant 0.000000e+00 : f32
    %160 = vector.broadcast %cst_105 : f32 to vector<8x512xf32>
    %161 = arith.maximumf %159, %160 : vector<8x512xf32>
    %c0_106 = arith.constant 0 : index
    %c0_107 = arith.constant 0 : index
    %162 = vector.load %arg16[%c0_106, %c0_107] : memref<512x128xf32, #tpu.memory_space<vmem>>, vector<512x128xf32>
    %cst_108 = arith.constant dense<0.000000e+00> : vector<8x128xf32>
    %163 = tpu.matmul %161, %162, %cst_108 {dimension_numbers = #tpu.dot_dimension_numbers<[1], [0], [0], [1], [0, 0, 1, 1], [], []>} : vector<8x512xf32>, vector<512x128xf32>, vector<8x128xf32> -> vector<8x128xf32>
    %c0_109 = arith.constant 0 : index
    %c0_110 = arith.constant 0 : index
    %164 = vector.load %arg17[%c0_109, %c0_110] : memref<1x128xf32, #tpu.memory_space<vmem>>, vector<1x128xf32>
    %165 = vector.broadcast %164 : vector<1x128xf32> to vector<8x128xf32>
    %166 = arith.addf %163, %165 : vector<8x128xf32>
    %c0_111 = arith.constant 0 : index
    %c0_112 = arith.constant 0 : index
    %167 = vector.load %arg18[%c0_111, %c0_112] : memref<1x128xf32, #tpu.memory_space<vmem>>, vector<1x128xf32>
    %c0_113 = arith.constant 0 : index
    %c0_114 = arith.constant 0 : index
    %168 = vector.load %arg19[%c0_113, %c0_114] : memref<1x128xf32, #tpu.memory_space<vmem>>, vector<1x128xf32>
    %169 = arith.addf %154, %166 : vector<8x128xf32>
    %cst_115 = arith.constant dense<0.000000e+00> : vector<8xf32>
    %170 = vector.multi_reduction <add>, %169, %cst_115 [1] : vector<8x128xf32> to vector<8xf32>
    %171 = vector.shape_cast %170 : vector<8xf32> to vector<8x1xf32>
    %cst_116 = arith.constant 1.280000e+02 : f32
    %172 = vector.broadcast %cst_116 : f32 to vector<8x1xf32>
    %173 = arith.divf %171, %172 : vector<8x1xf32>
    %174 = vector.broadcast %173 : vector<8x1xf32> to vector<8x128xf32>
    %175 = arith.subf %169, %174 : vector<8x128xf32>
    %176 = arith.mulf %175, %175 : vector<8x128xf32>
    %cst_117 = arith.constant dense<0.000000e+00> : vector<8xf32>
    %177 = vector.multi_reduction <add>, %176, %cst_117 [1] : vector<8x128xf32> to vector<8xf32>
    %178 = vector.shape_cast %177 : vector<8xf32> to vector<8x1xf32>
    %cst_118 = arith.constant 1.270000e+02 : f32
    %179 = vector.broadcast %cst_118 : f32 to vector<8x1xf32>
    %180 = arith.divf %178, %179 : vector<8x1xf32>
    %181 = math.sqrt %180 : vector<8x1xf32>
    %182 = vector.broadcast %167 : vector<1x128xf32> to vector<8x128xf32>
    %183 = arith.mulf %182, %175 : vector<8x128xf32>
    %cst_119 = arith.constant 9.99999997E-7 : f32
    %184 = vector.broadcast %cst_119 : f32 to vector<8x1xf32>
    %185 = arith.addf %181, %184 : vector<8x1xf32>
    %186 = vector.broadcast %185 : vector<8x1xf32> to vector<8x128xf32>
    %187 = arith.divf %183, %186 : vector<8x128xf32>
    %188 = vector.broadcast %168 : vector<1x128xf32> to vector<8x128xf32>
    %189 = arith.addf %187, %188 : vector<8x128xf32>
    %c0_120 = arith.constant 0 : index
    %c0_121 = arith.constant 0 : index
    %c0_122 = arith.constant 0 : index
    %190 = vector.load %arg20[%c0_120, %c0_121, %c0_122] : memref<1x8x128xf32, #tpu.memory_space<vmem>>, vector<1x8x128xf32>
    %191 = vector.shape_cast %190 : vector<1x8x128xf32> to vector<8x128xf32>
    %192 = vector.shape_cast %189 : vector<8x128xf32> to vector<1x8x128xf32>
    tpu.vector_store %arg20[%c0_120, %c0_121, %c0_122], %192 {strides = array<i32>} : memref<1x8x128xf32, #tpu.memory_space<vmem>>, vector<1x8x128xf32>,
    return
  }
  func.func @transform_0(%arg0: i32) -> (i32, i32, i32) {
    %c0_i32 = arith.constant 0 : i32
    %c0_i32_0 = arith.constant 0 : i32
    %c0_i32_1 = arith.constant 0 : i32
    return %arg0, %c0_i32, %c0_i32_0 : i32, i32, i32
  }
  func.func @transform_1(%arg0: i32) -> (i32, i32, i32) {
    %c0_i32 = arith.constant 0 : i32
    %c0_i32_0 = arith.constant 0 : i32
    %c0_i32_1 = arith.constant 0 : i32
    return %arg0, %c0_i32, %c0_i32_0 : i32, i32, i32
  }
  func.func @transform_2(%arg0: i32) -> (i32, i32, i32) {
    %c0_i32 = arith.constant 0 : i32
    %c0_i32_0 = arith.constant 0 : i32
    %c0_i32_1 = arith.constant 0 : i32
    return %arg0, %c0_i32, %c0_i32_0 : i32, i32, i32
  }
  func.func @transform_3(%arg0: i32) -> (i32, i32) {
    %c0_i32 = arith.constant 0 : i32
    %c0_i32_0 = arith.constant 0 : i32
    %c0_i32_1 = arith.constant 0 : i32
    return %c0_i32, %c0_i32_0 : i32, i32
  }
  func.func @transform_4(%arg0: i32) -> (i32, i32) {
    %c0_i32 = arith.constant 0 : i32
    %c0_i32_0 = arith.constant 0 : i32
    %c0_i32_1 = arith.constant 0 : i32
    return %c0_i32, %c0_i32_0 : i32, i32
  }
  func.func @transform_5(%arg0: i32) -> (i32, i32) {
    %c0_i32 = arith.constant 0 : i32
    %c0_i32_0 = arith.constant 0 : i32
    %c0_i32_1 = arith.constant 0 : i32
    return %c0_i32, %c0_i32_0 : i32, i32
  }
  func.func @transform_6(%arg0: i32) -> (i32, i32) {
    %c0_i32 = arith.constant 0 : i32
    %c0_i32_0 = arith.constant 0 : i32
    %c0_i32_1 = arith.constant 0 : i32
    return %c0_i32, %c0_i32_0 : i32, i32
  }
  func.func @transform_7(%arg0: i32) -> (i32, i32) {
    %c0_i32 = arith.constant 0 : i32
    %c0_i32_0 = arith.constant 0 : i32
    %c0_i32_1 = arith.constant 0 : i32
    return %c0_i32, %c0_i32_0 : i32, i32
  }
  func.func @transform_8(%arg0: i32) -> (i32, i32) {
    %c0_i32 = arith.constant 0 : i32
    %c0_i32_0 = arith.constant 0 : i32
    %c0_i32_1 = arith.constant 0 : i32
    return %c0_i32, %c0_i32_0 : i32, i32
  }
  func.func @transform_9(%arg0: i32) -> (i32, i32) {
    %c0_i32 = arith.constant 0 : i32
    %c0_i32_0 = arith.constant 0 : i32
    %c0_i32_1 = arith.constant 0 : i32
    return %c0_i32, %c0_i32_0 : i32, i32
  }
  func.func @transform_10(%arg0: i32) -> (i32, i32) {
    %c0_i32 = arith.constant 0 : i32
    %c0_i32_0 = arith.constant 0 : i32
    %c0_i32_1 = arith.constant 0 : i32
    return %c0_i32, %c0_i32_0 : i32, i32
  }
  func.func @transform_11(%arg0: i32) -> (i32, i32) {
    %c0_i32 = arith.constant 0 : i32
    %c0_i32_0 = arith.constant 0 : i32
    %c0_i32_1 = arith.constant 0 : i32
    return %c0_i32, %c0_i32_0 : i32, i32
  }
  func.func @transform_12(%arg0: i32) -> (i32, i32) {
    %c0_i32 = arith.constant 0 : i32
    %c0_i32_0 = arith.constant 0 : i32
    %c0_i32_1 = arith.constant 0 : i32
    return %c0_i32, %c0_i32_0 : i32, i32
  }
  func.func @transform_13(%arg0: i32) -> (i32, i32) {
    %c0_i32 = arith.constant 0 : i32
    %c0_i32_0 = arith.constant 0 : i32
    %c0_i32_1 = arith.constant 0 : i32
    return %c0_i32, %c0_i32_0 : i32, i32
  }
  func.func @transform_14(%arg0: i32) -> (i32, i32) {
    %c0_i32 = arith.constant 0 : i32
    %c0_i32_0 = arith.constant 0 : i32
    %c0_i32_1 = arith.constant 0 : i32
    return %c0_i32, %c0_i32_0 : i32, i32
  }
  func.func @transform_15(%arg0: i32) -> (i32, i32) {
    %c0_i32 = arith.constant 0 : i32
    %c0_i32_0 = arith.constant 0 : i32
    %c0_i32_1 = arith.constant 0 : i32
    return %c0_i32, %c0_i32_0 : i32, i32
  }
  func.func @transform_16(%arg0: i32) -> (i32, i32) {
    %c0_i32 = arith.constant 0 : i32
    %c0_i32_0 = arith.constant 0 : i32
    %c0_i32_1 = arith.constant 0 : i32
    return %c0_i32, %c0_i32_0 : i32, i32
  }
  func.func @transform_17(%arg0: i32) -> (i32, i32) {
    %c0_i32 = arith.constant 0 : i32
    %c0_i32_0 = arith.constant 0 : i32
    %c0_i32_1 = arith.constant 0 : i32
    return %c0_i32, %c0_i32_0 : i32, i32
  }
  func.func @transform_18(%arg0: i32) -> (i32, i32) {
    %c0_i32 = arith.constant 0 : i32
    %c0_i32_0 = arith.constant 0 : i32
    %c0_i32_1 = arith.constant 0 : i32
    return %c0_i32, %c0_i32_0 : i32, i32
  }
  func.func @transform_19(%arg0: i32) -> (i32, i32, i32) {
    %c0_i32 = arith.constant 0 : i32
    %c0_i32_0 = arith.constant 0 : i32
    %c0_i32_1 = arith.constant 0 : i32
    return %arg0, %c0_i32, %c0_i32_0 : i32, i32, i32
  }
}

</mosaic_0001>

<llo_original>
// kernel: ga_forward.1
$region0: #{ga_forward.1}
  #allocation0 [shape = 'u32[]', space=smem, size = 0x4, offset = 0x4, fixed_abs, tag = 'smem constant byte address 0x4 - core index']
  #allocation1 [shape = 'u32[144,128]{1,0:T(1,128)}', space=vmem, size = 0x12000, scoped, tag = 'internal scratch']
  #allocation2 [shape = 'f32[8,128]{1,0:T(8,128)}', space=vmem, size = 0x1000, scoped, tag = 'scratch operand']
  #allocation3 [shape = 'f32[8,128]{1,0:T(8,128)}', space=vmem, size = 0x1000, scoped, tag = 'scratch operand']
  #allocation4 [shape = 'f32[8,128]{1,0:T(8,128)}', space=vmem, size = 0x1000, scoped, tag = 'scratch operand']
  %s0 = inlined_call_operand.vmem [shape: s32[2,1,8], index: 0, kind: input, shape index: {}]
  %s1 = inlined_call_operand.vmem [shape: f32[2,8,128], index: 1, kind: input, shape index: {}]
  %s2 = inlined_call_operand.vmem [shape: f32[2,8,128], index: 2, kind: input, shape index: {}]
  %s3 = inlined_call_operand.hbm [shape: f32[128,128], index: 3, kind: input, shape index: {}]
  %s4 = inlined_call_operand.vmem [shape: f32[1,128], index: 4, kind: input, shape index: {}]
  %s5 = inlined_call_operand.hbm [shape: f32[128,128], index: 5, kind: input, shape index: {}]
  %s6 = inlined_call_operand.vmem [shape: f32[1,128], index: 6, kind: input, shape index: {}]
  %s7 = inlined_call_operand.hbm [shape: f32[128,128], index: 7, kind: input, shape index: {}]
  %s8 = inlined_call_operand.vmem [shape: f32[1,128], index: 8, kind: input, shape index: {}]
  %s9 = inlined_call_operand.hbm [shape: f32[128,128], index: 9, kind: input, shape index: {}]
  %s10 = inlined_call_operand.vmem [shape: f32[1,128], index: 10, kind: input, shape index: {}]
  %s11 = inlined_call_operand.vmem [shape: f32[1,128], index: 11, kind: input, shape index: {}]
  %s12 = inlined_call_operand.vmem [shape: f32[1,128], index: 12, kind: input, shape index: {}]
  %s13 = inlined_call_operand.hbm [shape: f32[128,512], index: 13, kind: input, shape index: {}]
  %s14 = inlined_call_operand.vmem [shape: f32[1,512], index: 14, kind: input, shape index: {}]
  %s15 = inlined_call_operand.hbm [shape: f32[512,128], index: 15, kind: input, shape index: {}]
  %s16 = inlined_call_operand.vmem [shape: f32[1,128], index: 16, kind: input, shape index: {}]
  %s17 = inlined_call_operand.vmem [shape: f32[1,128], index: 17, kind: input, shape index: {}]
  %s18 = inlined_call_operand.vmem [shape: f32[1,128], index: 18, kind: input, shape index: {}]
  %s19 = inlined_call_operand.hbm [shape: f32[2,8,128], index: 19, kind: output, shape index: {}]
  %s20 = sld [smem:[#allocation0]]
  $region133: #{ga_forward.1} parent=0
    _
  %s22 = ssub.s32 1, %s20
  %s23 = scalar_select 0, %s22, %s20
  $region1: #{ga_forward.1} parent=0
    #allocation5 [shape = 'u8[65536]{0}', space=vmem, size = 0x10000, scoped, tag = 'input window, operand 3, single buffered']
    #allocation6 [shape = 's32[2]{0}', space=sflag, size = 0x8, scoped, tag = 'scoped memory for ga_forward.1']
    #allocation7 [shape = 's32[2]{0}', space=sflag, size = 0x8, scoped, tag = 'scoped memory for ga_forward.1']
    #allocation8 [shape = 'u8[65536]{0}', space=vmem, size = 0x10000, scoped, tag = 'input window, operand 5, single buffered']
    #allocation9 [shape = 's32[1]{0}', space=sflag, size = 0x4, scoped, tag = 'scoped memory for ga_forward.1']
    #allocation10 [shape = 'u8[65536]{0}', space=vmem, size = 0x10000, scoped, tag = 'input window, operand 7, single buffered']
    #allocation11 [shape = 'u8[65536]{0}', space=vmem, size = 0x10000, scoped, tag = 'input window, operand 9, single buffered']
    #allocation12 [shape = 's32[1]{0}', space=sflag, size = 0x4, scoped, tag = 'scoped memory for ga_forward.1']
    #allocation13 [shape = 'u8[262144]{0}', space=vmem, size = 0x40000, scoped, tag = 'input window, operand 13, single buffered']
    #allocation14 [shape = 'u8[262144]{0}', space=vmem, size = 0x40000, scoped, tag = 'input window, operand 15, single buffered']
    #allocation15 [shape = 's32[1]{0}', space=sflag, size = 0x4, scoped, tag = 'scoped memory for ga_forward.1']
    #allocation16 [shape = 'u8[8192]{0}', space=vmem, size = 0x2000, scoped, tag = 'output window, operand 0']
    %24 = vsyncpa [#allocation6], 0
    %25 = vsyncpa [#allocation9], 0
    %26 = vsyncpa [#allocation12], 0
    %27 = vsyncpa [#allocation15], 0
    %28 = vsyncpa [#allocation7], 0
    %s29 = scalar_lea.sflag [#allocation7], 1
    %30 = vsyncpa %s29, 0
    loop: start=0, step=1, limit=4
    $region2: #{ga_forward.1} parent=1 // loop_pre_header
      _
    $region3: #{ga_forward.1} parent=1 // loop_header
      %s32 = sphi 0, %s36
      %p33 = scmp.ge.s32.totalorder %s32, 4
      %s42 = sphi 0, %s44
      %s45 = sphi 0, %s42
      %s46 = sphi 0, %s45
      %s62 = sphi 0, %s46
      %s68 = sphi 0, %s70
      %s71 = sphi 0, %s68
      %s72 = sphi 0, %s71
      %s88 = sphi 0, %s72
      %s94 = sphi 0, %s96
      %s97 = sphi 0, %s94
      %s98 = sphi 0, %s97
      %s114 = sphi 0, %s98
      %s118 = sphi 0, %s118
      %s120 = sphi 0, %s118
      %s121 = sphi 0, %s120
      %s135 = sphi 0, %s121
      %s139 = sphi 0, %s139
      %s141 = sphi 0, %s139
      %s142 = sphi 0, %s141
      %s156 = sphi 0, %s142
      %s160 = sphi 0, %s160
      %s162 = sphi 0, %s160
      %s163 = sphi 0, %s162
      %s177 = sphi 0, %s163
      %s181 = sphi 0, %s181
      %s183 = sphi 0, %s181
      %s184 = sphi 0, %s183
      %s198 = sphi 0, %s184
      %s202 = sphi 0, %s202
      %s204 = sphi 0, %s202
      %s205 = sphi 0, %s204
      %s219 = sphi 0, %s205
      %s223 = sphi 0, %s223
      %s225 = sphi 0, %s223
      %s226 = sphi 0, %s225
      %s240 = sphi 0, %s226
      %s244 = sphi 0, %s244
      %s246 = sphi 0, %s244
      %s247 = sphi 0, %s246
      %s261 = sphi 0, %s247
      %s265 = sphi 0, %s265
      %s267 = sphi 0, %s265
      %s268 = sphi 0, %s267
      %s282 = sphi 0, %s268
      %s286 = sphi 0, %s286
      %s288 = sphi 0, %s286
      %s289 = sphi 0, %s288
      %s303 = sphi 0, %s289
      %s307 = sphi 0, %s307
      %s309 = sphi 0, %s307
      %s310 = sphi 0, %s309
      %s324 = sphi 0, %s310
      %s328 = sphi 0, %s328
      %s330 = sphi 0, %s328
      %s331 = sphi 0, %s330
      %s345 = sphi 0, %s331
      %s349 = sphi 0, %s349
      %s351 = sphi 0, %s349
      %s352 = sphi 0, %s351
      %s366 = sphi 0, %s352
      %s370 = sphi 0, %s370
      %s372 = sphi 0, %s370
      %s373 = sphi 0, %s372
      %s387 = sphi 0, %s373
      %s391 = sphi 0, %s391
      %s393 = sphi 0, %s391
      %s394 = sphi 0, %s393
      %s408 = sphi 0, %s394
      %s412 = sphi 0, %s412
      %s414 = sphi 0, %s412
      %s415 = sphi 0, %s414
      %s429 = sphi 0, %s415
      %s433 = sphi 0, %s433
      %s435 = sphi 0, %s433
      %s436 = sphi 0, %s435
      %s450 = sphi 0, %s436
      %s456 = sphi 0, %s458
      %s459 = sphi 0, %s456
      %s460 = sphi 0, %s459
      %s476 = sphi 0, %s460
    $region4: #{ga_forward.1} parent=1 // loop_header_branch
      %35 = sbr.rel (%p33) target = $region8
    $region5: #{ga_forward.1} parent=1 // loop_body
      %s37 = ssub.s32 %s32, 1
      %s38 = ssub.s32 %s32, 2
      %s39 = sadd.s32 %s32, 1
      %s40 = ssub.s32 %s32, %s39
      %p41 = scmp.eq.s32.totalorder %s40, 0
      %s43 = sadd.s32 %s42, 1
      %s44 = scalar_select %p41, %s42, %s43
      %p47 = pneg %p41
      %p48 = scmp.eq.s32.totalorder %s32, 1
      %p49 = por %p47, %p48
      %p50 = scmp.ne.s32.totalorder %s42, %s45
      %p51 = scmp.eq.s32.totalorder %s32, 0
      %p52 = por %p50, %p51
      %p53 = scmp.ne.s32.totalorder %s42, %s45
      %p54 = scmp.eq.s32.totalorder %s37, 1
      %p55 = por %p53, %p54
      %p56 = scmp.ne.s32.totalorder %s45, %s46
      %p57 = scmp.eq.s32.totalorder %s37, 0
      %p58 = por %p56, %p57
      %p59 = scmp.ne.s32.totalorder %s45, %s46
      %p60 = scmp.eq.s32.totalorder %s38, 1
      %p61 = por %p59, %p60
      %p63 = scmp.ne.s32.totalorder %s46, %s62
      %p64 = scmp.eq.s32.totalorder %s38, 0
      %p65 = por %p63, %p64
      %s66 = ssub.s32 %s32, %s39
      %p67 = scmp.eq.s32.totalorder %s66, 0
      %s69 = sadd.s32 %s68, 1
      %s70 = scalar_select %p67, %s68, %s69
      %p73 = pneg %p67
      %p74 = scmp.eq.s32.totalorder %s32, 1
      %p75 = por %p73, %p74
      %p76 = scmp.ne.s32.totalorder %s68, %s71
      %p77 = scmp.eq.s32.totalorder %s32, 0
      %p78 = por %p76, %p77
      %p79 = scmp.ne.s32.totalorder %s68, %s71
      %p80 = scmp.eq.s32.totalorder %s37, 1
      %p81 = por %p79, %p80
      %p82 = scmp.ne.s32.totalorder %s71, %s72
      %p83 = scmp.eq.s32.totalorder %s37, 0
      %p84 = por %p82, %p83
      %p85 = scmp.ne.s32.totalorder %s71, %s72
      %p86 = scmp.eq.s32.totalorder %s38, 1
      %p87 = por %p85, %p86
      %p89 = scmp.ne.s32.totalorder %s72, %s88
      %p90 = scmp.eq.s32.totalorder %s38, 0
      %p91 = por %p89, %p90
      %s92 = ssub.s32 %s32, %s39
      %p93 = scmp.eq.s32.totalorder %s92, 0
      %s95 = sadd.s32 %s94, 1
      %s96 = scalar_select %p93, %s94, %s95
      %p99 = pneg %p93
      %p100 = scmp.eq.s32.totalorder %s32, 1
      %p101 = por %p99, %p100
      %p102 = scmp.ne.s32.totalorder %s94, %s97
      %p103 = scmp.eq.s32.totalorder %s32, 0
      %p104 = por %p102, %p103
      %p105 = scmp.ne.s32.totalorder %s94, %s97
      %p106 = scmp.eq.s32.totalorder %s37, 1
      %p107 = por %p105, %p106
      %p108 = scmp.ne.s32.totalorder %s97, %s98
      %p109 = scmp.eq.s32.totalorder %s37, 0
      %p110 = por %p108, %p109
      %p111 = scmp.ne.s32.totalorder %s97, %s98
      %p112 = scmp.eq.s32.totalorder %s38, 1
      %p113 = por %p111, %p112
      %p115 = scmp.ne.s32.totalorder %s98, %s114
      %p116 = scmp.eq.s32.totalorder %s38, 0
      %p117 = por %p115, %p116
      %s119 = sadd.s32 %s118, 1
      %p122 = scmp.eq.s32.totalorder %s32, 1
      %p123 = scmp.ne.s32.totalorder %s118, %s120
      %p124 = scmp.eq.s32.totalorder %s32, 0
      %p125 = por %p123, %p124
      %p126 = scmp.ne.s32.totalorder %s118, %s120
      %p127 = scmp.eq.s32.totalorder %s37, 1
      %p128 = por %p126, %p127
      %p129 = scmp.ne.s32.totalorder %s120, %s121
      %p130 = scmp.eq.s32.totalorder %s37, 0
      %p131 = por %p129, %p130
      %p132 = scmp.ne.s32.totalorder %s120, %s121
      %p133 = scmp.eq.s32.totalorder %s38, 1
      %p134 = por %p132, %p133
      %p136 = scmp.ne.s32.totalorder %s121, %s135
      %p137 = scmp.eq.s32.totalorder %s38, 0
      %p138 = por %p136, %p137
      %s140 = sadd.s32 %s139, 1
      %p143 = scmp.eq.s32.totalorder %s32, 1
      %p144 = scmp.ne.s32.totalorder %s139, %s141
      %p145 = scmp.eq.s32.totalorder %s32, 0
      %p146 = por %p144, %p145
      %p147 = scmp.ne.s32.totalorder %s139, %s141
      %p148 = scmp.eq.s32.totalorder %s37, 1
      %p149 = por %p147, %p148
      %p150 = scmp.ne.s32.totalorder %s141, %s142
      %p151 = scmp.eq.s32.totalorder %s37, 0
      %p152 = por %p150, %p151
      %p153 = scmp.ne.s32.totalorder %s141, %s142
      %p154 = scmp.eq.s32.totalorder %s38, 1
      %p155 = por %p153, %p154
      %p157 = scmp.ne.s32.totalorder %s142, %s156
      %p158 = scmp.eq.s32.totalorder %s38, 0
      %p159 = por %p157, %p158
      %s161 = sadd.s32 %s160, 1
      %p164 = scmp.eq.s32.totalorder %s32, 1
      %p165 = scmp.ne.s32.totalorder %s160, %s162
      %p166 = scmp.eq.s32.totalorder %s32, 0
      %p167 = por %p165, %p166
      %p168 = scmp.ne.s32.totalorder %s160, %s162
      %p169 = scmp.eq.s32.totalorder %s37, 1
      %p170 = por %p168, %p169
      %p171 = scmp.ne.s32.totalorder %s162, %s163
      %p172 = scmp.eq.s32.totalorder %s37, 0
      %p173 = por %p171, %p172
      %p174 = scmp.ne.s32.totalorder %s162, %s163
      %p175 = scmp.eq.s32.totalorder %s38, 1
      %p176 = por %p174, %p175
      %p178 = scmp.ne.s32.totalorder %s163, %s177
      %p179 = scmp.eq.s32.totalorder %s38, 0
      %p180 = por %p178, %p179
      %s182 = sadd.s32 %s181, 1
      %p185 = scmp.eq.s32.totalorder %s32, 1
      %p186 = scmp.ne.s32.totalorder %s181, %s183
      %p187 = scmp.eq.s32.totalorder %s32, 0
      %p188 = por %p186, %p187
      %p189 = scmp.ne.s32.totalorder %s181, %s183
      %p190 = scmp.eq.s32.totalorder %s37, 1
      %p191 = por %p189, %p190
      %p192 = scmp.ne.s32.totalorder %s183, %s184
      %p193 = scmp.eq.s32.totalorder %s37, 0
      %p194 = por %p192, %p193
      %p195 = scmp.ne.s32.totalorder %s183, %s184
      %p196 = scmp.eq.s32.totalorder %s38, 1
      %p197 = por %p195, %p196
      %p199 = scmp.ne.s32.totalorder %s184, %s198
      %p200 = scmp.eq.s32.totalorder %s38, 0
      %p201 = por %p199, %p200
      %s203 = sadd.s32 %s202, 1
      %p206 = scmp.eq.s32.totalorder %s32, 1
      %p207 = scmp.ne.s32.totalorder %s202, %s204
      %p208 = scmp.eq.s32.totalorder %s32, 0
      %p209 = por %p207, %p208
      %p210 = scmp.ne.s32.totalorder %s202, %s204
      %p211 = scmp.eq.s32.totalorder %s37, 1
      %p212 = por %p210, %p211
      %p213 = scmp.ne.s32.totalorder %s204, %s205
      %p214 = scmp.eq.s32.totalorder %s37, 0
      %p215 = por %p213, %p214
      %p216 = scmp.ne.s32.totalorder %s204, %s205
      %p217 = scmp.eq.s32.totalorder %s38, 1
      %p218 = por %p216, %p217
      %p220 = scmp.ne.s32.totalorder %s205, %s219
      %p221 = scmp.eq.s32.totalorder %s38, 0
      %p222 = por %p220, %p221
      %s224 = sadd.s32 %s223, 1
      %p227 = scmp.eq.s32.totalorder %s32, 1
      %p228 = scmp.ne.s32.totalorder %s223, %s225
      %p229 = scmp.eq.s32.totalorder %s32, 0
      %p230 = por %p228, %p229
      %p231 = scmp.ne.s32.totalorder %s223, %s225
      %p232 = scmp.eq.s32.totalorder %s37, 1
      %p233 = por %p231, %p232
      %p234 = scmp.ne.s32.totalorder %s225, %s226
      %p235 = scmp.eq.s32.totalorder %s37, 0
      %p236 = por %p234, %p235
      %p237 = scmp.ne.s32.totalorder %s225, %s226
      %p238 = scmp.eq.s32.totalorder %s38, 1
      %p239 = por %p237, %p238
      %p241 = scmp.ne.s32.totalorder %s226, %s240
      %p242 = scmp.eq.s32.totalorder %s38, 0
      %p243 = por %p241, %p242
      %s245 = sadd.s32 %s244, 1
      %p248 = scmp.eq.s32.totalorder %s32, 1
      %p249 = scmp.ne.s32.totalorder %s244, %s246
      %p250 = scmp.eq.s32.totalorder %s32, 0
      %p251 = por %p249, %p250
      %p252 = scmp.ne.s32.totalorder %s244, %s246
      %p253 = scmp.eq.s32.totalorder %s37, 1
      %p254 = por %p252, %p253
      %p255 = scmp.ne.s32.totalorder %s246, %s247
      %p256 = scmp.eq.s32.totalorder %s37, 0
      %p257 = por %p255, %p256
      %p258 = scmp.ne.s32.totalorder %s246, %s247
      %p259 = scmp.eq.s32.totalorder %s38, 1
      %p260 = por %p258, %p259
      %p262 = scmp.ne.s32.totalorder %s247, %s261
      %p263 = scmp.eq.s32.totalorder %s38, 0
      %p264 = por %p262, %p263
      %s266 = sadd.s32 %s265, 1
      %p269 = scmp.eq.s32.totalorder %s32, 1
      %p270 = scmp.ne.s32.totalorder %s265, %s267
      %p271 = scmp.eq.s32.totalorder %s32, 0
      %p272 = por %p270, %p271
      %p273 = scmp.ne.s32.totalorder %s265, %s267
      %p274 = scmp.eq.s32.totalorder %s37, 1
      %p275 = por %p273, %p274
      %p276 = scmp.ne.s32.totalorder %s267, %s268
      %p277 = scmp.eq.s32.totalorder %s37, 0
      %p278 = por %p276, %p277
      %p279 = scmp.ne.s32.totalorder %s267, %s268
      %p280 = scmp.eq.s32.totalorder %s38, 1
      %p281 = por %p279, %p280
      %p283 = scmp.ne.s32.totalorder %s268, %s282
      %p284 = scmp.eq.s32.totalorder %s38, 0
      %p285 = por %p283, %p284
      %s287 = sadd.s32 %s286, 1
      %p290 = scmp.eq.s32.totalorder %s32, 1
      %p291 = scmp.ne.s32.totalorder %s286, %s288
      %p292 = scmp.eq.s32.totalorder %s32, 0
      %p293 = por %p291, %p292
      %p294 = scmp.ne.s32.totalorder %s286, %s288
      %p295 = scmp.eq.s32.totalorder %s37, 1
      %p296 = por %p294, %p295
      %p297 = scmp.ne.s32.totalorder %s288, %s289
      %p298 = scmp.eq.s32.totalorder %s37, 0
      %p299 = por %p297, %p298
      %p300 = scmp.ne.s32.totalorder %s288, %s289
      %p301 = scmp.eq.s32.totalorder %s38, 1
      %p302 = por %p300, %p301
      %p304 = scmp.ne.s32.totalorder %s289, %s303
      %p305 = scmp.eq.s32.totalorder %s38, 0
      %p306 = por %p304, %p305
      %s308 = sadd.s32 %s307, 1
      %p311 = scmp.eq.s32.totalorder %s32, 1
      %p312 = scmp.ne.s32.totalorder %s307, %s309
      %p313 = scmp.eq.s32.totalorder %s32, 0
      %p314 = por %p312, %p313
      %p315 = scmp.ne.s32.totalorder %s307, %s309
      %p316 = scmp.eq.s32.totalorder %s37, 1
      %p317 = por %p315, %p316
      %p318 = scmp.ne.s32.totalorder %s309, %s310
      %p319 = scmp.eq.s32.totalorder %s37, 0
      %p320 = por %p318, %p319
      %p321 = scmp.ne.s32.totalorder %s309, %s310
      %p322 = scmp.eq.s32.totalorder %s38, 1
      %p323 = por %p321, %p322
      %p325 = scmp.ne.s32.totalorder %s310, %s324
      %p326 = scmp.eq.s32.totalorder %s38, 0
      %p327 = por %p325, %p326
      %s329 = sadd.s32 %s328, 1
      %p332 = scmp.eq.s32.totalorder %s32, 1
      %p333 = scmp.ne.s32.totalorder %s328, %s330
      %p334 = scmp.eq.s32.totalorder %s32, 0
      %p335 = por %p333, %p334
      %p336 = scmp.ne.s32.totalorder %s328, %s330
      %p337 = scmp.eq.s32.totalorder %s37, 1
      %p338 = por %p336, %p337
      %p339 = scmp.ne.s32.totalorder %s330, %s331
      %p340 = scmp.eq.s32.totalorder %s37, 0
      %p341 = por %p339, %p340
      %p342 = scmp.ne.s32.totalorder %s330, %s331
      %p343 = scmp.eq.s32.totalorder %s38, 1
      %p344 = por %p342, %p343
      %p346 = scmp.ne.s32.totalorder %s331, %s345
      %p347 = scmp.eq.s32.totalorder %s38, 0
      %p348 = por %p346, %p347
      %s350 = sadd.s32 %s349, 1
      %p353 = scmp.eq.s32.totalorder %s32, 1
      %p354 = scmp.ne.s32.totalorder %s349, %s351
      %p355 = scmp.eq.s32.totalorder %s32, 0
      %p356 = por %p354, %p355
      %p357 = scmp.ne.s32.totalorder %s349, %s351
      %p358 = scmp.eq.s32.totalorder %s37, 1
      %p359 = por %p357, %p358
      %p360 = scmp.ne.s32.totalorder %s351, %s352
      %p361 = scmp.eq.s32.totalorder %s37, 0
      %p362 = por %p360, %p361
      %p363 = scmp.ne.s32.totalorder %s351, %s352
      %p364 = scmp.eq.s32.totalorder %s38, 1
      %p365 = por %p363, %p364
      %p367 = scmp.ne.s32.totalorder %s352, %s366
      %p368 = scmp.eq.s32.totalorder %s38, 0
      %p369 = por %p367, %p368
      %s371 = sadd.s32 %s370, 1
      %p374 = scmp.eq.s32.totalorder %s32, 1
      %p375 = scmp.ne.s32.totalorder %s370, %s372
      %p376 = scmp.eq.s32.totalorder %s32, 0
      %p377 = por %p375, %p376
      %p378 = scmp.ne.s32.totalorder %s370, %s372
      %p379 = scmp.eq.s32.totalorder %s37, 1
      %p380 = por %p378, %p379
      %p381 = scmp.ne.s32.totalorder %s372, %s373
      %p382 = scmp.eq.s32.totalorder %s37, 0
      %p383 = por %p381, %p382
      %p384 = scmp.ne.s32.totalorder %s372, %s373
      %p385 = scmp.eq.s32.totalorder %s38, 1
      %p386 = por %p384, %p385
      %p388 = scmp.ne.s32.totalorder %s373, %s387
      %p389 = scmp.eq.s32.totalorder %s38, 0
      %p390 = por %p388, %p389
      %s392 = sadd.s32 %s391, 1
      %p395 = scmp.eq.s32.totalorder %s32, 1
      %p396 = scmp.ne.s32.totalorder %s391, %s393
      %p397 = scmp.eq.s32.totalorder %s32, 0
      %p398 = por %p396, %p397
      %p399 = scmp.ne.s32.totalorder %s391, %s393
      %p400 = scmp.eq.s32.totalorder %s37, 1
      %p401 = por %p399, %p400
      %p402 = scmp.ne.s32.totalorder %s393, %s394
      %p403 = scmp.eq.s32.totalorder %s37, 0
      %p404 = por %p402, %p403
      %p405 = scmp.ne.s32.totalorder %s393, %s394
      %p406 = scmp.eq.s32.totalorder %s38, 1
      %p407 = por %p405, %p406
      %p409 = scmp.ne.s32.totalorder %s394, %s408
      %p410 = scmp.eq.s32.totalorder %s38, 0
      %p411 = por %p409, %p410
      %s413 = sadd.s32 %s412, 1
      %p416 = scmp.eq.s32.totalorder %s32, 1
      %p417 = scmp.ne.s32.totalorder %s412, %s414
      %p418 = scmp.eq.s32.totalorder %s32, 0
      %p419 = por %p417, %p418
      %p420 = scmp.ne.s32.totalorder %s412, %s414
      %p421 = scmp.eq.s32.totalorder %s37, 1
      %p422 = por %p420, %p421
      %p423 = scmp.ne.s32.totalorder %s414, %s415
      %p424 = scmp.eq.s32.totalorder %s37, 0
      %p425 = por %p423, %p424
      %p426 = scmp.ne.s32.totalorder %s414, %s415
      %p427 = scmp.eq.s32.totalorder %s38, 1
      %p428 = por %p426, %p427
      %p430 = scmp.ne.s32.totalorder %s415, %s429
      %p431 = scmp.eq.s32.totalorder %s38, 0
      %p432 = por %p430, %p431
      %s434 = sadd.s32 %s433, 1
      %p437 = scmp.eq.s32.totalorder %s32, 1
      %p438 = scmp.ne.s32.totalorder %s433, %s435
      %p439 = scmp.eq.s32.totalorder %s32, 0
      %p440 = por %p438, %p439
      %p441 = scmp.ne.s32.totalorder %s433, %s435
      %p442 = scmp.eq.s32.totalorder %s37, 1
      %p443 = por %p441, %p442
      %p444 = scmp.ne.s32.totalorder %s435, %s436
      %p445 = scmp.eq.s32.totalorder %s37, 0
      %p446 = por %p444, %p445
      %p447 = scmp.ne.s32.totalorder %s435, %s436
      %p448 = scmp.eq.s32.totalorder %s38, 1
      %p449 = por %p447, %p448
      %p451 = scmp.ne.s32.totalorder %s436, %s450
      %p452 = scmp.eq.s32.totalorder %s38, 0
      %p453 = por %p451, %p452
      %s454 = ssub.s32 %s32, %s39
      %p455 = scmp.eq.s32.totalorder %s454, 0
      %s457 = sadd.s32 %s456, 1
      %s458 = scalar_select %p455, %s456, %s457
      %p461 = pneg %p455
      %p462 = scmp.eq.s32.totalorder %s32, 1
      %p463 = por %p461, %p462
      %p464 = scmp.ne.s32.totalorder %s456, %s459
      %p465 = scmp.eq.s32.totalorder %s32, 0
      %p466 = por %p464, %p465
      %p467 = scmp.ne.s32.totalorder %s456, %s459
      %p468 = scmp.eq.s32.totalorder %s37, 1
      %p469 = por %p467, %p468
      %p470 = scmp.ne.s32.totalorder %s459, %s460
      %p471 = scmp.eq.s32.totalorder %s37, 0
      %p472 = por %p470, %p471
      %p473 = scmp.ne.s32.totalorder %s459, %s460
      %p474 = scmp.eq.s32.totalorder %s38, 1
      %p475 = por %p473, %p474
      %p477 = scmp.ne.s32.totalorder %s460, %s476
      %p478 = scmp.eq.s32.totalorder %s38, 0
      %p479 = por %p477, %p478
      %p480 = scmp.le.s32.totalorder 1, %s32
      %p481 = scmp.lt.s32.totalorder %s32, 3
      %p482 = pnand %p480, %p481
      %p483 = pneg %p482
      // Predicated region
      $region9: #{ga_forward.1} parent=5 // pred_check
        _
      $region10: #{ga_forward.1} parent=5 // pred_check_branch
        %485 = sbr.rel (%p482) target = $region12
      $region11: #{ga_forward.1} parent=5 // pred_region
        %s486 = ssub.s32 %s32, 1
        // Predicated region
        $region13: #{ga_forward.1} parent=11 // pred_check
          %p487 = pneg %p131
        $region14: #{ga_forward.1} parent=11 // pred_check_branch
          %489 = sbr.rel (%p487) target = $region16
        $region15: #{ga_forward.1} parent=11 // pred_region
          %s491 = ssub.s32 2048, 2048
          %492 = vsyncadd [#allocation6], %s491
          %s493 = sshll.u32 [#allocation5], 4
          %s494 = int_to_ptr.vmem [resolvable:$true] %s493
          %499 = dma.hbm_to_vmem [thread:$0]  %s3, 2048, %s494, [#allocation6], 128, 128, 8
        $region16: #{ga_forward.1} parent=11 // pred_fallthru
          _
        // Predicated region
        $region17: #{ga_forward.1} parent=11 // pred_check
          %p500 = pneg %p152
        $region18: #{ga_forward.1} parent=11 // pred_check_branch
          %502 = sbr.rel (%p500) target = $region20
        $region19: #{ga_forward.1} parent=11 // pred_region
          _
        $region20: #{ga_forward.1} parent=11 // pred_fallthru
          _
        // Predicated region
        $region21: #{ga_forward.1} parent=11 // pred_check
          %p503 = pneg %p173
        $region22: #{ga_forward.1} parent=11 // pred_check_branch
          %505 = sbr.rel (%p503) target = $region24
        $region23: #{ga_forward.1} parent=11 // pred_region
          %s507 = ssub.s32 2048, 2048
          %508 = vsyncadd [#allocation9], %s507
          %s509 = sshll.u32 [#allocation8], 4
          %s510 = int_to_ptr.vmem [resolvable:$true] %s509
          %515 = dma.hbm_to_vmem [thread:$0]  %s5, 2048, %s510, [#allocation9], 128, 128, 8
        $region24: #{ga_forward.1} parent=11 // pred_fallthru
          _
        // Predicated region
        $region25: #{ga_forward.1} parent=11 // pred_check
          %p516 = pneg %p194
        $region26: #{ga_forward.1} parent=11 // pred_check_branch
          %518 = sbr.rel (%p516) target = $region28
        $region27: #{ga_forward.1} parent=11 // pred_region
          _
        $region28: #{ga_forward.1} parent=11 // pred_fallthru
          _
        // Predicated region
        $region29: #{ga_forward.1} parent=11 // pred_check
          %p519 = pneg %p215
        $region30: #{ga_forward.1} parent=11 // pred_check_branch
          %521 = sbr.rel (%p519) target = $region32
        $region31: #{ga_forward.1} parent=11 // pred_region
          %s523 = ssub.s32 2048, 2048
          %524 = vsyncadd [#allocation9], %s523
          %s525 = sshll.u32 [#allocation10], 4
          %s526 = int_to_ptr.vmem [resolvable:$true] %s525
          %531 = dma.hbm_to_vmem [thread:$0]  %s7, 2048, %s526, [#allocation9], 128, 128, 8
        $region32: #{ga_forward.1} parent=11 // pred_fallthru
          _
        // Predicated region
        $region33: #{ga_forward.1} parent=11 // pred_check
          %p532 = pneg %p236
        $region34: #{ga_forward.1} parent=11 // pred_check_branch
          %534 = sbr.rel (%p532) target = $region36
        $region35: #{ga_forward.1} parent=11 // pred_region
          _
        $region36: #{ga_forward.1} parent=11 // pred_fallthru
          _
        // Predicated region
        $region37: #{ga_forward.1} parent=11 // pred_check
          %p535 = pneg %p257
        $region38: #{ga_forward.1} parent=11 // pred_check_branch
          %537 = sbr.rel (%p535) target = $region40
        $region39: #{ga_forward.1} parent=11 // pred_region
          %s539 = ssub.s32 2048, 2048
          %540 = vsyncadd [#allocation12], %s539
          %s541 = sshll.u32 [#allocation11], 4
          %s542 = int_to_ptr.vmem [resolvable:$true] %s541
          %547 = dma.hbm_to_vmem [thread:$0]  %s9, 2048, %s542, [#allocation12], 128, 128, 8
        $region40: #{ga_forward.1} parent=11 // pred_fallthru
          _
        // Predicated region
        $region41: #{ga_forward.1} parent=11 // pred_check
          %p548 = pneg %p278
        $region42: #{ga_forward.1} parent=11 // pred_check_branch
          %550 = sbr.rel (%p548) target = $region44
        $region43: #{ga_forward.1} parent=11 // pred_region
          _
        $region44: #{ga_forward.1} parent=11 // pred_fallthru
          _
        // Predicated region
        $region45: #{ga_forward.1} parent=11 // pred_check
          %p551 = pneg %p299
        $region46: #{ga_forward.1} parent=11 // pred_check_branch
          %553 = sbr.rel (%p551) target = $region48
        $region47: #{ga_forward.1} parent=11 // pred_region
          _
        $region48: #{ga_forward.1} parent=11 // pred_fallthru
          _
        // Predicated region
        $region49: #{ga_forward.1} parent=11 // pred_check
          %p554 = pneg %p320
        $region50: #{ga_forward.1} parent=11 // pred_check_branch
          %556 = sbr.rel (%p554) target = $region52
        $region51: #{ga_forward.1} parent=11 // pred_region
          _
        $region52: #{ga_forward.1} parent=11 // pred_fallthru
          _
        // Predicated region
        $region53: #{ga_forward.1} parent=11 // pred_check
          %p557 = pneg %p341
        $region54: #{ga_forward.1} parent=11 // pred_check_branch
          %559 = sbr.rel (%p557) target = $region56
        $region55: #{ga_forward.1} parent=11 // pred_region
          %s561 = ssub.s32 8192, 8192
          %562 = vsyncadd [#allocation12], %s561
          %s563 = sshll.u32 [#allocation13], 4
          %s564 = int_to_ptr.vmem [resolvable:$true] %s563
          %569 = dma.hbm_to_vmem [thread:$0]  %s13, 8192, %s564, [#allocation12], 512, 512, 32
        $region56: #{ga_forward.1} parent=11 // pred_fallthru
          _
        // Predicated region
        $region57: #{ga_forward.1} parent=11 // pred_check
          %p570 = pneg %p362
        $region58: #{ga_forward.1} parent=11 // pred_check_branch
          %572 = sbr.rel (%p570) target = $region60
        $region59: #{ga_forward.1} parent=11 // pred_region
          _
        $region60: #{ga_forward.1} parent=11 // pred_fallthru
          _
        // Predicated region
        $region61: #{ga_forward.1} parent=11 // pred_check
          %p573 = pneg %p383
        $region62: #{ga_forward.1} parent=11 // pred_check_branch
          %575 = sbr.rel (%p573) target = $region64
        $region63: #{ga_forward.1} parent=11 // pred_region
          %s577 = ssub.s32 8192, 8192
          %578 = vsyncadd [#allocation15], %s577
          %s579 = sshll.u32 [#allocation14], 4
          %s580 = int_to_ptr.vmem [resolvable:$true] %s579
          %585 = dma.hbm_to_vmem [thread:$0]  %s15, 8192, %s580, [#allocation15], 128, 128, 8
        $region64: #{ga_forward.1} parent=11 // pred_fallthru
          _
        // Predicated region
        $region65: #{ga_forward.1} parent=11 // pred_check
          %p586 = pneg %p404
        $region66: #{ga_forward.1} parent=11 // pred_check_branch
          %588 = sbr.rel (%p586) target = $region68
        $region67: #{ga_forward.1} parent=11 // pred_region
          _
        $region68: #{ga_forward.1} parent=11 // pred_fallthru
          _
        // Predicated region
        $region69: #{ga_forward.1} parent=11 // pred_check
          %p589 = pneg %p425
        $region70: #{ga_forward.1} parent=11 // pred_check_branch
          %591 = sbr.rel (%p589) target = $region72
        $region71: #{ga_forward.1} parent=11 // pred_region
          _
        $region72: #{ga_forward.1} parent=11 // pred_fallthru
          _
        // Predicated region
        $region73: #{ga_forward.1} parent=11 // pred_check
          %p592 = pneg %p446
        $region74: #{ga_forward.1} parent=11 // pred_check_branch
          %594 = sbr.rel (%p592) target = $region76
        $region75: #{ga_forward.1} parent=11 // pred_region
          _
        $region76: #{ga_forward.1} parent=11 // pred_fallthru
          _
      $region12: #{ga_forward.1} parent=5 // pred_fallthru
        _
      %p595 = scmp.lt.s32.totalorder %s32, 2
      // Predicated region
      $region77: #{ga_forward.1} parent=5 // pred_check
        %p596 = pneg %p595
      $region78: #{ga_forward.1} parent=5 // pred_check_branch
        %598 = sbr.rel (%p596) target = $region80
      $region79: #{ga_forward.1} parent=5 // pred_region
        // Predicated region
        $region81: #{ga_forward.1} parent=79 // pred_check
          %p599 = pneg %p52
        $region82: #{ga_forward.1} parent=79 // pred_check_branch
          %601 = sbr.rel (%p599) target = $region84
        $region83: #{ga_forward.1} parent=79 // pred_region
          %p602 = scmp.lt.s32.totalorder %s32, 1
          %s603 = scalar_select %p602, %s32, 1
          %s604 = scalar_lea.vmem %s0, %s603
        $region84: #{ga_forward.1} parent=79 // pred_fallthru
          _
        // Predicated region
        $region85: #{ga_forward.1} parent=79 // pred_check
          %p605 = pneg %p78
        $region86: #{ga_forward.1} parent=79 // pred_check_branch
          %607 = sbr.rel (%p605) target = $region88
        $region87: #{ga_forward.1} parent=79 // pred_region
          %p608 = scmp.lt.s32.totalorder %s32, 1
          %s609 = scalar_select %p608, %s32, 1
          %s610 = smul.addr %s609, 8
          %s611 = scalar_lea.vmem %s1, %s610
        $region88: #{ga_forward.1} parent=79 // pred_fallthru
          _
        // Predicated region
        $region89: #{ga_forward.1} parent=79 // pred_check
          %p612 = pneg %p104
        $region90: #{ga_forward.1} parent=79 // pred_check_branch
          %614 = sbr.rel (%p612) target = $region92
        $region91: #{ga_forward.1} parent=79 // pred_region
          %p615 = scmp.lt.s32.totalorder %s32, 1
          %s616 = scalar_select %p615, %s32, 1
          %s617 = smul.addr %s616, 8
          %s618 = scalar_lea.vmem %s2, %s617
        $region92: #{ga_forward.1} parent=79 // pred_fallthru
          _
      $region80: #{ga_forward.1} parent=5 // pred_fallthru
        _
      %p619 = scmp.le.s32.totalorder 1, %s32
      %p620 = scmp.lt.s32.totalorder %s32, 3
      %p621 = pnand %p619, %p620
      %p622 = pneg %p621
      // Predicated region
      $region93: #{ga_forward.1} parent=5 // pred_check
        _
      $region94: #{ga_forward.1} parent=5 // pred_check_branch
        %624 = sbr.rel (%p621) target = $region96
      $region95: #{ga_forward.1} parent=5 // pred_region
        %s625 = ssub.s32 %s32, 1
        // Predicated region
        $region97: #{ga_forward.1} parent=95 // pred_check
          %p626 = pneg %p131
        $region98: #{ga_forward.1} parent=95 // pred_check_branch
          %628 = sbr.rel (%p626) target = $region100
        $region99: #{ga_forward.1} parent=95 // pred_region
          %629 = dma.done [#allocation6], 2048
        $region100: #{ga_forward.1} parent=95 // pred_fallthru
          _
        // Predicated region
        $region101: #{ga_forward.1} parent=95 // pred_check
          %p630 = pneg %p173
        $region102: #{ga_forward.1} parent=95 // pred_check_branch
          %632 = sbr.rel (%p630) target = $region104
        $region103: #{ga_forward.1} parent=95 // pred_region
          %633 = dma.done [#allocation9], 2048
        $region104: #{ga_forward.1} parent=95 // pred_fallthru
          _
        // Predicated region
        $region105: #{ga_forward.1} parent=95 // pred_check
          %p634 = pneg %p215
        $region106: #{ga_forward.1} parent=95 // pred_check_branch
          %636 = sbr.rel (%p634) target = $region108
        $region107: #{ga_forward.1} parent=95 // pred_region
          %637 = dma.done [#allocation9], 2048
        $region108: #{ga_forward.1} parent=95 // pred_fallthru
          _
        // Predicated region
        $region109: #{ga_forward.1} parent=95 // pred_check
          %p638 = pneg %p257
        $region110: #{ga_forward.1} parent=95 // pred_check_branch
          %640 = sbr.rel (%p638) target = $region112
        $region111: #{ga_forward.1} parent=95 // pred_region
          %641 = dma.done [#allocation12], 2048
        $region112: #{ga_forward.1} parent=95 // pred_fallthru
          _
        // Predicated region
        $region113: #{ga_forward.1} parent=95 // pred_check
          %p642 = pneg %p341
        $region114: #{ga_forward.1} parent=95 // pred_check_branch
          %644 = sbr.rel (%p642) target = $region116
        $region115: #{ga_forward.1} parent=95 // pred_region
          %645 = dma.done [#allocation12], 8192
        $region116: #{ga_forward.1} parent=95 // pred_fallthru
          _
        // Predicated region
        $region117: #{ga_forward.1} parent=95 // pred_check
          %p646 = pneg %p383
        $region118: #{ga_forward.1} parent=95 // pred_check_branch
          %648 = sbr.rel (%p646) target = $region120
        $region119: #{ga_forward.1} parent=95 // pred_region
          %649 = dma.done [#allocation15], 8192
        $region120: #{ga_forward.1} parent=95 // pred_fallthru
          _
        %p650 = scmp.lt.s32.totalorder %s37, 1
        %s651 = scalar_select %p650, %s37, 1
        %s652 = scalar_lea.vmem %s0, %s651
        %p653 = pneg %p58
        %p654 = pneg %p55
        %p655 = scmp.lt.s32.totalorder %s37, 1
        %s656 = scalar_select %p655, %s37, 1
        %s657 = smul.addr %s656, 8
        %s658 = scalar_lea.vmem %s1, %s657
        %p659 = pneg %p84
        %p660 = pneg %p81
        %p661 = scmp.lt.s32.totalorder %s37, 1
        %s662 = scalar_select %p661, %s37, 1
        %s663 = smul.addr %s662, 8
        %s664 = scalar_lea.vmem %s2, %s663
        %p665 = pneg %p110
        %p666 = pneg %p107
        %p667 = pneg %p131
        %p668 = pneg %p128
        %p669 = pneg %p152
        %p670 = pneg %p149
        %p671 = pneg %p173
        %p672 = pneg %p170
        %p673 = pneg %p194
        %p674 = pneg %p191
        %p675 = pneg %p215
        %p676 = pneg %p212
        %p677 = pneg %p236
        %p678 = pneg %p233
        %p679 = pneg %p257
        %p680 = pneg %p254
        %p681 = pneg %p278
        %p682 = pneg %p275
        %p683 = pneg %p299
        %p684 = pneg %p296
        %p685 = pneg %p320
        %p686 = pneg %p317
        %p687 = pneg %p341
        %p688 = pneg %p338
        %p689 = pneg %p362
        %p690 = pneg %p359
        %p691 = pneg %p383
        %p692 = pneg %p380
        %p693 = pneg %p404
        %p694 = pneg %p401
        %p695 = pneg %p425
        %p696 = pneg %p422
        %p697 = pneg %p446
        %p698 = pneg %p443
        %p699 = pneg %p472
        %p700 = pneg %p469
        %s701 = sand.u32 %s459, 1
        %s702 = scalar_lea.sflag [#allocation7], %s701
        %s703 = sand.u32 %s459, 1
        %s704 = smul.addr %s703, 8
        %s705 = scalar_lea.vmem [#allocation16], %s704
        %p706 = scmp.lt.s32.totalorder %s37, 1
        %s707 = scalar_select %p706, %s37, 1
        %s708 = scalar_lea.vmem %s0, %s707
        %p709 = scmp.lt.s32.totalorder %s37, 1
        %s710 = scalar_select %p709, %s37, 1
        %s711 = smul.addr %s710, 8
        %s712 = scalar_lea.vmem %s1, %s711
        %p713 = scmp.lt.s32.totalorder %s37, 1
        %s714 = scalar_select %p713, %s37, 1
        %s715 = smul.addr %s714, 8
        %s716 = scalar_lea.vmem %s2, %s715
        %v717 = vld [vmem:[%s712] sm:$0xff]
        %v718 = vld [vmem:[%s716] sm:$0xff]
        %v719 = vld [vmem:[%s708] sm:$0x1]
        %v720 = vld [vmem:[#allocation5] sm:$0xff]
        %v721 = vld [vmem:[#allocation5 + $0x8] sm:$0xff]
        %v722 = vld [vmem:[#allocation5 + $0x10] sm:$0xff]
        %v723 = vld [vmem:[#allocation5 + $0x18] sm:$0xff]
        %v724 = vld [vmem:[#allocation5 + $0x20] sm:$0xff]
        %v725 = vld [vmem:[#allocation5 + $0x28] sm:$0xff]
        %v726 = vld [vmem:[#allocation5 + $0x30] sm:$0xff]
        %v727 = vld [vmem:[#allocation5 + $0x38] sm:$0xff]
        %v728 = vld [vmem:[#allocation5 + $0x40] sm:$0xff]
        %v729 = vld [vmem:[#allocation5 + $0x48] sm:$0xff]
        %v730 = vld [vmem:[#allocation5 + $0x50] sm:$0xff]
        %v731 = vld [vmem:[#allocation5 + $0x58] sm:$0xff]
        %v732 = vld [vmem:[#allocation5 + $0x60] sm:$0xff]
        %v733 = vld [vmem:[#allocation5 + $0x68] sm:$0xff]
        %v734 = vld [vmem:[#allocation5 + $0x70] sm:$0xff]
        %v735 = vld [vmem:[#allocation5 + $0x78] sm:$0xff]
        %v736 = vld [vmem:[%s4] sm:$0x1]
        %v738 = vlaneseq
        %v739 = vshrl.u32 %v738, 7
        %v740 = vsub.s32 0, %v739
        %v741 = vrot.slane %v736, %v740
        %743 = vmatprep.subr.mxu0 0.0
        %744 = vmatpush1.msra.mxu0 %v720
        %745 = vmatprep.subr.mxu0 0.0
        %746 = vmatpush1.msra.mxu0 %v721
        %747 = vmatprep.subr.mxu0 0.0
        %748 = vmatpush1.msra.mxu0 %v722
        %749 = vmatprep.subr.mxu0 0.0
        %750 = vmatpush1.msra.mxu0 %v723
        %751 = vmatprep.subr.mxu0 0.0
        %752 = vmatpush1.msra.mxu0 %v724
        %753 = vmatprep.subr.mxu0 0.0
        %754 = vmatpush1.msra.mxu0 %v725
        %755 = vmatprep.subr.mxu0 0.0
        %756 = vmatpush1.msra.mxu0 %v726
        %757 = vmatprep.subr.mxu0 0.0
        %758 = vmatpush1.msra.mxu0 %v727
        %759 = vmatprep.subr.mxu0 0.0
        %760 = vmatpush1.msra.mxu0 %v728
        %761 = vmatprep.subr.mxu0 0.0
        %762 = vmatpush1.msra.mxu0 %v729
        %763 = vmatprep.subr.mxu0 0.0
        %764 = vmatpush1.msra.mxu0 %v730
        %765 = vmatprep.subr.mxu0 0.0
        %766 = vmatpush1.msra.mxu0 %v731
        %767 = vmatprep.subr.mxu0 0.0
        %768 = vmatpush1.msra.mxu0 %v732
        %769 = vmatprep.subr.mxu0 0.0
        %770 = vmatpush1.msra.mxu0 %v733
        %771 = vmatprep.subr.mxu0 0.0
        %772 = vmatpush1.msra.mxu0 %v734
        %773 = vmatprep.subr.mxu0 0.0
        %774 = vmatpush1.msra.mxu0 %v735
        %775 = vmatprep.subr.mxu0 0.0
        %776 = vmatpush1.msra.mxu0 0.0
        %777 = vmatprep.subr.mxu0 0.0
        %778 = vmatpush1.msra.mxu0 0.0
        %779 = vmatprep.subr.mxu0 0.0
        %780 = vmatpush1.msra.mxu0 0.0
        %781 = vmatprep.subr.mxu0 0.0
        %782 = vmatpush1.msra.mxu0 0.0
        %783 = vmatprep.subr.mxu0 0.0
        %784 = vmatpush1.msra.mxu0 0.0
        %785 = vmatprep.subr.mxu0 0.0
        %786 = vmatpush1.msra.mxu0 0.0
        %787 = vmatprep.subr.mxu0 0.0
        %788 = vmatpush1.msra.mxu0 0.0
        %789 = vmatprep.subr.mxu0 0.0
        %790 = vmatpush1.msra.mxu0 0.0
        %791 = vmatprep.subr.mxu0 0.0
        %792 = vmatpush1.msra.mxu0 0.0
        %793 = vmatprep.subr.mxu0 0.0
        %794 = vmatpush1.msra.mxu0 0.0
        %795 = vmatprep.subr.mxu0 0.0
        %796 = vmatpush1.msra.mxu0 0.0
        %797 = vmatprep.subr.mxu0 0.0
        %798 = vmatpush1.msra.mxu0 0.0
        %799 = vmatprep.subr.mxu0 0.0
        %800 = vmatpush1.msra.mxu0 0.0
        %801 = vmatprep.subr.mxu0 0.0
        %802 = vmatpush1.msra.mxu0 0.0
        %803 = vmatprep.subr.mxu0 0.0
        %804 = vmatpush1.msra.mxu0 0.0
        %805 = vmatprep.subr.mxu0 0.0
        %806 = vmatpush1.msra.mxu0 0.0
        %807 = vmatprep.mubr.f32.mxu0 0.0
        %808 = vmatmul.mubr.f32.gmra.mrb[0].mxu0 %v717
        %v809 = vpop.f32.mrb[0].mxu0
        %v810 = vadd.f32 %v741, %v809
        %v811 = vpop.f32.mrb[0].mxu0
        %812 = vdwg.mxu0
        %813 = vst [vmem:[#allocation2] sm:$0xff] %v810
        %v814 = vld [vmem:[#allocation8] sm:$0xff]
        %v815 = vld [vmem:[#allocation8 + $0x8] sm:$0xff]
        %v816 = vld [vmem:[#allocation8 + $0x10] sm:$0xff]
        %v817 = vld [vmem:[#allocation8 + $0x18] sm:$0xff]
        %v818 = vld [vmem:[#allocation8 + $0x20] sm:$0xff]
        %v819 = vld [vmem:[#allocation8 + $0x28] sm:$0xff]
        %v820 = vld [vmem:[#allocation8 + $0x30] sm:$0xff]
        %v821 = vld [vmem:[#allocation8 + $0x38] sm:$0xff]
        %v822 = vld [vmem:[#allocation8 + $0x40] sm:$0xff]
        %v823 = vld [vmem:[#allocation8 + $0x48] sm:$0xff]
        %v824 = vld [vmem:[#allocation8 + $0x50] sm:$0xff]
        %v825 = vld [vmem:[#allocation8 + $0x58] sm:$0xff]
        %v826 = vld [vmem:[#allocation8 + $0x60] sm:$0xff]
        %v827 = vld [vmem:[#allocation8 + $0x68] sm:$0xff]
        %v828 = vld [vmem:[#allocation8 + $0x70] sm:$0xff]
        %v829 = vld [vmem:[#allocation8 + $0x78] sm:$0xff]
        %v830 = vld [vmem:[%s6] sm:$0x1]
        %v832 = vlaneseq
        %v833 = vshrl.u32 %v832, 7
        %v834 = vsub.s32 0, %v833
        %v835 = vrot.slane %v830, %v834
        %837 = vmatprep.subr.mxu0 0.0
        %838 = vmatpush1.msra.mxu0 %v814
        %839 = vmatprep.subr.mxu0 0.0
        %840 = vmatpush1.msra.mxu0 %v815
        %841 = vmatprep.subr.mxu0 0.0
        %842 = vmatpush1.msra.mxu0 %v816
        %843 = vmatprep.subr.mxu0 0.0
        %844 = vmatpush1.msra.mxu0 %v817
        %845 = vmatprep.subr.mxu0 0.0
        %846 = vmatpush1.msra.mxu0 %v818
        %847 = vmatprep.subr.mxu0 0.0
        %848 = vmatpush1.msra.mxu0 %v819
        %849 = vmatprep.subr.mxu0 0.0
        %850 = vmatpush1.msra.mxu0 %v820
        %851 = vmatprep.subr.mxu0 0.0
        %852 = vmatpush1.msra.mxu0 %v821
        %853 = vmatprep.subr.mxu0 0.0
        %854 = vmatpush1.msra.mxu0 %v822
        %855 = vmatprep.subr.mxu0 0.0
        %856 = vmatpush1.msra.mxu0 %v823
        %857 = vmatprep.subr.mxu0 0.0
        %858 = vmatpush1.msra.mxu0 %v824
        %859 = vmatprep.subr.mxu0 0.0
        %860 = vmatpush1.msra.mxu0 %v825
        %861 = vmatprep.subr.mxu0 0.0
        %862 = vmatpush1.msra.mxu0 %v826
        %863 = vmatprep.subr.mxu0 0.0
        %864 = vmatpush1.msra.mxu0 %v827
        %865 = vmatprep.subr.mxu0 0.0
        %866 = vmatpush1.msra.mxu0 %v828
        %867 = vmatprep.subr.mxu0 0.0
        %868 = vmatpush1.msra.mxu0 %v829
        %869 = vmatprep.subr.mxu0 0.0
        %870 = vmatpush1.msra.mxu0 0.0
        %871 = vmatprep.subr.mxu0 0.0
        %872 = vmatpush1.msra.mxu0 0.0
        %873 = vmatprep.subr.mxu0 0.0
        %874 = vmatpush1.msra.mxu0 0.0
        %875 = vmatprep.subr.mxu0 0.0
        %876 = vmatpush1.msra.mxu0 0.0
        %877 = vmatprep.subr.mxu0 0.0
        %878 = vmatpush1.msra.mxu0 0.0
        %879 = vmatprep.subr.mxu0 0.0
        %880 = vmatpush1.msra.mxu0 0.0
        %881 = vmatprep.subr.mxu0 0.0
        %882 = vmatpush1.msra.mxu0 0.0
        %883 = vmatprep.subr.mxu0 0.0
        %884 = vmatpush1.msra.mxu0 0.0
        %885 = vmatprep.subr.mxu0 0.0
        %886 = vmatpush1.msra.mxu0 0.0
        %887 = vmatprep.subr.mxu0 0.0
        %888 = vmatpush1.msra.mxu0 0.0
        %889 = vmatprep.subr.mxu0 0.0
        %890 = vmatpush1.msra.mxu0 0.0
        %891 = vmatprep.subr.mxu0 0.0
        %892 = vmatpush1.msra.mxu0 0.0
        %893 = vmatprep.subr.mxu0 0.0
        %894 = vmatpush1.msra.mxu0 0.0
        %895 = vmatprep.subr.mxu0 0.0
        %896 = vmatpush1.msra.mxu0 0.0
        %897 = vmatprep.subr.mxu0 0.0
        %898 = vmatpush1.msra.mxu0 0.0
        %899 = vmatprep.subr.mxu0 0.0
        %900 = vmatpush1.msra.mxu0 0.0
        %901 = vmatprep.mubr.f32.mxu0 0.0
        %902 = vmatmul.mubr.f32.gmra.mrb[0].mxu0 %v718
        %v903 = vpop.f32.mrb[0].mxu0
        %v904 = vadd.f32 %v835, %v903
        %v905 = vpop.f32.mrb[0].mxu0
        %906 = vdwg.mxu0
        %907 = vst [vmem:[#allocation3] sm:$0xff] %v904
        %v908 = vld [vmem:[#allocation10] sm:$0xff]
        %v909 = vld [vmem:[#allocation10 + $0x8] sm:$0xff]
        %v910 = vld [vmem:[#allocation10 + $0x10] sm:$0xff]
        %v911 = vld [vmem:[#allocation10 + $0x18] sm:$0xff]
        %v912 = vld [vmem:[#allocation10 + $0x20] sm:$0xff]
        %v913 = vld [vmem:[#allocation10 + $0x28] sm:$0xff]
        %v914 = vld [vmem:[#allocation10 + $0x30] sm:$0xff]
        %v915 = vld [vmem:[#allocation10 + $0x38] sm:$0xff]
        %v916 = vld [vmem:[#allocation10 + $0x40] sm:$0xff]
        %v917 = vld [vmem:[#allocation10 + $0x48] sm:$0xff]
        %v918 = vld [vmem:[#allocation10 + $0x50] sm:$0xff]
        %v919 = vld [vmem:[#allocation10 + $0x58] sm:$0xff]
        %v920 = vld [vmem:[#allocation10 + $0x60] sm:$0xff]
        %v921 = vld [vmem:[#allocation10 + $0x68] sm:$0xff]
        %v922 = vld [vmem:[#allocation10 + $0x70] sm:$0xff]
        %v923 = vld [vmem:[#allocation10 + $0x78] sm:$0xff]
        %v924 = vld [vmem:[%s8] sm:$0x1]
        %v926 = vlaneseq
        %v927 = vshrl.u32 %v926, 7
        %v928 = vsub.s32 0, %v927
        %v929 = vrot.slane %v924, %v928
        %931 = vmatprep.subr.mxu0 0.0
        %932 = vmatpush1.msra.mxu0 %v908
        %933 = vmatprep.subr.mxu0 0.0
        %934 = vmatpush1.msra.mxu0 %v909
        %935 = vmatprep.subr.mxu0 0.0
        %936 = vmatpush1.msra.mxu0 %v910
        %937 = vmatprep.subr.mxu0 0.0
        %938 = vmatpush1.msra.mxu0 %v911
        %939 = vmatprep.subr.mxu0 0.0
        %940 = vmatpush1.msra.mxu0 %v912
        %941 = vmatprep.subr.mxu0 0.0
        %942 = vmatpush1.msra.mxu0 %v913
        %943 = vmatprep.subr.mxu0 0.0
        %944 = vmatpush1.msra.mxu0 %v914
        %945 = vmatprep.subr.mxu0 0.0
        %946 = vmatpush1.msra.mxu0 %v915
        %947 = vmatprep.subr.mxu0 0.0
        %948 = vmatpush1.msra.mxu0 %v916
        %949 = vmatprep.subr.mxu0 0.0
        %950 = vmatpush1.msra.mxu0 %v917
        %951 = vmatprep.subr.mxu0 0.0
        %952 = vmatpush1.msra.mxu0 %v918
        %953 = vmatprep.subr.mxu0 0.0
        %954 = vmatpush1.msra.mxu0 %v919
        %955 = vmatprep.subr.mxu0 0.0
        %956 = vmatpush1.msra.mxu0 %v920
        %957 = vmatprep.subr.mxu0 0.0
        %958 = vmatpush1.msra.mxu0 %v921
        %959 = vmatprep.subr.mxu0 0.0
        %960 = vmatpush1.msra.mxu0 %v922
        %961 = vmatprep.subr.mxu0 0.0
        %962 = vmatpush1.msra.mxu0 %v923
        %963 = vmatprep.subr.mxu0 0.0
        %964 = vmatpush1.msra.mxu0 0.0
        %965 = vmatprep.subr.mxu0 0.0
        %966 = vmatpush1.msra.mxu0 0.0
        %967 = vmatprep.subr.mxu0 0.0
        %968 = vmatpush1.msra.mxu0 0.0
        %969 = vmatprep.subr.mxu0 0.0
        %970 = vmatpush1.msra.mxu0 0.0
        %971 = vmatprep.subr.mxu0 0.0
        %972 = vmatpush1.msra.mxu0 0.0
        %973 = vmatprep.subr.mxu0 0.0
        %974 = vmatpush1.msra.mxu0 0.0
        %975 = vmatprep.subr.mxu0 0.0
        %976 = vmatpush1.msra.mxu0 0.0
        %977 = vmatprep.subr.mxu0 0.0
        %978 = vmatpush1.msra.mxu0 0.0
        %979 = vmatprep.subr.mxu0 0.0
        %980 = vmatpush1.msra.mxu0 0.0
        %981 = vmatprep.subr.mxu0 0.0
        %982 = vmatpush1.msra.mxu0 0.0
        %983 = vmatprep.subr.mxu0 0.0
        %984 = vmatpush1.msra.mxu0 0.0
        %985 = vmatprep.subr.mxu0 0.0
        %986 = vmatpush1.msra.mxu0 0.0
        %987 = vmatprep.subr.mxu0 0.0
        %988 = vmatpush1.msra.mxu0 0.0
        %989 = vmatprep.subr.mxu0 0.0
        %990 = vmatpush1.msra.mxu0 0.0
        %991 = vmatprep.subr.mxu0 0.0
        %992 = vmatpush1.msra.mxu0 0.0
        %993 = vmatprep.subr.mxu0 0.0
        %994 = vmatpush1.msra.mxu0 0.0
        %995 = vmatprep.mubr.f32.mxu0 0.0
        %996 = vmatmul.mubr.f32.gmra.mrb[0].mxu0 %v718
        %v997 = vpop.f32.mrb[0].mxu0
        %v998 = vadd.f32 %v929, %v997
        %v999 = vpop.f32.mrb[0].mxu0
        %1000 = vdwg.mxu0
        %1001 = vst [vmem:[#allocation4] sm:$0xff] %v998
        %v1002 = vld [vmem:[#allocation2] sm:$0xff]
        %v1003 = vld [vmem:[#allocation3] sm:$0xff]
        %v1004 = vld [vmem:[#allocation4] sm:$0xff]
        %vm1005 = vcmask 261120
        %v1007 = vsel %vm1005, %v1002, 0
        %v1010 = vsel %vm1005, %v1003, 0
        %1012 = vmatprep.subr.mxu0 0.0
        %1013 = vmatpush1.xpose.msra.mxu0 %v1010
        %1014 = vmatprep.subr.mxu0 0.0
        %1015 = vmatpush1.xpose.msra.mxu0 0.0
        %1016 = vmatprep.subr.mxu0 0.0
        %1017 = vmatpush1.xpose.msra.mxu0 0.0
        %1018 = vmatprep.subr.mxu0 0.0
        %1019 = vmatpush1.xpose.msra.mxu0 0.0
        %1020 = vmatprep.subr.mxu0 0.0
        %1021 = vmatpush1.xpose.msra.mxu0 0.0
        %1022 = vmatprep.subr.mxu0 0.0
        %1023 = vmatpush1.xpose.msra.mxu0 0.0
        %1024 = vmatprep.subr.mxu0 0.0
        %1025 = vmatpush1.xpose.msra.mxu0 0.0
        %1026 = vmatprep.subr.mxu0 0.0
        %1027 = vmatpush1.xpose.msra.mxu0 0.0
        %1028 = vmatprep.subr.mxu0 0.0
        %1029 = vmatpush1.xpose.msra.mxu0 0.0
        %1030 = vmatprep.subr.mxu0 0.0
        %1031 = vmatpush1.xpose.msra.mxu0 0.0
        %1032 = vmatprep.subr.mxu0 0.0
        %1033 = vmatpush1.xpose.msra.mxu0 0.0
        %1034 = vmatprep.subr.mxu0 0.0
        %1035 = vmatpush1.xpose.msra.mxu0 0.0
        %1036 = vmatprep.subr.mxu0 0.0
        %1037 = vmatpush1.xpose.msra.mxu0 0.0
        %1038 = vmatprep.subr.mxu0 0.0
        %1039 = vmatpush1.xpose.msra.mxu0 0.0
        %1040 = vmatprep.subr.mxu0 0.0
        %1041 = vmatpush1.xpose.msra.mxu0 0.0
        %1042 = vmatprep.subr.mxu0 0.0
        %1043 = vmatpush1.xpose.msra.mxu0 0.0
        %1044 = vmatprep.subr.mxu0 0.0
        %1045 = vmatpush1.xpose.msra.mxu0 0.0
        %1046 = vmatprep.subr.mxu0 0.0
        %1047 = vmatpush1.xpose.msra.mxu0 0.0
        %1048 = vmatprep.subr.mxu0 0.0
        %1049 = vmatpush1.xpose.msra.mxu0 0.0
        %1050 = vmatprep.subr.mxu0 0.0
        %1051 = vmatpush1.xpose.msra.mxu0 0.0
        %1052 = vmatprep.subr.mxu0 0.0
        %1053 = vmatpush1.xpose.msra.mxu0 0.0
        %1054 = vmatprep.subr.mxu0 0.0
        %1055 = vmatpush1.xpose.msra.mxu0 0.0
        %1056 = vmatprep.subr.mxu0 0.0
        %1057 = vmatpush1.xpose.msra.mxu0 0.0
        %1058 = vmatprep.subr.mxu0 0.0
        %1059 = vmatpush1.xpose.msra.mxu0 0.0
        %1060 = vmatprep.subr.mxu0 0.0
        %1061 = vmatpush1.xpose.msra.mxu0 0.0
        %1062 = vmatprep.subr.mxu0 0.0
        %1063 = vmatpush1.xpose.msra.mxu0 0.0
        %1064 = vmatprep.subr.mxu0 0.0
        %1065 = vmatpush1.xpose.msra.mxu0 0.0
        %1066 = vmatprep.subr.mxu0 0.0
        %1067 = vmatpush1.xpose.msra.mxu0 0.0
        %1068 = vmatprep.subr.mxu0 0.0
        %1069 = vmatpush1.xpose.msra.mxu0 0.0
        %1070 = vmatprep.subr.mxu0 0.0
        %1071 = vmatpush1.xpose.msra.mxu0 0.0
        %1072 = vmatprep.subr.mxu0 0.0
        %1073 = vmatpush1.xpose.msra.mxu0 0.0
        %1074 = vmatprep.subr.mxu0 0.0
        %1075 = vmatpush1.xpose.msra.mxu0 0.0
        %1076 = vmatprep.mubr.f32.mxu0 0.0
        %1077 = vmatmul.mubr.f32.gmra.mrb[0].mxu0 %v1007
        %v1078 = vpop.f32.mrb[0].mxu0
        %v1079 = vadd.f32 0.0, %v1078
        %v1080 = vpop.f32.mrb[0].mxu0
        %1081 = vdwg.mxu0
        %v1082 = vmul.f32 %v1079, 0.17677669
        %vm1083 = vcmp.ne.s32.totalorder %v719, 0
        %v1084 = vsel %vm1083, 1, 0
        %v1085 = vlaneseq
        %v1086 = vshrl.u32 %v1085, 7
        %v1087 = vsub.s32 0, %v1086
        %v1088 = vrot.slane %v1084, %v1087
        %vm1089 = vcmp.eq.s32.totalorder %v1088, 1
        %v1090 = vsel %vm1089, -1e+09, %v1082
        %vm1091 = vcmask 64512
        %v1092 = vsel %vm1091, %v1090, -inf
        %1093 = vmax.xlane.f32.xlu0 %v1092
        %v1094 = vpop.xlane.xlu0 %1093
        %v1095 = vsub.f32 %v1090, %v1094
        %v1096 = vmul.f32 %v1095, 1.442695
        %v1097 = vpow.pop %v1096
        %v1098 = vsel %vm1091, %v1097, 0.0
        %1099 = vadd.xlane.f32.xlu0 %v1098
        %v1100 = vpop.xlane.xlu0 %1099
        %v1101 = vrcp.pop %v1100
        %v1102 = vmul.f32 %v1097, %v1101
        %v1104 = vsel %vm1091, %v1102, 0
        %1106 = vmatprep.subr.mxu0 0.0
        %1107 = vmatpush1.msra.mxu0 %v1004
        %1108 = vmatprep.subr.mxu0 0.0
        %1109 = vmatpush1.msra.mxu0 0.0
        %1110 = vmatprep.subr.mxu0 0.0
        %1111 = vmatpush1.msra.mxu0 0.0
        %1112 = vmatprep.subr.mxu0 0.0
        %1113 = vmatpush1.msra.mxu0 0.0
        %1114 = vmatprep.subr.mxu0 0.0
        %1115 = vmatpush1.msra.mxu0 0.0
        %1116 = vmatprep.subr.mxu0 0.0
        %1117 = vmatpush1.msra.mxu0 0.0
        %1118 = vmatprep.subr.mxu0 0.0
        %1119 = vmatpush1.msra.mxu0 0.0
        %1120 = vmatprep.subr.mxu0 0.0
        %1121 = vmatpush1.msra.mxu0 0.0
        %1122 = vmatprep.subr.mxu0 0.0
        %1123 = vmatpush1.msra.mxu0 0.0
        %1124 = vmatprep.subr.mxu0 0.0
        %1125 = vmatpush1.msra.mxu0 0.0
        %1126 = vmatprep.subr.mxu0 0.0
        %1127 = vmatpush1.msra.mxu0 0.0
        %1128 = vmatprep.subr.mxu0 0.0
        %1129 = vmatpush1.msra.mxu0 0.0
        %1130 = vmatprep.subr.mxu0 0.0
        %1131 = vmatpush1.msra.mxu0 0.0
        %1132 = vmatprep.subr.mxu0 0.0
        %1133 = vmatpush1.msra.mxu0 0.0
        %1134 = vmatprep.subr.mxu0 0.0
        %1135 = vmatpush1.msra.mxu0 0.0
        %1136 = vmatprep.subr.mxu0 0.0
        %1137 = vmatpush1.msra.mxu0 0.0
        %1138 = vmatprep.subr.mxu0 0.0
        %1139 = vmatpush1.msra.mxu0 0.0
        %1140 = vmatprep.subr.mxu0 0.0
        %1141 = vmatpush1.msra.mxu0 0.0
        %1142 = vmatprep.subr.mxu0 0.0
        %1143 = vmatpush1.msra.mxu0 0.0
        %1144 = vmatprep.subr.mxu0 0.0
        %1145 = vmatpush1.msra.mxu0 0.0
        %1146 = vmatprep.subr.mxu0 0.0
        %1147 = vmatpush1.msra.mxu0 0.0
        %1148 = vmatprep.subr.mxu0 0.0
        %1149 = vmatpush1.msra.mxu0 0.0
        %1150 = vmatprep.subr.mxu0 0.0
        %1151 = vmatpush1.msra.mxu0 0.0
        %1152 = vmatprep.subr.mxu0 0.0
        %1153 = vmatpush1.msra.mxu0 0.0
        %1154 = vmatprep.subr.mxu0 0.0
        %1155 = vmatpush1.msra.mxu0 0.0
        %1156 = vmatprep.subr.mxu0 0.0
        %1157 = vmatpush1.msra.mxu0 0.0
        %1158 = vmatprep.subr.mxu0 0.0
        %1159 = vmatpush1.msra.mxu0 0.0
        %1160 = vmatprep.subr.mxu0 0.0
        %1161 = vmatpush1.msra.mxu0 0.0
        %1162 = vmatprep.subr.mxu0 0.0
        %1163 = vmatpush1.msra.mxu0 0.0
        %1164 = vmatprep.subr.mxu0 0.0
        %1165 = vmatpush1.msra.mxu0 0.0
        %1166 = vmatprep.subr.mxu0 0.0
        %1167 = vmatpush1.msra.mxu0 0.0
        %1168 = vmatprep.subr.mxu0 0.0
        %1169 = vmatpush1.msra.mxu0 0.0
        %1170 = vmatprep.mubr.f32.mxu0 0.0
        %1171 = vmatmul.mubr.f32.gmra.mrb[0].mxu0 %v1104
        %v1172 = vpop.f32.mrb[0].mxu0
        %v1173 = vadd.f32 0.0, %v1172
        %v1174 = vpop.f32.mrb[0].mxu0
        %1175 = vdwg.mxu0
        %v1176 = vld [vmem:[#allocation11] sm:$0xff]
        %v1177 = vld [vmem:[#allocation11 + $0x8] sm:$0xff]
        %v1178 = vld [vmem:[#allocation11 + $0x10] sm:$0xff]
        %v1179 = vld [vmem:[#allocation11 + $0x18] sm:$0xff]
        %1180 = vrot.lane.b32.xlu0 %v1002, 96
        %v1181 = vpop.permute.xlu0 %1180
        %1182 = vrot.lane.b32.xlu0 %v1003, 96
        %v1183 = vpop.permute.xlu0 %1182
        %v1184 = vsel %vm1005, %v1181, 0
        %v1186 = vsel %vm1005, %v1183, 0
        %1188 = vmatprep.subr.mxu0 0.0
        %1189 = vmatpush1.xpose.msra.mxu0 %v1186
        %1190 = vmatprep.subr.mxu0 0.0
        %1191 = vmatpush1.xpose.msra.mxu0 0.0
        %1192 = vmatprep.subr.mxu0 0.0
        %1193 = vmatpush1.xpose.msra.mxu0 0.0
        %1194 = vmatprep.subr.mxu0 0.0
        %1195 = vmatpush1.xpose.msra.mxu0 0.0
        %1196 = vmatprep.subr.mxu0 0.0
        %1197 = vmatpush1.xpose.msra.mxu0 0.0
        %1198 = vmatprep.subr.mxu0 0.0
        %1199 = vmatpush1.xpose.msra.mxu0 0.0
        %1200 = vmatprep.subr.mxu0 0.0
        %1201 = vmatpush1.xpose.msra.mxu0 0.0
        %1202 = vmatprep.subr.mxu0 0.0
        %1203 = vmatpush1.xpose.msra.mxu0 0.0
        %1204 = vmatprep.subr.mxu0 0.0
        %1205 = vmatpush1.xpose.msra.mxu0 0.0
        %1206 = vmatprep.subr.mxu0 0.0
        %1207 = vmatpush1.xpose.msra.mxu0 0.0
        %1208 = vmatprep.subr.mxu0 0.0
        %1209 = vmatpush1.xpose.msra.mxu0 0.0
        %1210 = vmatprep.subr.mxu0 0.0
        %1211 = vmatpush1.xpose.msra.mxu0 0.0
        %1212 = vmatprep.subr.mxu0 0.0
        %1213 = vmatpush1.xpose.msra.mxu0 0.0
        %1214 = vmatprep.subr.mxu0 0.0
        %1215 = vmatpush1.xpose.msra.mxu0 0.0
        %1216 = vmatprep.subr.mxu0 0.0
        %1217 = vmatpush1.xpose.msra.mxu0 0.0
        %1218 = vmatprep.subr.mxu0 0.0
        %1219 = vmatpush1.xpose.msra.mxu0 0.0
        %1220 = vmatprep.subr.mxu0 0.0
        %1221 = vmatpush1.xpose.msra.mxu0 0.0
        %1222 = vmatprep.subr.mxu0 0.0
        %1223 = vmatpush1.xpose.msra.mxu0 0.0
        %1224 = vmatprep.subr.mxu0 0.0
        %1225 = vmatpush1.xpose.msra.mxu0 0.0
        %1226 = vmatprep.subr.mxu0 0.0
        %1227 = vmatpush1.xpose.msra.mxu0 0.0
        %1228 = vmatprep.subr.mxu0 0.0
        %1229 = vmatpush1.xpose.msra.mxu0 0.0
        %1230 = vmatprep.subr.mxu0 0.0
        %1231 = vmatpush1.xpose.msra.mxu0 0.0
        %1232 = vmatprep.subr.mxu0 0.0
        %1233 = vmatpush1.xpose.msra.mxu0 0.0
        %1234 = vmatprep.subr.mxu0 0.0
        %1235 = vmatpush1.xpose.msra.mxu0 0.0
        %1236 = vmatprep.subr.mxu0 0.0
        %1237 = vmatpush1.xpose.msra.mxu0 0.0
        %1238 = vmatprep.subr.mxu0 0.0
        %1239 = vmatpush1.xpose.msra.mxu0 0.0
        %1240 = vmatprep.subr.mxu0 0.0
        %1241 = vmatpush1.xpose.msra.mxu0 0.0
        %1242 = vmatprep.subr.mxu0 0.0
        %1243 = vmatpush1.xpose.msra.mxu0 0.0
        %1244 = vmatprep.subr.mxu0 0.0
        %1245 = vmatpush1.xpose.msra.mxu0 0.0
        %1246 = vmatprep.subr.mxu0 0.0
        %1247 = vmatpush1.xpose.msra.mxu0 0.0
        %1248 = vmatprep.subr.mxu0 0.0
        %1249 = vmatpush1.xpose.msra.mxu0 0.0
        %1250 = vmatprep.subr.mxu0 0.0
        %1251 = vmatpush1.xpose.msra.mxu0 0.0
        %1252 = vmatprep.mubr.f32.mxu0 0.0
        %1253 = vmatmul.mubr.f32.gmra.mrb[0].mxu0 %v1184
        %v1254 = vpop.f32.mrb[0].mxu0
        %v1255 = vadd.f32 0.0, %v1254
        %v1256 = vpop.f32.mrb[0].mxu0
        %1257 = vdwg.mxu0
        %v1258 = vmul.f32 %v1255, 0.17677669
        %v1259 = vsel %vm1089, -1e+09, %v1258
        %v1260 = vsel %vm1091, %v1259, -inf
        %1261 = vmax.xlane.f32.xlu0 %v1260
        %v1262 = vpop.xlane.xlu0 %1261
        %v1263 = vsub.f32 %v1259, %v1262
        %v1264 = vmul.f32 %v1263, 1.442695
        %v1265 = vpow.pop %v1264
        %v1266 = vsel %vm1091, %v1265, 0.0
        %1267 = vadd.xlane.f32.xlu0 %v1266
        %v1268 = vpop.xlane.xlu0 %1267
        %v1269 = vrcp.pop %v1268
        %v1270 = vmul.f32 %v1265, %v1269
        %1272 = vrot.lane.b32.xlu0 %v1004, 96
        %v1273 = vpop.permute.xlu0 %1272
        %v1276 = vsel %vm1091, %v1270, 0
        %1278 = vmatprep.subr.mxu0 0.0
        %1279 = vmatpush1.msra.mxu0 %v1273
        %1280 = vmatprep.subr.mxu0 0.0
        %1281 = vmatpush1.msra.mxu0 0.0
        %1282 = vmatprep.subr.mxu0 0.0
        %1283 = vmatpush1.msra.mxu0 0.0
        %1284 = vmatprep.subr.mxu0 0.0
        %1285 = vmatpush1.msra.mxu0 0.0
        %1286 = vmatprep.subr.mxu0 0.0
        %1287 = vmatpush1.msra.mxu0 0.0
        %1288 = vmatprep.subr.mxu0 0.0
        %1289 = vmatpush1.msra.mxu0 0.0
        %1290 = vmatprep.subr.mxu0 0.0
        %1291 = vmatpush1.msra.mxu0 0.0
        %1292 = vmatprep.subr.mxu0 0.0
        %1293 = vmatpush1.msra.mxu0 0.0
        %1294 = vmatprep.subr.mxu0 0.0
        %1295 = vmatpush1.msra.mxu0 0.0
        %1296 = vmatprep.subr.mxu0 0.0
        %1297 = vmatpush1.msra.mxu0 0.0
        %1298 = vmatprep.subr.mxu0 0.0
        %1299 = vmatpush1.msra.mxu0 0.0
        %1300 = vmatprep.subr.mxu0 0.0
        %1301 = vmatpush1.msra.mxu0 0.0
        %1302 = vmatprep.subr.mxu0 0.0
        %1303 = vmatpush1.msra.mxu0 0.0
        %1304 = vmatprep.subr.mxu0 0.0
        %1305 = vmatpush1.msra.mxu0 0.0
        %1306 = vmatprep.subr.mxu0 0.0
        %1307 = vmatpush1.msra.mxu0 0.0
        %1308 = vmatprep.subr.mxu0 0.0
        %1309 = vmatpush1.msra.mxu0 0.0
        %1310 = vmatprep.subr.mxu0 0.0
        %1311 = vmatpush1.msra.mxu0 0.0
        %1312 = vmatprep.subr.mxu0 0.0
        %1313 = vmatpush1.msra.mxu0 0.0
        %1314 = vmatprep.subr.mxu0 0.0
        %1315 = vmatpush1.msra.mxu0 0.0
        %1316 = vmatprep.subr.mxu0 0.0
        %1317 = vmatpush1.msra.mxu0 0.0
        %1318 = vmatprep.subr.mxu0 0.0
        %1319 = vmatpush1.msra.mxu0 0.0
        %1320 = vmatprep.subr.mxu0 0.0
        %1321 = vmatpush1.msra.mxu0 0.0
        %1322 = vmatprep.subr.mxu0 0.0
        %1323 = vmatpush1.msra.mxu0 0.0
        %1324 = vmatprep.subr.mxu0 0.0
        %1325 = vmatpush1.msra.mxu0 0.0
        %1326 = vmatprep.subr.mxu0 0.0
        %1327 = vmatpush1.msra.mxu0 0.0
        %1328 = vmatprep.subr.mxu0 0.0
        %1329 = vmatpush1.msra.mxu0 0.0
        %1330 = vmatprep.subr.mxu0 0.0
        %1331 = vmatpush1.msra.mxu0 0.0
        %1332 = vmatprep.subr.mxu0 0.0
        %1333 = vmatpush1.msra.mxu0 0.0
        %1334 = vmatprep.subr.mxu0 0.0
        %1335 = vmatpush1.msra.mxu0 0.0
        %1336 = vmatprep.subr.mxu0 0.0
        %1337 = vmatpush1.msra.mxu0 0.0
        %1338 = vmatprep.subr.mxu0 0.0
        %1339 = vmatpush1.msra.mxu0 0.0
        %1340 = vmatprep.subr.mxu0 0.0
        %1341 = vmatpush1.msra.mxu0 0.0
        %1342 = vmatprep.mubr.f32.mxu0 0.0
        %1343 = vmatmul.mubr.f32.gmra.mrb[0].mxu0 %v1276
        %v1344 = vpop.f32.mrb[0].mxu0
        %v1345 = vadd.f32 0.0, %v1344
        %v1346 = vpop.f32.mrb[0].mxu0
        %1347 = vdwg.mxu0
        %v1348 = vld [vmem:[#allocation11 + $0x20] sm:$0xff]
        %v1349 = vld [vmem:[#allocation11 + $0x28] sm:$0xff]
        %v1350 = vld [vmem:[#allocation11 + $0x30] sm:$0xff]
        %v1351 = vld [vmem:[#allocation11 + $0x38] sm:$0xff]
        %v1353 = vsel %vm1005, %v1345, 0
        %1355 = vmatprep.subr.mxu0 0.0
        %1356 = vmatpush1.msra.mxu0 %v1348
        %1357 = vmatprep.subr.mxu0 0.0
        %1358 = vmatpush1.msra.mxu0 %v1349
        %1359 = vmatprep.subr.mxu0 0.0
        %1360 = vmatpush1.msra.mxu0 %v1350
        %1361 = vmatprep.subr.mxu0 0.0
        %1362 = vmatpush1.msra.mxu0 %v1351
        %1363 = vmatprep.subr.mxu0 0.0
        %1364 = vmatpush1.msra.mxu0 0.0
        %1365 = vmatprep.subr.mxu0 0.0
        %1366 = vmatpush1.msra.mxu0 0.0
        %1367 = vmatprep.subr.mxu0 0.0
        %1368 = vmatpush1.msra.mxu0 0.0
        %1369 = vmatprep.subr.mxu0 0.0
        %1370 = vmatpush1.msra.mxu0 0.0
        %1371 = vmatprep.subr.mxu0 0.0
        %1372 = vmatpush1.msra.mxu0 0.0
        %1373 = vmatprep.subr.mxu0 0.0
        %1374 = vmatpush1.msra.mxu0 0.0
        %1375 = vmatprep.subr.mxu0 0.0
        %1376 = vmatpush1.msra.mxu0 0.0
        %1377 = vmatprep.subr.mxu0 0.0
        %1378 = vmatpush1.msra.mxu0 0.0
        %1379 = vmatprep.subr.mxu0 0.0
        %1380 = vmatpush1.msra.mxu0 0.0
        %1381 = vmatprep.subr.mxu0 0.0
        %1382 = vmatpush1.msra.mxu0 0.0
        %1383 = vmatprep.subr.mxu0 0.0
        %1384 = vmatpush1.msra.mxu0 0.0
        %1385 = vmatprep.subr.mxu0 0.0
        %1386 = vmatpush1.msra.mxu0 0.0
        %1387 = vmatprep.subr.mxu0 0.0
        %1388 = vmatpush1.msra.mxu0 0.0
        %1389 = vmatprep.subr.mxu0 0.0
        %1390 = vmatpush1.msra.mxu0 0.0
        %1391 = vmatprep.subr.mxu0 0.0
        %1392 = vmatpush1.msra.mxu0 0.0
        %1393 = vmatprep.subr.mxu0 0.0
        %1394 = vmatpush1.msra.mxu0 0.0
        %1395 = vmatprep.subr.mxu0 0.0
        %1396 = vmatpush1.msra.mxu0 0.0
        %1397 = vmatprep.subr.mxu0 0.0
        %1398 = vmatpush1.msra.mxu0 0.0
        %1399 = vmatprep.subr.mxu0 0.0
        %1400 = vmatpush1.msra.mxu0 0.0
        %1401 = vmatprep.subr.mxu0 0.0
        %1402 = vmatpush1.msra.mxu0 0.0
        %1403 = vmatprep.subr.mxu0 0.0
        %1404 = vmatpush1.msra.mxu0 0.0
        %1405 = vmatprep.subr.mxu0 0.0
        %1406 = vmatpush1.msra.mxu0 0.0
        %1407 = vmatprep.subr.mxu0 0.0
        %1408 = vmatpush1.msra.mxu0 0.0
        %1409 = vmatprep.subr.mxu0 0.0
        %1410 = vmatpush1.msra.mxu0 0.0
        %1411 = vmatprep.subr.mxu0 0.0
        %1412 = vmatpush1.msra.mxu0 0.0
        %1413 = vmatprep.subr.mxu0 0.0
        %1414 = vmatpush1.msra.mxu0 0.0
        %1415 = vmatprep.subr.mxu0 0.0
        %1416 = vmatpush1.msra.mxu0 0.0
        %1417 = vmatprep.subr.mxu0 0.0
        %1418 = vmatpush1.msra.mxu0 0.0
        %1419 = vmatprep.mubr.f32.mxu0 0.0
        %1420 = vmatmul.mubr.f32.gmra.mrb[0].mxu0 %v1353
        %v1421 = vpop.f32.mrb[0].mxu0
        %v1422 = vadd.f32 0.0, %v1421
        %v1423 = vpop.f32.mrb[0].mxu0
        %1424 = vdwg.mxu0
        %v1426 = vsel %vm1005, %v1173, 0
        %1428 = vmatprep.subr.mxu0 0.0
        %1429 = vmatpush1.msra.mxu0 %v1176
        %1430 = vmatprep.subr.mxu0 0.0
        %1431 = vmatpush1.msra.mxu0 %v1177
        %1432 = vmatprep.subr.mxu0 0.0
        %1433 = vmatpush1.msra.mxu0 %v1178
        %1434 = vmatprep.subr.mxu0 0.0
        %1435 = vmatpush1.msra.mxu0 %v1179
        %1436 = vmatprep.subr.mxu0 0.0
        %1437 = vmatpush1.msra.mxu0 0.0
        %1438 = vmatprep.subr.mxu0 0.0
        %1439 = vmatpush1.msra.mxu0 0.0
        %1440 = vmatprep.subr.mxu0 0.0
        %1441 = vmatpush1.msra.mxu0 0.0
        %1442 = vmatprep.subr.mxu0 0.0
        %1443 = vmatpush1.msra.mxu0 0.0
        %1444 = vmatprep.subr.mxu0 0.0
        %1445 = vmatpush1.msra.mxu0 0.0
        %1446 = vmatprep.subr.mxu0 0.0
        %1447 = vmatpush1.msra.mxu0 0.0
        %1448 = vmatprep.subr.mxu0 0.0
        %1449 = vmatpush1.msra.mxu0 0.0
        %1450 = vmatprep.subr.mxu0 0.0
        %1451 = vmatpush1.msra.mxu0 0.0
        %1452 = vmatprep.subr.mxu0 0.0
        %1453 = vmatpush1.msra.mxu0 0.0
        %1454 = vmatprep.subr.mxu0 0.0
        %1455 = vmatpush1.msra.mxu0 0.0
        %1456 = vmatprep.subr.mxu0 0.0
        %1457 = vmatpush1.msra.mxu0 0.0
        %1458 = vmatprep.subr.mxu0 0.0
        %1459 = vmatpush1.msra.mxu0 0.0
        %1460 = vmatprep.subr.mxu0 0.0
        %1461 = vmatpush1.msra.mxu0 0.0
        %1462 = vmatprep.subr.mxu0 0.0
        %1463 = vmatpush1.msra.mxu0 0.0
        %1464 = vmatprep.subr.mxu0 0.0
        %1465 = vmatpush1.msra.mxu0 0.0
        %1466 = vmatprep.subr.mxu0 0.0
        %1467 = vmatpush1.msra.mxu0 0.0
        %1468 = vmatprep.subr.mxu0 0.0
        %1469 = vmatpush1.msra.mxu0 0.0
        %1470 = vmatprep.subr.mxu0 0.0
        %1471 = vmatpush1.msra.mxu0 0.0
        %1472 = vmatprep.subr.mxu0 0.0
        %1473 = vmatpush1.msra.mxu0 0.0
        %1474 = vmatprep.subr.mxu0 0.0
        %1475 = vmatpush1.msra.mxu0 0.0
        %1476 = vmatprep.subr.mxu0 0.0
        %1477 = vmatpush1.msra.mxu0 0.0
        %1478 = vmatprep.subr.mxu0 0.0
        %1479 = vmatpush1.msra.mxu0 0.0
        %1480 = vmatprep.subr.mxu0 0.0
        %1481 = vmatpush1.msra.mxu0 0.0
        %1482 = vmatprep.subr.mxu0 0.0
        %1483 = vmatpush1.msra.mxu0 0.0
        %1484 = vmatprep.subr.mxu0 0.0
        %1485 = vmatpush1.msra.mxu0 0.0
        %1486 = vmatprep.subr.mxu0 0.0
        %1487 = vmatpush1.msra.mxu0 0.0
        %1488 = vmatprep.subr.mxu0 0.0
        %1489 = vmatpush1.msra.mxu0 0.0
        %1490 = vmatprep.subr.mxu0 0.0
        %1491 = vmatpush1.msra.mxu0 0.0
        %1492 = vmatprep.mubr.f32.mxu0 0.0
        %1493 = vmatmul.mubr.f32.gmra.mrb[0].mxu0 %v1426
        %v1494 = vpop.f32.mrb[0].mxu0
        %v1495 = vadd.f32 %v1422, %v1494
        %v1496 = vpop.f32.mrb[0].mxu0
        %1497 = vdwg.mxu0
        %1498 = vrot.lane.b32.xlu0 %v1002, 64
        %v1499 = vpop.permute.xlu0 %1498
        %1500 = vrot.lane.b32.xlu0 %v1003, 64
        %v1501 = vpop.permute.xlu0 %1500
        %v1502 = vsel %vm1005, %v1499, 0
        %v1504 = vsel %vm1005, %v1501, 0
        %1506 = vmatprep.subr.mxu0 0.0
        %1507 = vmatpush1.xpose.msra.mxu0 %v1504
        %1508 = vmatprep.subr.mxu0 0.0
        %1509 = vmatpush1.xpose.msra.mxu0 0.0
        %1510 = vmatprep.subr.mxu0 0.0
        %1511 = vmatpush1.xpose.msra.mxu0 0.0
        %1512 = vmatprep.subr.mxu0 0.0
        %1513 = vmatpush1.xpose.msra.mxu0 0.0
        %1514 = vmatprep.subr.mxu0 0.0
        %1515 = vmatpush1.xpose.msra.mxu0 0.0
        %1516 = vmatprep.subr.mxu0 0.0
        %1517 = vmatpush1.xpose.msra.mxu0 0.0
        %1518 = vmatprep.subr.mxu0 0.0
        %1519 = vmatpush1.xpose.msra.mxu0 0.0
        %1520 = vmatprep.subr.mxu0 0.0
        %1521 = vmatpush1.xpose.msra.mxu0 0.0
        %1522 = vmatprep.subr.mxu0 0.0
        %1523 = vmatpush1.xpose.msra.mxu0 0.0
        %1524 = vmatprep.subr.mxu0 0.0
        %1525 = vmatpush1.xpose.msra.mxu0 0.0
        %1526 = vmatprep.subr.mxu0 0.0
        %1527 = vmatpush1.xpose.msra.mxu0 0.0
        %1528 = vmatprep.subr.mxu0 0.0
        %1529 = vmatpush1.xpose.msra.mxu0 0.0
        %1530 = vmatprep.subr.mxu0 0.0
        %1531 = vmatpush1.xpose.msra.mxu0 0.0
        %1532 = vmatprep.subr.mxu0 0.0
        %1533 = vmatpush1.xpose.msra.mxu0 0.0
        %1534 = vmatprep.subr.mxu0 0.0
        %1535 = vmatpush1.xpose.msra.mxu0 0.0
        %1536 = vmatprep.subr.mxu0 0.0
        %1537 = vmatpush1.xpose.msra.mxu0 0.0
        %1538 = vmatprep.subr.mxu0 0.0
        %1539 = vmatpush1.xpose.msra.mxu0 0.0
        %1540 = vmatprep.subr.mxu0 0.0
        %1541 = vmatpush1.xpose.msra.mxu0 0.0
        %1542 = vmatprep.subr.mxu0 0.0
        %1543 = vmatpush1.xpose.msra.mxu0 0.0
        %1544 = vmatprep.subr.mxu0 0.0
        %1545 = vmatpush1.xpose.msra.mxu0 0.0
        %1546 = vmatprep.subr.mxu0 0.0
        %1547 = vmatpush1.xpose.msra.mxu0 0.0
        %1548 = vmatprep.subr.mxu0 0.0
        %1549 = vmatpush1.xpose.msra.mxu0 0.0
        %1550 = vmatprep.subr.mxu0 0.0
        %1551 = vmatpush1.xpose.msra.mxu0 0.0
        %1552 = vmatprep.subr.mxu0 0.0
        %1553 = vmatpush1.xpose.msra.mxu0 0.0
        %1554 = vmatprep.subr.mxu0 0.0
        %1555 = vmatpush1.xpose.msra.mxu0 0.0
        %1556 = vmatprep.subr.mxu0 0.0
        %1557 = vmatpush1.xpose.msra.mxu0 0.0
        %1558 = vmatprep.subr.mxu0 0.0
        %1559 = vmatpush1.xpose.msra.mxu0 0.0
        %1560 = vmatprep.subr.mxu0 0.0
        %1561 = vmatpush1.xpose.msra.mxu0 0.0
        %1562 = vmatprep.subr.mxu0 0.0
        %1563 = vmatpush1.xpose.msra.mxu0 0.0
        %1564 = vmatprep.subr.mxu0 0.0
        %1565 = vmatpush1.xpose.msra.mxu0 0.0
        %1566 = vmatprep.subr.mxu0 0.0
        %1567 = vmatpush1.xpose.msra.mxu0 0.0
        %1568 = vmatprep.subr.mxu0 0.0
        %1569 = vmatpush1.xpose.msra.mxu0 0.0
        %1570 = vmatprep.mubr.f32.mxu0 0.0
        %1571 = vmatmul.mubr.f32.gmra.mrb[0].mxu0 %v1502
        %v1572 = vpop.f32.mrb[0].mxu0
        %v1573 = vadd.f32 0.0, %v1572
        %v1574 = vpop.f32.mrb[0].mxu0
        %1575 = vdwg.mxu0
        %v1576 = vmul.f32 %v1573, 0.17677669
        %v1577 = vsel %vm1089, -1e+09, %v1576
        %v1578 = vsel %vm1091, %v1577, -inf
        %1579 = vmax.xlane.f32.xlu0 %v1578
        %v1580 = vpop.xlane.xlu0 %1579
        %v1581 = vsub.f32 %v1577, %v1580
        %v1582 = vmul.f32 %v1581, 1.442695
        %v1583 = vpow.pop %v1582
        %v1584 = vsel %vm1091, %v1583, 0.0
        %1585 = vadd.xlane.f32.xlu0 %v1584
        %v1586 = vpop.xlane.xlu0 %1585
        %v1587 = vrcp.pop %v1586
        %v1588 = vmul.f32 %v1583, %v1587
        %1589 = vrot.lane.b32.xlu0 %v1004, 64
        %v1590 = vpop.permute.xlu0 %1589
        %v1593 = vsel %vm1091, %v1588, 0
        %1595 = vmatprep.subr.mxu0 0.0
        %1596 = vmatpush1.msra.mxu0 %v1590
        %1597 = vmatprep.subr.mxu0 0.0
        %1598 = vmatpush1.msra.mxu0 0.0
        %1599 = vmatprep.subr.mxu0 0.0
        %1600 = vmatpush1.msra.mxu0 0.0
        %1601 = vmatprep.subr.mxu0 0.0
        %1602 = vmatpush1.msra.mxu0 0.0
        %1603 = vmatprep.subr.mxu0 0.0
        %1604 = vmatpush1.msra.mxu0 0.0
        %1605 = vmatprep.subr.mxu0 0.0
        %1606 = vmatpush1.msra.mxu0 0.0
        %1607 = vmatprep.subr.mxu0 0.0
        %1608 = vmatpush1.msra.mxu0 0.0
        %1609 = vmatprep.subr.mxu0 0.0
        %1610 = vmatpush1.msra.mxu0 0.0
        %1611 = vmatprep.subr.mxu0 0.0
        %1612 = vmatpush1.msra.mxu0 0.0
        %1613 = vmatprep.subr.mxu0 0.0
        %1614 = vmatpush1.msra.mxu0 0.0
        %1615 = vmatprep.subr.mxu0 0.0
        %1616 = vmatpush1.msra.mxu0 0.0
        %1617 = vmatprep.subr.mxu0 0.0
        %1618 = vmatpush1.msra.mxu0 0.0
        %1619 = vmatprep.subr.mxu0 0.0
        %1620 = vmatpush1.msra.mxu0 0.0
        %1621 = vmatprep.subr.mxu0 0.0
        %1622 = vmatpush1.msra.mxu0 0.0
        %1623 = vmatprep.subr.mxu0 0.0
        %1624 = vmatpush1.msra.mxu0 0.0
        %1625 = vmatprep.subr.mxu0 0.0
        %1626 = vmatpush1.msra.mxu0 0.0
        %1627 = vmatprep.subr.mxu0 0.0
        %1628 = vmatpush1.msra.mxu0 0.0
        %1629 = vmatprep.subr.mxu0 0.0
        %1630 = vmatpush1.msra.mxu0 0.0
        %1631 = vmatprep.subr.mxu0 0.0
        %1632 = vmatpush1.msra.mxu0 0.0
        %1633 = vmatprep.subr.mxu0 0.0
        %1634 = vmatpush1.msra.mxu0 0.0
        %1635 = vmatprep.subr.mxu0 0.0
        %1636 = vmatpush1.msra.mxu0 0.0
        %1637 = vmatprep.subr.mxu0 0.0
        %1638 = vmatpush1.msra.mxu0 0.0
        %1639 = vmatprep.subr.mxu0 0.0
        %1640 = vmatpush1.msra.mxu0 0.0
        %1641 = vmatprep.subr.mxu0 0.0
        %1642 = vmatpush1.msra.mxu0 0.0
        %1643 = vmatprep.subr.mxu0 0.0
        %1644 = vmatpush1.msra.mxu0 0.0
        %1645 = vmatprep.subr.mxu0 0.0
        %1646 = vmatpush1.msra.mxu0 0.0
        %1647 = vmatprep.subr.mxu0 0.0
        %1648 = vmatpush1.msra.mxu0 0.0
        %1649 = vmatprep.subr.mxu0 0.0
        %1650 = vmatpush1.msra.mxu0 0.0
        %1651 = vmatprep.subr.mxu0 0.0
        %1652 = vmatpush1.msra.mxu0 0.0
        %1653 = vmatprep.subr.mxu0 0.0
        %1654 = vmatpush1.msra.mxu0 0.0
        %1655 = vmatprep.subr.mxu0 0.0
        %1656 = vmatpush1.msra.mxu0 0.0
        %1657 = vmatprep.subr.mxu0 0.0
        %1658 = vmatpush1.msra.mxu0 0.0
        %1659 = vmatprep.mubr.f32.mxu0 0.0
        %1660 = vmatmul.mubr.f32.gmra.mrb[0].mxu0 %v1593
        %v1661 = vpop.f32.mrb[0].mxu0
        %v1662 = vadd.f32 0.0, %v1661
        %v1663 = vpop.f32.mrb[0].mxu0
        %1664 = vdwg.mxu0
        %v1665 = vld [vmem:[#allocation11 + $0x40] sm:$0xff]
        %v1666 = vld [vmem:[#allocation11 + $0x48] sm:$0xff]
        %v1667 = vld [vmem:[#allocation11 + $0x50] sm:$0xff]
        %v1668 = vld [vmem:[#allocation11 + $0x58] sm:$0xff]
        %v1670 = vsel %vm1005, %v1662, 0
        %1672 = vmatprep.subr.mxu0 0.0
        %1673 = vmatpush1.msra.mxu0 %v1665
        %1674 = vmatprep.subr.mxu0 0.0
        %1675 = vmatpush1.msra.mxu0 %v1666
        %1676 = vmatprep.subr.mxu0 0.0
        %1677 = vmatpush1.msra.mxu0 %v1667
        %1678 = vmatprep.subr.mxu0 0.0
        %1679 = vmatpush1.msra.mxu0 %v1668
        %1680 = vmatprep.subr.mxu0 0.0
        %1681 = vmatpush1.msra.mxu0 0.0
        %1682 = vmatprep.subr.mxu0 0.0
        %1683 = vmatpush1.msra.mxu0 0.0
        %1684 = vmatprep.subr.mxu0 0.0
        %1685 = vmatpush1.msra.mxu0 0.0
        %1686 = vmatprep.subr.mxu0 0.0
        %1687 = vmatpush1.msra.mxu0 0.0
        %1688 = vmatprep.subr.mxu0 0.0
        %1689 = vmatpush1.msra.mxu0 0.0
        %1690 = vmatprep.subr.mxu0 0.0
        %1691 = vmatpush1.msra.mxu0 0.0
        %1692 = vmatprep.subr.mxu0 0.0
        %1693 = vmatpush1.msra.mxu0 0.0
        %1694 = vmatprep.subr.mxu0 0.0
        %1695 = vmatpush1.msra.mxu0 0.0
        %1696 = vmatprep.subr.mxu0 0.0
        %1697 = vmatpush1.msra.mxu0 0.0
        %1698 = vmatprep.subr.mxu0 0.0
        %1699 = vmatpush1.msra.mxu0 0.0
        %1700 = vmatprep.subr.mxu0 0.0
        %1701 = vmatpush1.msra.mxu0 0.0
        %1702 = vmatprep.subr.mxu0 0.0
        %1703 = vmatpush1.msra.mxu0 0.0
        %1704 = vmatprep.subr.mxu0 0.0
        %1705 = vmatpush1.msra.mxu0 0.0
        %1706 = vmatprep.subr.mxu0 0.0
        %1707 = vmatpush1.msra.mxu0 0.0
        %1708 = vmatprep.subr.mxu0 0.0
        %1709 = vmatpush1.msra.mxu0 0.0
        %1710 = vmatprep.subr.mxu0 0.0
        %1711 = vmatpush1.msra.mxu0 0.0
        %1712 = vmatprep.subr.mxu0 0.0
        %1713 = vmatpush1.msra.mxu0 0.0
        %1714 = vmatprep.subr.mxu0 0.0
        %1715 = vmatpush1.msra.mxu0 0.0
        %1716 = vmatprep.subr.mxu0 0.0
        %1717 = vmatpush1.msra.mxu0 0.0
        %1718 = vmatprep.subr.mxu0 0.0
        %1719 = vmatpush1.msra.mxu0 0.0
        %1720 = vmatprep.subr.mxu0 0.0
        %1721 = vmatpush1.msra.mxu0 0.0
        %1722 = vmatprep.subr.mxu0 0.0
        %1723 = vmatpush1.msra.mxu0 0.0
        %1724 = vmatprep.subr.mxu0 0.0
        %1725 = vmatpush1.msra.mxu0 0.0
        %1726 = vmatprep.subr.mxu0 0.0
        %1727 = vmatpush1.msra.mxu0 0.0
        %1728 = vmatprep.subr.mxu0 0.0
        %1729 = vmatpush1.msra.mxu0 0.0
        %1730 = vmatprep.subr.mxu0 0.0
        %1731 = vmatpush1.msra.mxu0 0.0
        %1732 = vmatprep.subr.mxu0 0.0
        %1733 = vmatpush1.msra.mxu0 0.0
        %1734 = vmatprep.subr.mxu0 0.0
        %1735 = vmatpush1.msra.mxu0 0.0
        %1736 = vmatprep.mubr.f32.mxu0 0.0
        %1737 = vmatmul.mubr.f32.gmra.mrb[0].mxu0 %v1670
        %v1738 = vpop.f32.mrb[0].mxu0
        %v1739 = vadd.f32 0.0, %v1738
        %v1740 = vpop.f32.mrb[0].mxu0
        %1741 = vdwg.mxu0
        %v1742 = vadd.f32 %v1495, %v1739
        %1743 = vrot.lane.b32.xlu0 %v1002, 32
        %v1744 = vpop.permute.xlu0 %1743
        %1745 = vrot.lane.b32.xlu0 %v1003, 32
        %v1746 = vpop.permute.xlu0 %1745
        %v1747 = vsel %vm1005, %v1744, 0
        %v1749 = vsel %vm1005, %v1746, 0
        %1751 = vmatprep.subr.mxu0 0.0
        %1752 = vmatpush1.xpose.msra.mxu0 %v1749
        %1753 = vmatprep.subr.mxu0 0.0
        %1754 = vmatpush1.xpose.msra.mxu0 0.0
        %1755 = vmatprep.subr.mxu0 0.0
        %1756 = vmatpush1.xpose.msra.mxu0 0.0
        %1757 = vmatprep.subr.mxu0 0.0
        %1758 = vmatpush1.xpose.msra.mxu0 0.0
        %1759 = vmatprep.subr.mxu0 0.0
        %1760 = vmatpush1.xpose.msra.mxu0 0.0
        %1761 = vmatprep.subr.mxu0 0.0
        %1762 = vmatpush1.xpose.msra.mxu0 0.0
        %1763 = vmatprep.subr.mxu0 0.0
        %1764 = vmatpush1.xpose.msra.mxu0 0.0
        %1765 = vmatprep.subr.mxu0 0.0
        %1766 = vmatpush1.xpose.msra.mxu0 0.0
        %1767 = vmatprep.subr.mxu0 0.0
        %1768 = vmatpush1.xpose.msra.mxu0 0.0
        %1769 = vmatprep.subr.mxu0 0.0
        %1770 = vmatpush1.xpose.msra.mxu0 0.0
        %1771 = vmatprep.subr.mxu0 0.0
        %1772 = vmatpush1.xpose.msra.mxu0 0.0
        %1773 = vmatprep.subr.mxu0 0.0
        %1774 = vmatpush1.xpose.msra.mxu0 0.0
        %1775 = vmatprep.subr.mxu0 0.0
        %1776 = vmatpush1.xpose.msra.mxu0 0.0
        %1777 = vmatprep.subr.mxu0 0.0
        %1778 = vmatpush1.xpose.msra.mxu0 0.0
        %1779 = vmatprep.subr.mxu0 0.0
        %1780 = vmatpush1.xpose.msra.mxu0 0.0
        %1781 = vmatprep.subr.mxu0 0.0
        %1782 = vmatpush1.xpose.msra.mxu0 0.0
        %1783 = vmatprep.subr.mxu0 0.0
        %1784 = vmatpush1.xpose.msra.mxu0 0.0
        %1785 = vmatprep.subr.mxu0 0.0
        %1786 = vmatpush1.xpose.msra.mxu0 0.0
        %1787 = vmatprep.subr.mxu0 0.0
        %1788 = vmatpush1.xpose.msra.mxu0 0.0
        %1789 = vmatprep.subr.mxu0 0.0
        %1790 = vmatpush1.xpose.msra.mxu0 0.0
        %1791 = vmatprep.subr.mxu0 0.0
        %1792 = vmatpush1.xpose.msra.mxu0 0.0
        %1793 = vmatprep.subr.mxu0 0.0
        %1794 = vmatpush1.xpose.msra.mxu0 0.0
        %1795 = vmatprep.subr.mxu0 0.0
        %1796 = vmatpush1.xpose.msra.mxu0 0.0
        %1797 = vmatprep.subr.mxu0 0.0
        %1798 = vmatpush1.xpose.msra.mxu0 0.0
        %1799 = vmatprep.subr.mxu0 0.0
        %1800 = vmatpush1.xpose.msra.mxu0 0.0
        %1801 = vmatprep.subr.mxu0 0.0
        %1802 = vmatpush1.xpose.msra.mxu0 0.0
        %1803 = vmatprep.subr.mxu0 0.0
        %1804 = vmatpush1.xpose.msra.mxu0 0.0
        %1805 = vmatprep.subr.mxu0 0.0
        %1806 = vmatpush1.xpose.msra.mxu0 0.0
        %1807 = vmatprep.subr.mxu0 0.0
        %1808 = vmatpush1.xpose.msra.mxu0 0.0
        %1809 = vmatprep.subr.mxu0 0.0
        %1810 = vmatpush1.xpose.msra.mxu0 0.0
        %1811 = vmatprep.subr.mxu0 0.0
        %1812 = vmatpush1.xpose.msra.mxu0 0.0
        %1813 = vmatprep.subr.mxu0 0.0
        %1814 = vmatpush1.xpose.msra.mxu0 0.0
        %1815 = vmatprep.mubr.f32.mxu0 0.0
        %1816 = vmatmul.mubr.f32.gmra.mrb[0].mxu0 %v1747
        %v1817 = vpop.f32.mrb[0].mxu0
        %v1818 = vadd.f32 0.0, %v1817
        %v1819 = vpop.f32.mrb[0].mxu0
        %1820 = vdwg.mxu0
        %v1821 = vmul.f32 %v1818, 0.17677669
        %v1822 = vsel %vm1089, -1e+09, %v1821
        %v1823 = vsel %vm1091, %v1822, -inf
        %1824 = vmax.xlane.f32.xlu0 %v1823
        %v1825 = vpop.xlane.xlu0 %1824
        %v1826 = vsub.f32 %v1822, %v1825
        %v1827 = vmul.f32 %v1826, 1.442695
        %v1828 = vpow.pop %v1827
        %v1829 = vsel %vm1091, %v1828, 0.0
        %1830 = vadd.xlane.f32.xlu0 %v1829
        %v1831 = vpop.xlane.xlu0 %1830
        %v1832 = vrcp.pop %v1831
        %v1833 = vmul.f32 %v1828, %v1832
        %1834 = vrot.lane.b32.xlu0 %v1004, 32
        %v1835 = vpop.permute.xlu0 %1834
        %v1838 = vsel %vm1091, %v1833, 0
        %1840 = vmatprep.subr.mxu0 0.0
        %1841 = vmatpush1.msra.mxu0 %v1835
        %1842 = vmatprep.subr.mxu0 0.0
        %1843 = vmatpush1.msra.mxu0 0.0
        %1844 = vmatprep.subr.mxu0 0.0
        %1845 = vmatpush1.msra.mxu0 0.0
        %1846 = vmatprep.subr.mxu0 0.0
        %1847 = vmatpush1.msra.mxu0 0.0
        %1848 = vmatprep.subr.mxu0 0.0
        %1849 = vmatpush1.msra.mxu0 0.0
        %1850 = vmatprep.subr.mxu0 0.0
        %1851 = vmatpush1.msra.mxu0 0.0
        %1852 = vmatprep.subr.mxu0 0.0
        %1853 = vmatpush1.msra.mxu0 0.0
        %1854 = vmatprep.subr.mxu0 0.0
        %1855 = vmatpush1.msra.mxu0 0.0
        %1856 = vmatprep.subr.mxu0 0.0
        %1857 = vmatpush1.msra.mxu0 0.0
        %1858 = vmatprep.subr.mxu0 0.0
        %1859 = vmatpush1.msra.mxu0 0.0
        %1860 = vmatprep.subr.mxu0 0.0
        %1861 = vmatpush1.msra.mxu0 0.0
        %1862 = vmatprep.subr.mxu0 0.0
        %1863 = vmatpush1.msra.mxu0 0.0
        %1864 = vmatprep.subr.mxu0 0.0
        %1865 = vmatpush1.msra.mxu0 0.0
        %1866 = vmatprep.subr.mxu0 0.0
        %1867 = vmatpush1.msra.mxu0 0.0
        %1868 = vmatprep.subr.mxu0 0.0
        %1869 = vmatpush1.msra.mxu0 0.0
        %1870 = vmatprep.subr.mxu0 0.0
        %1871 = vmatpush1.msra.mxu0 0.0
        %1872 = vmatprep.subr.mxu0 0.0
        %1873 = vmatpush1.msra.mxu0 0.0
        %1874 = vmatprep.subr.mxu0 0.0
        %1875 = vmatpush1.msra.mxu0 0.0
        %1876 = vmatprep.subr.mxu0 0.0
        %1877 = vmatpush1.msra.mxu0 0.0
        %1878 = vmatprep.subr.mxu0 0.0
        %1879 = vmatpush1.msra.mxu0 0.0
        %1880 = vmatprep.subr.mxu0 0.0
        %1881 = vmatpush1.msra.mxu0 0.0
        %1882 = vmatprep.subr.mxu0 0.0
        %1883 = vmatpush1.msra.mxu0 0.0
        %1884 = vmatprep.subr.mxu0 0.0
        %1885 = vmatpush1.msra.mxu0 0.0
        %1886 = vmatprep.subr.mxu0 0.0
        %1887 = vmatpush1.msra.mxu0 0.0
        %1888 = vmatprep.subr.mxu0 0.0
        %1889 = vmatpush1.msra.mxu0 0.0
        %1890 = vmatprep.subr.mxu0 0.0
        %1891 = vmatpush1.msra.mxu0 0.0
        %1892 = vmatprep.subr.mxu0 0.0
        %1893 = vmatpush1.msra.mxu0 0.0
        %1894 = vmatprep.subr.mxu0 0.0
        %1895 = vmatpush1.msra.mxu0 0.0
        %1896 = vmatprep.subr.mxu0 0.0
        %1897 = vmatpush1.msra.mxu0 0.0
        %1898 = vmatprep.subr.mxu0 0.0
        %1899 = vmatpush1.msra.mxu0 0.0
        %1900 = vmatprep.subr.mxu0 0.0
        %1901 = vmatpush1.msra.mxu0 0.0
        %1902 = vmatprep.subr.mxu0 0.0
        %1903 = vmatpush1.msra.mxu0 0.0
        %1904 = vmatprep.mubr.f32.mxu0 0.0
        %1905 = vmatmul.mubr.f32.gmra.mrb[0].mxu0 %v1838
        %v1906 = vpop.f32.mrb[0].mxu0
        %v1907 = vadd.f32 0.0, %v1906
        %v1908 = vpop.f32.mrb[0].mxu0
        %1909 = vdwg.mxu0
        %v1910 = vld [vmem:[#allocation11 + $0x60] sm:$0xff]
        %v1911 = vld [vmem:[#allocation11 + $0x68] sm:$0xff]
        %v1912 = vld [vmem:[#allocation11 + $0x70] sm:$0xff]
        %v1913 = vld [vmem:[#allocation11 + $0x78] sm:$0xff]
        %v1915 = vsel %vm1005, %v1907, 0
        %1917 = vmatprep.subr.mxu0 0.0
        %1918 = vmatpush1.msra.mxu0 %v1910
        %1919 = vmatprep.subr.mxu0 0.0
        %1920 = vmatpush1.msra.mxu0 %v1911
        %1921 = vmatprep.subr.mxu0 0.0
        %1922 = vmatpush1.msra.mxu0 %v1912
        %1923 = vmatprep.subr.mxu0 0.0
        %1924 = vmatpush1.msra.mxu0 %v1913
        %1925 = vmatprep.subr.mxu0 0.0
        %1926 = vmatpush1.msra.mxu0 0.0
        %1927 = vmatprep.subr.mxu0 0.0
        %1928 = vmatpush1.msra.mxu0 0.0
        %1929 = vmatprep.subr.mxu0 0.0
        %1930 = vmatpush1.msra.mxu0 0.0
        %1931 = vmatprep.subr.mxu0 0.0
        %1932 = vmatpush1.msra.mxu0 0.0
        %1933 = vmatprep.subr.mxu0 0.0
        %1934 = vmatpush1.msra.mxu0 0.0
        %1935 = vmatprep.subr.mxu0 0.0
        %1936 = vmatpush1.msra.mxu0 0.0
        %1937 = vmatprep.subr.mxu0 0.0
        %1938 = vmatpush1.msra.mxu0 0.0
        %1939 = vmatprep.subr.mxu0 0.0
        %1940 = vmatpush1.msra.mxu0 0.0
        %1941 = vmatprep.subr.mxu0 0.0
        %1942 = vmatpush1.msra.mxu0 0.0
        %1943 = vmatprep.subr.mxu0 0.0
        %1944 = vmatpush1.msra.mxu0 0.0
        %1945 = vmatprep.subr.mxu0 0.0
        %1946 = vmatpush1.msra.mxu0 0.0
        %1947 = vmatprep.subr.mxu0 0.0
        %1948 = vmatpush1.msra.mxu0 0.0
        %1949 = vmatprep.subr.mxu0 0.0
        %1950 = vmatpush1.msra.mxu0 0.0
        %1951 = vmatprep.subr.mxu0 0.0
        %1952 = vmatpush1.msra.mxu0 0.0
        %1953 = vmatprep.subr.mxu0 0.0
        %1954 = vmatpush1.msra.mxu0 0.0
        %1955 = vmatprep.subr.mxu0 0.0
        %1956 = vmatpush1.msra.mxu0 0.0
        %1957 = vmatprep.subr.mxu0 0.0
        %1958 = vmatpush1.msra.mxu0 0.0
        %1959 = vmatprep.subr.mxu0 0.0
        %1960 = vmatpush1.msra.mxu0 0.0
        %1961 = vmatprep.subr.mxu0 0.0
        %1962 = vmatpush1.msra.mxu0 0.0
        %1963 = vmatprep.subr.mxu0 0.0
        %1964 = vmatpush1.msra.mxu0 0.0
        %1965 = vmatprep.subr.mxu0 0.0
        %1966 = vmatpush1.msra.mxu0 0.0
        %1967 = vmatprep.subr.mxu0 0.0
        %1968 = vmatpush1.msra.mxu0 0.0
        %1969 = vmatprep.subr.mxu0 0.0
        %1970 = vmatpush1.msra.mxu0 0.0
        %1971 = vmatprep.subr.mxu0 0.0
        %1972 = vmatpush1.msra.mxu0 0.0
        %1973 = vmatprep.subr.mxu0 0.0
        %1974 = vmatpush1.msra.mxu0 0.0
        %1975 = vmatprep.subr.mxu0 0.0
        %1976 = vmatpush1.msra.mxu0 0.0
        %1977 = vmatprep.subr.mxu0 0.0
        %1978 = vmatpush1.msra.mxu0 0.0
        %1979 = vmatprep.subr.mxu0 0.0
        %1980 = vmatpush1.msra.mxu0 0.0
        %1981 = vmatprep.mubr.f32.mxu0 0.0
        %1982 = vmatmul.mubr.f32.gmra.mrb[0].mxu0 %v1915
        %v1983 = vpop.f32.mrb[0].mxu0
        %v1984 = vadd.f32 0.0, %v1983
        %v1985 = vpop.f32.mrb[0].mxu0
        %1986 = vdwg.mxu0
        %v1987 = vadd.f32 %v1742, %v1984
        %v1988 = vld [vmem:[%s10] sm:$0x1]
        %v1990 = vlaneseq
        %v1991 = vshrl.u32 %v1990, 7
        %v1992 = vsub.s32 0, %v1991
        %v1993 = vrot.slane %v1988, %v1992
        %v1995 = vadd.f32 %v1987, %v1993
        %v1996 = vld [vmem:[%s11] sm:$0x1]
        %v1997 = vld [vmem:[%s12] sm:$0x1]
        %v1998 = vadd.f32 %v717, %v1995
        %1999 = vadd.xlane.f32.xlu0 %v1998
        %v2000 = vpop.xlane.xlu0 %1999
        %v2001 = vrcp.pop 128.0
        %v2002 = vmul.f32 %v2000, %v2001
        %v2003 = vsub.f32 %v1998, %v2002
        %v2004 = vmul.f32 %v2003, %v2003
        %2005 = vadd.xlane.f32.xlu0 %v2004
        %v2006 = vpop.xlane.xlu0 %2005
        %v2007 = vrcp.pop 127.0
        %v2008 = vmul.f32 %v2006, %v2007
        %v2009 = vrsqrt.pop %v2008
        %v2010 = vmul.f32 %v2008, %v2009
        %vm2011 = vcmp.eq.f32.partialorder %v2008, inf
        %v2012 = vsel %vm2011, %v2008, %v2010
        %vm2013 = vcmp.eq.f32.partialorder %v2008, 0.0
        %v2014 = vand.u32 %v2008, 2147483648
        %v2015 = vsel %vm2013, %v2014, %v2012
        %v2017 = vlaneseq
        %v2018 = vshrl.u32 %v2017, 7
        %v2019 = vsub.s32 0, %v2018
        %v2020 = vrot.slane %v1996, %v2019
        %v2022 = vmul.f32 %v2020, %v2003
        %v2023 = vadd.f32 %v2015, 1e-06
        %v2024 = vrcp.pop %v2023
        %v2025 = vmul.f32 %v2022, %v2024
        %v2027 = vlaneseq
        %v2028 = vshrl.u32 %v2027, 7
        %v2029 = vsub.s32 0, %v2028
        %v2030 = vrot.slane %v1997, %v2029
        %v2032 = vadd.f32 %v2025, %v2030
        %v2033 = vld [vmem:[#allocation13] sm:$0xff]
        %v2034 = vld [vmem:[#allocation13 + $0x8] sm:$0xff]
        %v2035 = vld [vmem:[#allocation13 + $0x10] sm:$0xff]
        %v2036 = vld [vmem:[#allocation13 + $0x18] sm:$0xff]
        %v2037 = vld [vmem:[#allocation13 + $0x20] sm:$0xff]
        %v2038 = vld [vmem:[#allocation13 + $0x28] sm:$0xff]
        %v2039 = vld [vmem:[#allocation13 + $0x30] sm:$0xff]
        %v2040 = vld [vmem:[#allocation13 + $0x38] sm:$0xff]
        %v2041 = vld [vmem:[#allocation13 + $0x40] sm:$0xff]
        %v2042 = vld [vmem:[#allocation13 + $0x48] sm:$0xff]
        %v2043 = vld [vmem:[#allocation13 + $0x50] sm:$0xff]
        %v2044 = vld [vmem:[#allocation13 + $0x58] sm:$0xff]
        %v2045 = vld [vmem:[#allocation13 + $0x60] sm:$0xff]
        %v2046 = vld [vmem:[#allocation13 + $0x68] sm:$0xff]
        %v2047 = vld [vmem:[#allocation13 + $0x70] sm:$0xff]
        %v2048 = vld [vmem:[#allocation13 + $0x78] sm:$0xff]
        %v2049 = vld [vmem:[#allocation13 + $0x80] sm:$0xff]
        %v2050 = vld [vmem:[#allocation13 + $0x88] sm:$0xff]
        %v2051 = vld [vmem:[#allocation13 + $0x90] sm:$0xff]
        %v2052 = vld [vmem:[#allocation13 + $0x98] sm:$0xff]
        %v2053 = vld [vmem:[#allocation13 + $0xa0] sm:$0xff]
        %v2054 = vld [vmem:[#allocation13 + $0xa8] sm:$0xff]
        %v2055 = vld [vmem:[#allocation13 + $0xb0] sm:$0xff]
        %v2056 = vld [vmem:[#allocation13 + $0xb8] sm:$0xff]
        %v2057 = vld [vmem:[#allocation13 + $0xc0] sm:$0xff]
        %v2058 = vld [vmem:[#allocation13 + $0xc8] sm:$0xff]
        %v2059 = vld [vmem:[#allocation13 + $0xd0] sm:$0xff]
        %v2060 = vld [vmem:[#allocation13 + $0xd8] sm:$0xff]
        %v2061 = vld [vmem:[#allocation13 + $0xe0] sm:$0xff]
        %v2062 = vld [vmem:[#allocation13 + $0xe8] sm:$0xff]
        %v2063 = vld [vmem:[#allocation13 + $0xf0] sm:$0xff]
        %v2064 = vld [vmem:[#allocation13 + $0xf8] sm:$0xff]
        %v2065 = vld [vmem:[#allocation13 + $0x100] sm:$0xff]
        %v2066 = vld [vmem:[#allocation13 + $0x108] sm:$0xff]
        %v2067 = vld [vmem:[#allocation13 + $0x110] sm:$0xff]
        %v2068 = vld [vmem:[#allocation13 + $0x118] sm:$0xff]
        %v2069 = vld [vmem:[#allocation13 + $0x120] sm:$0xff]
        %v2070 = vld [vmem:[#allocation13 + $0x128] sm:$0xff]
        %v2071 = vld [vmem:[#allocation13 + $0x130] sm:$0xff]
        %v2072 = vld [vmem:[#allocation13 + $0x138] sm:$0xff]
        %v2073 = vld [vmem:[#allocation13 + $0x140] sm:$0xff]
        %v2074 = vld [vmem:[#allocation13 + $0x148] sm:$0xff]
        %v2075 = vld [vmem:[#allocation13 + $0x150] sm:$0xff]
        %v2076 = vld [vmem:[#allocation13 + $0x158] sm:$0xff]
        %v2077 = vld [vmem:[#allocation13 + $0x160] sm:$0xff]
        %v2078 = vld [vmem:[#allocation13 + $0x168] sm:$0xff]
        %v2079 = vld [vmem:[#allocation13 + $0x170] sm:$0xff]
        %v2080 = vld [vmem:[#allocation13 + $0x178] sm:$0xff]
        %v2081 = vld [vmem:[#allocation13 + $0x180] sm:$0xff]
        %v2082 = vld [vmem:[#allocation13 + $0x188] sm:$0xff]
        %v2083 = vld [vmem:[#allocation13 + $0x190] sm:$0xff]
        %v2084 = vld [vmem:[#allocation13 + $0x198] sm:$0xff]
        %v2085 = vld [vmem:[#allocation13 + $0x1a0] sm:$0xff]
        %v2086 = vld [vmem:[#allocation13 + $0x1a8] sm:$0xff]
        %v2087 = vld [vmem:[#allocation13 + $0x1b0] sm:$0xff]
        %v2088 = vld [vmem:[#allocation13 + $0x1b8] sm:$0xff]
        %v2089 = vld [vmem:[#allocation13 + $0x1c0] sm:$0xff]
        %v2090 = vld [vmem:[#allocation13 + $0x1c8] sm:$0xff]
        %v2091 = vld [vmem:[#allocation13 + $0x1d0] sm:$0xff]
        %v2092 = vld [vmem:[#allocation13 + $0x1d8] sm:$0xff]
        %v2093 = vld [vmem:[#allocation13 + $0x1e0] sm:$0xff]
        %v2094 = vld [vmem:[#allocation13 + $0x1e8] sm:$0xff]
        %v2095 = vld [vmem:[#allocation13 + $0x1f0] sm:$0xff]
        %v2096 = vld [vmem:[#allocation13 + $0x1f8] sm:$0xff]
        %v2097 = vld [vmem:[%s14] sm:$0xf]
        %v2099 = vlaneseq
        %v2100 = vshrl.u32 %v2099, 7
        %v2101 = vsub.s32 0, %v2100
        %v2102 = vrot.slane %v2097, %v2101
        %v2103 = vlaneseq
        %v2104 = vshrl.u32 %v2103, 7
        %v2105 = vsub.s32 1, %v2104
        %v2106 = vrot.slane %v2097, %v2105
        %v2107 = vlaneseq
        %v2108 = vshrl.u32 %v2107, 7
        %v2109 = vsub.s32 2, %v2108
        %v2110 = vrot.slane %v2097, %v2109
        %v2111 = vlaneseq
        %v2112 = vshrl.u32 %v2111, 7
        %v2113 = vsub.s32 3, %v2112
        %v2114 = vrot.slane %v2097, %v2113
        %2119 = vmatprep.subr.mxu0 %v2034
        %2120 = vmatpush1.msra.mxu0 %v2033
        %2121 = vmatprep.subr.mxu0 %v2038
        %2122 = vmatpush1.msra.mxu0 %v2037
        %2123 = vmatprep.subr.mxu0 %v2042
        %2124 = vmatpush1.msra.mxu0 %v2041
        %2125 = vmatprep.subr.mxu0 %v2046
        %2126 = vmatpush1.msra.mxu0 %v2045
        %2127 = vmatprep.subr.mxu0 %v2050
        %2128 = vmatpush1.msra.mxu0 %v2049
        %2129 = vmatprep.subr.mxu0 %v2054
        %2130 = vmatpush1.msra.mxu0 %v2053
        %2131 = vmatprep.subr.mxu0 %v2058
        %2132 = vmatpush1.msra.mxu0 %v2057
        %2133 = vmatprep.subr.mxu0 %v2062
        %2134 = vmatpush1.msra.mxu0 %v2061
        %2135 = vmatprep.subr.mxu0 %v2066
        %2136 = vmatpush1.msra.mxu0 %v2065
        %2137 = vmatprep.subr.mxu0 %v2070
        %2138 = vmatpush1.msra.mxu0 %v2069
        %2139 = vmatprep.subr.mxu0 %v2074
        %2140 = vmatpush1.msra.mxu0 %v2073
        %2141 = vmatprep.subr.mxu0 %v2078
        %2142 = vmatpush1.msra.mxu0 %v2077
        %2143 = vmatprep.subr.mxu0 %v2082
        %2144 = vmatpush1.msra.mxu0 %v2081
        %2145 = vmatprep.subr.mxu0 %v2086
        %2146 = vmatpush1.msra.mxu0 %v2085
        %2147 = vmatprep.subr.mxu0 %v2090
        %2148 = vmatpush1.msra.mxu0 %v2089
        %2149 = vmatprep.subr.mxu0 %v2094
        %2150 = vmatpush1.msra.mxu0 %v2093
        %2151 = vmatprep.subr.mxu0 0.0
        %2152 = vmatpush1.msra.mxu0 0.0
        %2153 = vmatprep.subr.mxu0 0.0
        %2154 = vmatpush1.msra.mxu0 0.0
        %2155 = vmatprep.subr.mxu0 0.0
        %2156 = vmatpush1.msra.mxu0 0.0
        %2157 = vmatprep.subr.mxu0 0.0
        %2158 = vmatpush1.msra.mxu0 0.0
        %2159 = vmatprep.subr.mxu0 0.0
        %2160 = vmatpush1.msra.mxu0 0.0
        %2161 = vmatprep.subr.mxu0 0.0
        %2162 = vmatpush1.msra.mxu0 0.0
        %2163 = vmatprep.subr.mxu0 0.0
        %2164 = vmatpush1.msra.mxu0 0.0
        %2165 = vmatprep.subr.mxu0 0.0
        %2166 = vmatpush1.msra.mxu0 0.0
        %2167 = vmatprep.subr.mxu0 0.0
        %2168 = vmatpush1.msra.mxu0 0.0
        %2169 = vmatprep.subr.mxu0 0.0
        %2170 = vmatpush1.msra.mxu0 0.0
        %2171 = vmatprep.subr.mxu0 0.0
        %2172 = vmatpush1.msra.mxu0 0.0
        %2173 = vmatprep.subr.mxu0 0.0
        %2174 = vmatpush1.msra.mxu0 0.0
        %2175 = vmatprep.subr.mxu0 0.0
        %2176 = vmatpush1.msra.mxu0 0.0
        %2177 = vmatprep.subr.mxu0 0.0
        %2178 = vmatpush1.msra.mxu0 0.0
        %2179 = vmatprep.subr.mxu0 0.0
        %2180 = vmatpush1.msra.mxu0 0.0
        %2181 = vmatprep.subr.mxu0 0.0
        %2182 = vmatpush1.msra.mxu0 0.0
        %2183 = vmatprep.mubr.f32.mxu0 0.0
        %2184 = vmatmul.mubr.f32.gmra.mrb[0].mxu0 %v2032
        %v2185 = vpop.f32.mrb[0].mxu0
        %v2186 = vadd.f32 %v2102, %v2185
        %v2187 = vpop.f32.mrb[0].mxu0
        %v2188 = vadd.f32 %v2106, %v2187
        %2189 = vdwg.mxu0
        %2190 = vmatprep.subr.mxu0 %v2036
        %2191 = vmatpush1.msra.mxu0 %v2035
        %2192 = vmatprep.subr.mxu0 %v2040
        %2193 = vmatpush1.msra.mxu0 %v2039
        %2194 = vmatprep.subr.mxu0 %v2044
        %2195 = vmatpush1.msra.mxu0 %v2043
        %2196 = vmatprep.subr.mxu0 %v2048
        %2197 = vmatpush1.msra.mxu0 %v2047
        %2198 = vmatprep.subr.mxu0 %v2052
        %2199 = vmatpush1.msra.mxu0 %v2051
        %2200 = vmatprep.subr.mxu0 %v2056
        %2201 = vmatpush1.msra.mxu0 %v2055
        %2202 = vmatprep.subr.mxu0 %v2060
        %2203 = vmatpush1.msra.mxu0 %v2059
        %2204 = vmatprep.subr.mxu0 %v2064
        %2205 = vmatpush1.msra.mxu0 %v2063
        %2206 = vmatprep.subr.mxu0 %v2068
        %2207 = vmatpush1.msra.mxu0 %v2067
        %2208 = vmatprep.subr.mxu0 %v2072
        %2209 = vmatpush1.msra.mxu0 %v2071
        %2210 = vmatprep.subr.mxu0 %v2076
        %2211 = vmatpush1.msra.mxu0 %v2075
        %2212 = vmatprep.subr.mxu0 %v2080
        %2213 = vmatpush1.msra.mxu0 %v2079
        %2214 = vmatprep.subr.mxu0 %v2084
        %2215 = vmatpush1.msra.mxu0 %v2083
        %2216 = vmatprep.subr.mxu0 %v2088
        %2217 = vmatpush1.msra.mxu0 %v2087
        %2218 = vmatprep.subr.mxu0 %v2092
        %2219 = vmatpush1.msra.mxu0 %v2091
        %2220 = vmatprep.subr.mxu0 %v2096
        %2221 = vmatpush1.msra.mxu0 %v2095
        %2222 = vmatprep.subr.mxu0 0.0
        %2223 = vmatpush1.msra.mxu0 0.0
        %2224 = vmatprep.subr.mxu0 0.0
        %2225 = vmatpush1.msra.mxu0 0.0
        %2226 = vmatprep.subr.mxu0 0.0
        %2227 = vmatpush1.msra.mxu0 0.0
        %2228 = vmatprep.subr.mxu0 0.0
        %2229 = vmatpush1.msra.mxu0 0.0
        %2230 = vmatprep.subr.mxu0 0.0
        %2231 = vmatpush1.msra.mxu0 0.0
        %2232 = vmatprep.subr.mxu0 0.0
        %2233 = vmatpush1.msra.mxu0 0.0
        %2234 = vmatprep.subr.mxu0 0.0
        %2235 = vmatpush1.msra.mxu0 0.0
        %2236 = vmatprep.subr.mxu0 0.0
        %2237 = vmatpush1.msra.mxu0 0.0
        %2238 = vmatprep.subr.mxu0 0.0
        %2239 = vmatpush1.msra.mxu0 0.0
        %2240 = vmatprep.subr.mxu0 0.0
        %2241 = vmatpush1.msra.mxu0 0.0
        %2242 = vmatprep.subr.mxu0 0.0
        %2243 = vmatpush1.msra.mxu0 0.0
        %2244 = vmatprep.subr.mxu0 0.0
        %2245 = vmatpush1.msra.mxu0 0.0
        %2246 = vmatprep.subr.mxu0 0.0
        %2247 = vmatpush1.msra.mxu0 0.0
        %2248 = vmatprep.subr.mxu0 0.0
        %2249 = vmatpush1.msra.mxu0 0.0
        %2250 = vmatprep.subr.mxu0 0.0
        %2251 = vmatpush1.msra.mxu0 0.0
        %2252 = vmatprep.subr.mxu0 0.0
        %2253 = vmatpush1.msra.mxu0 0.0
        %2254 = vmatprep.mubr.f32.mxu0 0.0
        %2255 = vmatmul.mubr.f32.gmra.mrb[0].mxu0 %v2032
        %v2256 = vpop.f32.mrb[0].mxu0
        %v2257 = vadd.f32 %v2110, %v2256
        %v2258 = vpop.f32.mrb[0].mxu0
        %v2259 = vadd.f32 %v2114, %v2258
        %2260 = vdwg.mxu0
        %v2261 = vmax.f32 %v2186, 0.0
        %v2262 = vmax.f32 %v2188, 0.0
        %v2263 = vmax.f32 %v2257, 0.0
        %v2264 = vmax.f32 %v2259, 0.0
        %v2265 = vld [vmem:[#allocation14] sm:$0xff]
        %v2266 = vld [vmem:[#allocation14 + $0x8] sm:$0xff]
        %v2267 = vld [vmem:[#allocation14 + $0x10] sm:$0xff]
        %v2268 = vld [vmem:[#allocation14 + $0x18] sm:$0xff]
        %v2269 = vld [vmem:[#allocation14 + $0x20] sm:$0xff]
        %v2270 = vld [vmem:[#allocation14 + $0x28] sm:$0xff]
        %v2271 = vld [vmem:[#allocation14 + $0x30] sm:$0xff]
        %v2272 = vld [vmem:[#allocation14 + $0x38] sm:$0xff]
        %v2273 = vld [vmem:[#allocation14 + $0x40] sm:$0xff]
        %v2274 = vld [vmem:[#allocation14 + $0x48] sm:$0xff]
        %v2275 = vld [vmem:[#allocation14 + $0x50] sm:$0xff]
        %v2276 = vld [vmem:[#allocation14 + $0x58] sm:$0xff]
        %v2277 = vld [vmem:[#allocation14 + $0x60] sm:$0xff]
        %v2278 = vld [vmem:[#allocation14 + $0x68] sm:$0xff]
        %v2279 = vld [vmem:[#allocation14 + $0x70] sm:$0xff]
        %v2280 = vld [vmem:[#allocation14 + $0x78] sm:$0xff]
        %v2281 = vld [vmem:[#allocation14 + $0x80] sm:$0xff]
        %v2282 = vld [vmem:[#allocation14 + $0x88] sm:$0xff]
        %v2283 = vld [vmem:[#allocation14 + $0x90] sm:$0xff]
        %v2284 = vld [vmem:[#allocation14 + $0x98] sm:$0xff]
        %v2285 = vld [vmem:[#allocation14 + $0xa0] sm:$0xff]
        %v2286 = vld [vmem:[#allocation14 + $0xa8] sm:$0xff]
        %v2287 = vld [vmem:[#allocation14 + $0xb0] sm:$0xff]
        %v2288 = vld [vmem:[#allocation14 + $0xb8] sm:$0xff]
        %v2289 = vld [vmem:[#allocation14 + $0xc0] sm:$0xff]
        %v2290 = vld [vmem:[#allocation14 + $0xc8] sm:$0xff]
        %v2291 = vld [vmem:[#allocation14 + $0xd0] sm:$0xff]
        %v2292 = vld [vmem:[#allocation14 + $0xd8] sm:$0xff]
        %v2293 = vld [vmem:[#allocation14 + $0xe0] sm:$0xff]
        %v2294 = vld [vmem:[#allocation14 + $0xe8] sm:$0xff]
        %v2295 = vld [vmem:[#allocation14 + $0xf0] sm:$0xff]
        %v2296 = vld [vmem:[#allocation14 + $0xf8] sm:$0xff]
        %v2297 = vld [vmem:[#allocation14 + $0x100] sm:$0xff]
        %v2298 = vld [vmem:[#allocation14 + $0x108] sm:$0xff]
        %v2299 = vld [vmem:[#allocation14 + $0x110] sm:$0xff]
        %v2300 = vld [vmem:[#allocation14 + $0x118] sm:$0xff]
        %v2301 = vld [vmem:[#allocation14 + $0x120] sm:$0xff]
        %v2302 = vld [vmem:[#allocation14 + $0x128] sm:$0xff]
        %v2303 = vld [vmem:[#allocation14 + $0x130] sm:$0xff]
        %v2304 = vld [vmem:[#allocation14 + $0x138] sm:$0xff]
        %v2305 = vld [vmem:[#allocation14 + $0x140] sm:$0xff]
        %v2306 = vld [vmem:[#allocation14 + $0x148] sm:$0xff]
        %v2307 = vld [vmem:[#allocation14 + $0x150] sm:$0xff]
        %v2308 = vld [vmem:[#allocation14 + $0x158] sm:$0xff]
        %v2309 = vld [vmem:[#allocation14 + $0x160] sm:$0xff]
        %v2310 = vld [vmem:[#allocation14 + $0x168] sm:$0xff]
        %v2311 = vld [vmem:[#allocation14 + $0x170] sm:$0xff]
        %v2312 = vld [vmem:[#allocation14 + $0x178] sm:$0xff]
        %v2313 = vld [vmem:[#allocation14 + $0x180] sm:$0xff]
        %v2314 = vld [vmem:[#allocation14 + $0x188] sm:$0xff]
        %v2315 = vld [vmem:[#allocation14 + $0x190] sm:$0xff]
        %v2316 = vld [vmem:[#allocation14 + $0x198] sm:$0xff]
        %v2317 = vld [vmem:[#allocation14 + $0x1a0] sm:$0xff]
        %v2318 = vld [vmem:[#allocation14 + $0x1a8] sm:$0xff]
        %v2319 = vld [vmem:[#allocation14 + $0x1b0] sm:$0xff]
        %v2320 = vld [vmem:[#allocation14 + $0x1b8] sm:$0xff]
        %v2321 = vld [vmem:[#allocation14 + $0x1c0] sm:$0xff]
        %v2322 = vld [vmem:[#allocation14 + $0x1c8] sm:$0xff]
        %v2323 = vld [vmem:[#allocation14 + $0x1d0] sm:$0xff]
        %v2324 = vld [vmem:[#allocation14 + $0x1d8] sm:$0xff]
        %v2325 = vld [vmem:[#allocation14 + $0x1e0] sm:$0xff]
        %v2326 = vld [vmem:[#allocation14 + $0x1e8] sm:$0xff]
        %v2327 = vld [vmem:[#allocation14 + $0x1f0] sm:$0xff]
        %v2328 = vld [vmem:[#allocation14 + $0x1f8] sm:$0xff]
        %v2329 = vld [vmem:[%s16] sm:$0x1]
        %v2331 = vlaneseq
        %v2332 = vshrl.u32 %v2331, 7
        %v2333 = vsub.s32 0, %v2332
        %v2334 = vrot.slane %v2329, %v2333
        %2336 = vmatprep.subr.mxu0 0.0
        %2337 = vmatpush1.msra.mxu0 %v2265
        %2338 = vmatprep.subr.mxu0 0.0
        %2339 = vmatpush1.msra.mxu0 %v2266
        %2340 = vmatprep.subr.mxu0 0.0
        %2341 = vmatpush1.msra.mxu0 %v2267
        %2342 = vmatprep.subr.mxu0 0.0
        %2343 = vmatpush1.msra.mxu0 %v2268
        %2344 = vmatprep.subr.mxu0 0.0
        %2345 = vmatpush1.msra.mxu0 %v2269
        %2346 = vmatprep.subr.mxu0 0.0
        %2347 = vmatpush1.msra.mxu0 %v2270
        %2348 = vmatprep.subr.mxu0 0.0
        %2349 = vmatpush1.msra.mxu0 %v2271
        %2350 = vmatprep.subr.mxu0 0.0
        %2351 = vmatpush1.msra.mxu0 %v2272
        %2352 = vmatprep.subr.mxu0 0.0
        %2353 = vmatpush1.msra.mxu0 %v2273
        %2354 = vmatprep.subr.mxu0 0.0
        %2355 = vmatpush1.msra.mxu0 %v2274
        %2356 = vmatprep.subr.mxu0 0.0
        %2357 = vmatpush1.msra.mxu0 %v2275
        %2358 = vmatprep.subr.mxu0 0.0
        %2359 = vmatpush1.msra.mxu0 %v2276
        %2360 = vmatprep.subr.mxu0 0.0
        %2361 = vmatpush1.msra.mxu0 %v2277
        %2362 = vmatprep.subr.mxu0 0.0
        %2363 = vmatpush1.msra.mxu0 %v2278
        %2364 = vmatprep.subr.mxu0 0.0
        %2365 = vmatpush1.msra.mxu0 %v2279
        %2366 = vmatprep.subr.mxu0 0.0
        %2367 = vmatpush1.msra.mxu0 %v2280
        %2368 = vmatprep.subr.mxu0 0.0
        %2369 = vmatpush1.msra.mxu0 %v2281
        %2370 = vmatprep.subr.mxu0 0.0
        %2371 = vmatpush1.msra.mxu0 %v2282
        %2372 = vmatprep.subr.mxu0 0.0
        %2373 = vmatpush1.msra.mxu0 %v2283
        %2374 = vmatprep.subr.mxu0 0.0
        %2375 = vmatpush1.msra.mxu0 %v2284
        %2376 = vmatprep.subr.mxu0 0.0
        %2377 = vmatpush1.msra.mxu0 %v2285
        %2378 = vmatprep.subr.mxu0 0.0
        %2379 = vmatpush1.msra.mxu0 %v2286
        %2380 = vmatprep.subr.mxu0 0.0
        %2381 = vmatpush1.msra.mxu0 %v2287
        %2382 = vmatprep.subr.mxu0 0.0
        %2383 = vmatpush1.msra.mxu0 %v2288
        %2384 = vmatprep.subr.mxu0 0.0
        %2385 = vmatpush1.msra.mxu0 %v2289
        %2386 = vmatprep.subr.mxu0 0.0
        %2387 = vmatpush1.msra.mxu0 %v2290
        %2388 = vmatprep.subr.mxu0 0.0
        %2389 = vmatpush1.msra.mxu0 %v2291
        %2390 = vmatprep.subr.mxu0 0.0
        %2391 = vmatpush1.msra.mxu0 %v2292
        %2392 = vmatprep.subr.mxu0 0.0
        %2393 = vmatpush1.msra.mxu0 %v2293
        %2394 = vmatprep.subr.mxu0 0.0
        %2395 = vmatpush1.msra.mxu0 %v2294
        %2396 = vmatprep.subr.mxu0 0.0
        %2397 = vmatpush1.msra.mxu0 %v2295
        %2398 = vmatprep.subr.mxu0 0.0
        %2399 = vmatpush1.msra.mxu0 %v2296
        %2400 = vmatprep.mubr.f32.mxu0 %v2262
        %2401 = vmatmul.mubr.f32.gmra.mrb[0].mxu0 %v2261
        %v2402 = vpop.f32.mrb[0].mxu0
        %v2403 = vadd.f32 %v2334, %v2402
        %v2404 = vpop.f32.mrb[0].mxu0
        %2405 = vdwg.mxu0
        %2406 = vmatprep.subr.mxu0 0.0
        %2407 = vmatpush1.msra.mxu0 %v2297
        %2408 = vmatprep.subr.mxu0 0.0
        %2409 = vmatpush1.msra.mxu0 %v2298
        %2410 = vmatprep.subr.mxu0 0.0
        %2411 = vmatpush1.msra.mxu0 %v2299
        %2412 = vmatprep.subr.mxu0 0.0
        %2413 = vmatpush1.msra.mxu0 %v2300
        %2414 = vmatprep.subr.mxu0 0.0
        %2415 = vmatpush1.msra.mxu0 %v2301
        %2416 = vmatprep.subr.mxu0 0.0
        %2417 = vmatpush1.msra.mxu0 %v2302
        %2418 = vmatprep.subr.mxu0 0.0
        %2419 = vmatpush1.msra.mxu0 %v2303
        %2420 = vmatprep.subr.mxu0 0.0
        %2421 = vmatpush1.msra.mxu0 %v2304
        %2422 = vmatprep.subr.mxu0 0.0
        %2423 = vmatpush1.msra.mxu0 %v2305
        %2424 = vmatprep.subr.mxu0 0.0
        %2425 = vmatpush1.msra.mxu0 %v2306
        %2426 = vmatprep.subr.mxu0 0.0
        %2427 = vmatpush1.msra.mxu0 %v2307
        %2428 = vmatprep.subr.mxu0 0.0
        %2429 = vmatpush1.msra.mxu0 %v2308
        %2430 = vmatprep.subr.mxu0 0.0
        %2431 = vmatpush1.msra.mxu0 %v2309
        %2432 = vmatprep.subr.mxu0 0.0
        %2433 = vmatpush1.msra.mxu0 %v2310
        %2434 = vmatprep.subr.mxu0 0.0
        %2435 = vmatpush1.msra.mxu0 %v2311
        %2436 = vmatprep.subr.mxu0 0.0
        %2437 = vmatpush1.msra.mxu0 %v2312
        %2438 = vmatprep.subr.mxu0 0.0
        %2439 = vmatpush1.msra.mxu0 %v2313
        %2440 = vmatprep.subr.mxu0 0.0
        %2441 = vmatpush1.msra.mxu0 %v2314
        %2442 = vmatprep.subr.mxu0 0.0
        %2443 = vmatpush1.msra.mxu0 %v2315
        %2444 = vmatprep.subr.mxu0 0.0
        %2445 = vmatpush1.msra.mxu0 %v2316
        %2446 = vmatprep.subr.mxu0 0.0
        %2447 = vmatpush1.msra.mxu0 %v2317
        %2448 = vmatprep.subr.mxu0 0.0
        %2449 = vmatpush1.msra.mxu0 %v2318
        %2450 = vmatprep.subr.mxu0 0.0
        %2451 = vmatpush1.msra.mxu0 %v2319
        %2452 = vmatprep.subr.mxu0 0.0
        %2453 = vmatpush1.msra.mxu0 %v2320
        %2454 = vmatprep.subr.mxu0 0.0
        %2455 = vmatpush1.msra.mxu0 %v2321
        %2456 = vmatprep.subr.mxu0 0.0
        %2457 = vmatpush1.msra.mxu0 %v2322
        %2458 = vmatprep.subr.mxu0 0.0
        %2459 = vmatpush1.msra.mxu0 %v2323
        %2460 = vmatprep.subr.mxu0 0.0
        %2461 = vmatpush1.msra.mxu0 %v2324
        %2462 = vmatprep.subr.mxu0 0.0
        %2463 = vmatpush1.msra.mxu0 %v2325
        %2464 = vmatprep.subr.mxu0 0.0
        %2465 = vmatpush1.msra.mxu0 %v2326
        %2466 = vmatprep.subr.mxu0 0.0
        %2467 = vmatpush1.msra.mxu0 %v2327
        %2468 = vmatprep.subr.mxu0 0.0
        %2469 = vmatpush1.msra.mxu0 %v2328
        %2470 = vmatprep.mubr.f32.mxu0 %v2264
        %2471 = vmatmul.mubr.f32.gmra.mrb[0].mxu0 %v2263
        %v2472 = vpop.f32.mrb[0].mxu0
        %v2473 = vadd.f32 %v2403, %v2472
        %v2474 = vpop.f32.mrb[0].mxu0
        %2475 = vdwg.mxu0
        %v2476 = vld [vmem:[%s17] sm:$0x1]
        %v2477 = vld [vmem:[%s18] sm:$0x1]
        %v2478 = vadd.f32 %v2032, %v2473
        %2479 = vadd.xlane.f32.xlu0 %v2478
        %v2480 = vpop.xlane.xlu0 %2479
        %v2481 = vmul.f32 %v2480, %v2001
        %v2482 = vsub.f32 %v2478, %v2481
        %v2483 = vmul.f32 %v2482, %v2482
        %2484 = vadd.xlane.f32.xlu0 %v2483
        %v2485 = vpop.xlane.xlu0 %2484
        %v2486 = vmul.f32 %v2485, %v2007
        %v2487 = vrsqrt.pop %v2486
        %v2488 = vmul.f32 %v2486, %v2487
        %vm2489 = vcmp.eq.f32.partialorder %v2486, inf
        %v2490 = vsel %vm2489, %v2486, %v2488
        %vm2491 = vcmp.eq.f32.partialorder %v2486, 0.0
        %v2492 = vand.u32 %v2486, 2147483648
        %v2493 = vsel %vm2491, %v2492, %v2490
        %v2495 = vlaneseq
        %v2496 = vshrl.u32 %v2495, 7
        %v2497 = vsub.s32 0, %v2496
        %v2498 = vrot.slane %v2476, %v2497
        %v2500 = vmul.f32 %v2498, %v2482
        %v2501 = vadd.f32 %v2493, 1e-06
        %v2502 = vrcp.pop %v2501
        %v2503 = vmul.f32 %v2500, %v2502
        %v2505 = vlaneseq
        %v2506 = vshrl.u32 %v2505, 7
        %v2507 = vsub.s32 0, %v2506
        %v2508 = vrot.slane %v2477, %v2507
        %v2510 = vadd.f32 %v2503, %v2508
        %2511 = vst [vmem:[%s705] sm:$0xff] %v2510
        %s2512 = sand.u32 %s459, 1
        %s2513 = scalar_lea.sflag [#allocation7], %s2512
        %s2514 = sand.u32 %s459, 1
        %s2515 = smul.addr %s2514, 8
        %s2516 = scalar_lea.vmem [#allocation16], %s2515
        // Predicated region
        $region121: #{ga_forward.1} parent=95 // pred_check
          %p2517 = pneg %p469
        $region122: #{ga_forward.1} parent=95 // pred_check_branch
          %2519 = sbr.rel (%p2517) target = $region124
        $region123: #{ga_forward.1} parent=95 // pred_region
          %s2521 = ssub.s32 128, 128
          %2522 = vsyncadd %s2513, %s2521
          %s2523 = smul.addr %s37, 128
          %s2524 = scalar_lea.hbm %s19, %s2523
          %s2526 = sshll.u32 %s2516, 4
          %s2527 = int_to_ptr.vmem [resolvable:$true] %s2526
          %2529 = dma.vmem_to_hbm [thread:$0]  %s2527, 128, %s2524, %s2513
        $region124: #{ga_forward.1} parent=95 // pred_fallthru
          _
      $region96: #{ga_forward.1} parent=5 // pred_fallthru
        _
      %p2530 = scmp.le.s32.totalorder 2, %s32
      // Predicated region
      $region125: #{ga_forward.1} parent=5 // pred_check
        %p2531 = pneg %p2530
      $region126: #{ga_forward.1} parent=5 // pred_check_branch
        %2533 = sbr.rel (%p2531) target = $region128
      $region127: #{ga_forward.1} parent=5 // pred_region
        %s2534 = ssub.s32 %s32, 2
        // Predicated region
        $region129: #{ga_forward.1} parent=127 // pred_check
          %p2535 = pneg %p475
        $region130: #{ga_forward.1} parent=127 // pred_check_branch
          %2537 = sbr.rel (%p2535) target = $region132
        $region131: #{ga_forward.1} parent=127 // pred_region
          %s2538 = sand.u32 %s460, 1
          %s2539 = scalar_lea.sflag [#allocation7], %s2538
          %s2540 = sand.u32 %s460, 1
          %s2541 = smul.addr %s2540, 8
          %s2542 = scalar_lea.vmem [#allocation16], %s2541
          %2543 = dma.done %s2539, 128
        $region132: #{ga_forward.1} parent=127 // pred_fallthru
          _
      $region128: #{ga_forward.1} parent=5 // pred_fallthru
        _
    $region6: #{ga_forward.1} parent=1 // loop_footer
      %s36 = sadd.s32 1, %s32
    $region7: #{ga_forward.1} parent=1 // loop_footer_branch
      %31 = sbr.rel target = $region3
    $region8: #{ga_forward.1} parent=1 // loop_exit
      _
    %2544 = vsyncpa [#allocation6], 1
    %s2545 = scalar_lea.sflag [#allocation6], 1
    %2546 = vsyncpa %s2545, 1
    %2547 = vsyncpa [#allocation9], 1
    %2548 = vsyncpa [#allocation12], 1
    %2549 = vsyncpa [#allocation15], 1
    %2550 = vsyncpa [#allocation7], 1
    %s2551 = scalar_lea.sflag [#allocation7], 1
    %2552 = vsyncpa %s2551, 1

</llo_original>
